<compile_context>
chip_gen: v7x
topology: tpu7x:2x2x1
jax: 0.10.0
libtpu: 0.0.40
codegen_flags: <defaults>
</compile_context>

<pallas_src>
import jax
import jax.numpy as jnp
from jax.experimental import pallas as pl
from jax.experimental.pallas import tpu as pltpu


# ----------------------------------------------------------------------------
# Fused RDB kernel (one batch element per grid step), channels-first layout.
# feat_ref columns: [WIN, WIN+Npad) hold the zero-padded image (flattened);
# columns outside that are zero (or stale-but-masked) halo.
# ----------------------------------------------------------------------------
def _build_rdb_kernel(*, N, G, K_in, K_out, W, WIN, SW, use_shortcut):
    Wp = W + 2
    # flat-index offsets of the 9 conv taps, tap order t = dr*3 + dc (matches
    # the (3,3,cin,G) -> (9,G,cin) weight reshape in the wrapper).
    offsets = [(dr - 1) * Wp + (dc - 1) for dr in range(3) for dc in range(3)]

    def kernel(*refs):
        # refs = [x, mask, w_tap_0..N-1, b_all, w_lff, b_lff, (w_sc, b_sc)?, out, feat]
        x_ref, mask_ref = refs[0], refs[1]
        w_refs = refs[2:2 + N]
        b_ref = refs[2 + N]
        wl_ref, bl_ref = refs[3 + N], refs[4 + N]
        idx = 5 + N
        if use_shortcut:
            ws_ref, bs_ref = refs[idx], refs[idx + 1]
            idx += 2
        o_ref = refs[idx]
        feat_ref = refs[idx + 1]          # (CF, S2) bf16 persistent feature buffer

        # One-time scrub of scratch VMEM.  NOT required for correctness (the
        # jnp.where masking below already blocks any stale value, incl. NaN,
        # from reaching a live result), but it is essentially free.
        @pl.when(pl.program_id(0) == 0)
        def _():
            feat_ref[...] = jnp.zeros(feat_ref.shape, feat_ref.dtype)

        # Interior-pixel mask over the SW-wide output window (lane-dense, tiny).
        valid = mask_ref[...] != 0.0                      # (1, SW) bool

        # Stage input channels: full-row, lane-dense store (also refreshes halo=0).
        feat_ref[0:K_in, :] = x_ref[0].astype(feat_ref.dtype)

        # ---- dense stack: N x (3x3 conv + bias + ReLU); concat == in-place row write
        for i in range(N):
            cin = K_in + i * G
            acc = jnp.zeros((G, SW), jnp.float32)
            for t, off in enumerate(offsets):
                acc = acc + jnp.dot(
                    w_refs[i][t],                                    # (G, cin) bf16
                    feat_ref[0:cin, WIN + off:WIN + off + SW],       # (cin, SW) bf16
                    preferred_element_type=jnp.float32)
            acc = acc + b_ref[i]                                     # (G, 1) f32
            # ReLU + force the conv pad ring (and any stale halo) to exactly 0.
            y = jnp.where(valid, jnp.maximum(acc, 0.0), 0.0)
            feat_ref[cin:cin + G, WIN:WIN + SW] = y.astype(feat_ref.dtype)

        # ---- tail: LFF (1x1 conv + ReLU) + shortcut + residual add ------------
        fm = feat_ref[:, WIN:WIN + SW]                               # (CF, SW) bf16
        lff = jnp.dot(wl_ref[...], fm, preferred_element_type=jnp.float32)
        lff = jnp.maximum(lff + bl_ref[...], 0.0)

        if use_shortcut:
            sc = jnp.dot(ws_ref[...], feat_ref[0:K_in, WIN:WIN + SW],
                         preferred_element_type=jnp.float32) + bs_ref[...]
        else:
            # identity residual: read the f32 input directly -> exact.
            sc = x_ref[0][:, WIN:WIN + SW]

        o_ref[0] = (lff + sc).astype(o_ref.dtype)

    return kernel


# ----------------------------------------------------------------------------
# Wrapper: NCHW in/out, single fused pallas_call.
# ----------------------------------------------------------------------------
def rdb_forward(params, x_nchw, spatial_shape, K_out, matmul_dtype=jnp.bfloat16):
    B, K_in, H0, W0 = x_nchw.shape
    Ho, Wo = int(spatial_shape[0]), int(spatial_shape[1])

    x = x_nchw
    if (H0, W0) != (Ho, Wo):
        # F.interpolate(mode='nearest'): src = floor(dst * in / out)  (wrapper glue)
        hi = (jnp.arange(Ho) * H0 // Ho).astype(jnp.int32)
        wi = (jnp.arange(Wo) * W0 // Wo).astype(jnp.int32)
        x = x[:, :, hi][:, :, :, wi]
    H, W = Ho, Wo
    Hp, Wp = H + 2, W + 2
    Npad = Hp * Wp                         # flattened zero-padded image
    HALO = Wp + 1                          # max |tap offset|
    WIN = ((HALO + 127) // 128) * 128      # 128-aligned start of the image window
    SW = ((Npad + 127) // 128) * 128       # lane-dense matmul / output width
    S2 = WIN + SW + WIN                    # total feature-buffer width (halo margins)

    N = len(params["convs"])
    G = params["convs"][0][0].shape[-1]
    CF = K_in + N * G
    use_shortcut = (K_in != K_out)

    # Channels-first, zero-padded, lane-padded input slab: (B, K_in, S2), f32.
    xp = jnp.pad(x, ((0, 0), (0, 0), (1, 1), (1, 1))).reshape(B, K_in, Npad)
    xp = jnp.pad(xp, ((0, 0), (0, 0), (WIN, S2 - WIN - Npad)))

    # Interior-pixel mask over the SW-wide output window (lane-dense (1, SW)).
    q = jnp.arange(SW)
    r, c = q // Wp, q % Wp
    mask = ((q < Npad) & (r >= 1) & (r <= H) & (c >= 1) & (c <= W)).astype(jnp.float32)
    mask = mask.reshape(1, SW)

    # Per-layer tap weights: HWIO (3,3,cin,G) -> (9, G, cin), bf16 MXU operands.
    w_taps = [jnp.transpose(w, (0, 1, 3, 2)).reshape(9, G, w.shape[2]).astype(matmul_dtype)
              for (w, _) in params["convs"]]
    b_convs = jnp.stack([b for (_, b) in params["convs"]], 0).reshape(N, G, 1)   # f32
    w_lff = params["lff_w"].T.astype(matmul_dtype)                               # (K_out, CF)
    b_lff = params["lff_b"].reshape(K_out, 1)

    inputs = [xp, mask] + w_taps + [b_convs, w_lff, b_lff]
    in_specs = [
        pl.BlockSpec((1, K_in, S2), lambda b: (b, 0, 0)),
        pl.BlockSpec((1, SW), lambda b: (0, 0)),
    ]
    in_specs += [pl.BlockSpec(w.shape, lambda b: (0, 0, 0)) for w in w_taps]
    in_specs += [
        pl.BlockSpec((N, G, 1), lambda b: (0, 0, 0)),
        pl.BlockSpec((K_out, CF), lambda b: (0, 0)),
        pl.BlockSpec((K_out, 1), lambda b: (0, 0)),
    ]
    if use_shortcut:
        inputs += [params["sc_w"].T.astype(matmul_dtype), params["sc_b"].reshape(K_out, 1)]
        in_specs += [
            pl.BlockSpec((K_out, K_in), lambda b: (0, 0)),
            pl.BlockSpec((K_out, 1), lambda b: (0, 0)),
        ]

    kernel = _build_rdb_kernel(N=N, G=G, K_in=K_in, K_out=K_out, W=W,
                               WIN=WIN, SW=SW, use_shortcut=use_shortcut)

    out = pl.pallas_call(
        kernel,
        out_shape=jax.ShapeDtypeStruct((B, K_out, SW), x.dtype),
        grid=(B,),
        in_specs=in_specs,
        out_specs=pl.BlockSpec((1, K_out, SW), lambda b: (b, 0, 0)),
        scratch_shapes=[
            pltpu.VMEM((CF, S2), matmul_dtype),    # persistent growing feature buffer (bf16)
        ],
        compiler_params=pltpu.CompilerParams(
            dimension_semantics=("parallel",),     # batch across TensorCores (v7x)
            vmem_limit_bytes=32 * 1024 * 1024,
        ),
    )(*inputs)

    # Drop the lane padding + conv pad ring, already NCHW.
    out = out[:, :, :Npad].reshape(B, K_out, Hp, Wp)[:, :, 1:H + 1, 1:W + 1]
    return out


# ----------------------------------------------------------------------------
# Parameter init (deterministic, synthetic) + pure-JAX reference for validation
# ----------------------------------------------------------------------------
def init_rdb_params(key, K_in, K_out, N, G, kernel_size=3):
    params = {"convs": []}
    for i in range(N):
        cin = K_in + i * G
        key, kw_, kb_ = jax.random.split(key, 3)
        fan_in = cin * kernel_size * kernel_size
        w = jax.random.normal(kw_, (kernel_size, kernel_size, cin, G),
                              jnp.float32) / jnp.sqrt(float(fan_in))
        b = jax.random.normal(kb_, (G,), jnp.float32) * 0.1
        params["convs"].append((w, b))
    cf = K_in + N * G
    key, k1, k2, k3, k4 = jax.random.split(key, 5)
    params["lff_w"] = jax.random.normal(k1, (cf, K_out), jnp.float32) / jnp.sqrt(float(cf))
    params["lff_b"] = jax.random.normal(k2, (K_out,), jnp.float32) * 0.1
    params["sc_w"] = jax.random.normal(k3, (K_in, K_out), jnp.float32) / jnp.sqrt(float(K_in))
    params["sc_b"] = jax.random.normal(k4, (K_out,), jnp.float32) * 0.1
    return params


def rdb_reference(params, x_nchw, spatial_shape, K_out):
    """Pure-JAX (XLA) reference with the same math, used only for a sanity check."""
    B, K_in, H0, W0 = x_nchw.shape
    Ho, Wo = spatial_shape
    x = jnp.transpose(x_nchw, (0, 2, 3, 1))
    if (H0, W0) != (Ho, Wo):
        hi = (jnp.arange(Ho) * H0 // Ho).astype(jnp.int32)
        wi = (jnp.arange(Wo) * W0 // Wo).astype(jnp.int32)
        x = x[:, hi][:, :, wi]
    feat = x
    for (w, b) in params["convs"]:
        y = jax.lax.conv_general_dilated(
            feat, w, window_strides=(1, 1), padding="SAME",
            dimension_numbers=("NHWC", "HWIO", "NHWC"))
        feat = jnp.concatenate([feat, jnp.maximum(y + b, 0.0)], axis=-1)
    lff = jnp.maximum(jnp.einsum("bhwc,co->bhwo", feat, params["lff_w"]) + params["lff_b"], 0.0)
    if K_in != K_out:
        sc = jnp.einsum("bhwc,co->bhwo", x, params["sc_w"]) + params["sc_b"]
    else:
        sc = x
    return jnp.transpose(lff + sc, (0, 3, 1, 2))


# ----------------------------------------------------------------------------
if __name__ == "__main__":
    B, K_in, K_out, N, G = 2, 4, 8, 3, 4
    spatial_shape = (16, 16)

    key = jax.random.PRNGKey(0)
    key, kx = jax.random.split(key)
    x = jax.random.normal(kx, (B, K_in, *spatial_shape), jnp.float32)  # NCHW like PyTorch
    params = init_rdb_params(key, K_in, K_out, N, G, kernel_size=3)

    fwd = jax.jit(lambda p, xx: rdb_forward(p, xx, spatial_shape, K_out))
    out = jax.block_until_ready(fwd(params, x))

    assert out.shape == (B, K_out, *spatial_shape), out.shape
    assert bool(jnp.all(jnp.isfinite(out)))

    # Sanity check against a pure-JAX f32 reference (loose tol: bf16 MXU operands).
    ref = rdb_reference(params, x, spatial_shape, K_out)
    err = float(jnp.max(jnp.abs(out - ref)))
    assert err < 0.1, f"max abs err vs reference = {err}"

    print("KERNEL_OK")
</pallas_src>

<mosaic_0001>
module attributes {stable_mosaic.version = 11 : i64} {
  func.func @kernel(%arg0: i32, %arg1: memref<1x4x640xf32, #tpu.memory_space<vmem>>, %arg2: memref<1x384xf32, #tpu.memory_space<vmem>>, %arg3: memref<9x4x4xbf16, #tpu.memory_space<vmem>>, %arg4: memref<9x4x8xbf16, #tpu.memory_space<vmem>>, %arg5: memref<9x4x12xbf16, #tpu.memory_space<vmem>>, %arg6: memref<3x4x1xf32, #tpu.memory_space<vmem>>, %arg7: memref<8x16xbf16, #tpu.memory_space<vmem>>, %arg8: memref<8x1xf32, #tpu.memory_space<vmem>>, %arg9: memref<8x4xbf16, #tpu.memory_space<vmem>>, %arg10: memref<8x1xf32, #tpu.memory_space<vmem>>, %arg11: memref<1x8x384xf32, #tpu.memory_space<vmem>>, %arg12: memref<16x640xbf16, #tpu.memory_space<vmem>>) attributes {dimension_semantics = [#tpu.dimension_semantics<parallel>], iteration_bounds = array<i64: 2>, scalar_prefetch = 0 : i64, scratch_operands = 1 : i64, tpu.core_type = #tpu.core_type<tc>, window_params = [{transform_indices = @transform_0, window_bounds = array<i64: 1, 4, 640>}, {pipeline_mode = #tpu.pipeline_mode<synchronous>, transform_indices = @transform_1, window_bounds = array<i64: 1, 384>}, {pipeline_mode = #tpu.pipeline_mode<synchronous>, transform_indices = @transform_2, window_bounds = array<i64: 9, 4, 4>}, {pipeline_mode = #tpu.pipeline_mode<synchronous>, transform_indices = @transform_3, window_bounds = array<i64: 9, 4, 8>}, {pipeline_mode = #tpu.pipeline_mode<synchronous>, transform_indices = @transform_4, window_bounds = array<i64: 9, 4, 12>}, {pipeline_mode = #tpu.pipeline_mode<synchronous>, transform_indices = @transform_5, window_bounds = array<i64: 3, 4, 1>}, {pipeline_mode = #tpu.pipeline_mode<synchronous>, transform_indices = @transform_6, window_bounds = array<i64: 8, 16>}, {pipeline_mode = #tpu.pipeline_mode<synchronous>, transform_indices = @transform_7, window_bounds = array<i64: 8, 1>}, {pipeline_mode = #tpu.pipeline_mode<synchronous>, transform_indices = @transform_8, window_bounds = array<i64: 8, 4>}, {pipeline_mode = #tpu.pipeline_mode<synchronous>, transform_indices = @transform_9, window_bounds = array<i64: 8, 1>}, {transform_indices = @transform_10, window_bounds = array<i64: 1, 8, 384>}]} {
    %c0_i32 = arith.constant 0 : i32
    %0 = arith.cmpi eq, %arg0, %c0_i32 : i32
    %1 = arith.extui %0 : i1 to i32
    %c0_i32_0 = arith.constant 0 : i32
    %2 = arith.cmpi ne, %1, %c0_i32_0 : i32
    scf.if %2 {
      %cst_193 = arith.constant 0.000000e+00 : bf16
      %202 = vector.broadcast %cst_193 : bf16 to vector<16x640xbf16>
      %c0_194 = arith.constant 0 : index
      %c0_195 = arith.constant 0 : index
      %203 = vector.load %arg12[%c0_194, %c0_195] : memref<16x640xbf16, #tpu.memory_space<vmem>>, vector<16x640xbf16>
      tpu.vector_store %arg12[%c0_194, %c0_195], %202 {strides = array<i32>} : memref<16x640xbf16, #tpu.memory_space<vmem>>, vector<16x640xbf16>,
    } else {
    }
    %c0 = arith.constant 0 : index
    %c0_1 = arith.constant 0 : index
    %3 = vector.load %arg2[%c0, %c0_1] : memref<1x384xf32, #tpu.memory_space<vmem>>, vector<1x384xf32>
    %cst = arith.constant 0.000000e+00 : f32
    %4 = vector.broadcast %cst : f32 to vector<1x384xf32>
    %5 = arith.cmpf one, %3, %4 : vector<1x384xf32>
    %c0_2 = arith.constant 0 : index
    %c0_3 = arith.constant 0 : index
    %c0_4 = arith.constant 0 : index
    %6 = vector.load %arg1[%c0_2, %c0_3, %c0_4] : memref<1x4x640xf32, #tpu.memory_space<vmem>>, vector<1x4x640xf32>
    %7 = vector.shape_cast %6 : vector<1x4x640xf32> to vector<4x640xf32>
    %8 = arith.truncf %7 : vector<4x640xf32> to vector<4x640xbf16>
    %c0_5 = arith.constant 0 : index
    %c0_6 = arith.constant 0 : index
    %9 = vector.load %arg12[%c0_5, %c0_6] : memref<16x640xbf16, #tpu.memory_space<vmem>>, vector<4x640xbf16>
    tpu.vector_store %arg12[%c0_5, %c0_6], %8 {strides = array<i32>} : memref<16x640xbf16, #tpu.memory_space<vmem>>, vector<4x640xbf16>,
    %cst_7 = arith.constant 0.000000e+00 : f32
    %10 = vector.broadcast %cst_7 : f32 to vector<4x384xf32>
    %c0_8 = arith.constant 0 : index
    %c0_9 = arith.constant 0 : index
    %c0_10 = arith.constant 0 : index
    %11 = vector.load %arg3[%c0_8, %c0_9, %c0_10] : memref<9x4x4xbf16, #tpu.memory_space<vmem>>, vector<1x4x4xbf16>
    %12 = vector.shape_cast %11 : vector<1x4x4xbf16> to vector<4x4xbf16>
    %c0_11 = arith.constant 0 : index
    %c109 = arith.constant 109 : index
    %13 = vector.load %arg12[%c0_11, %c109] : memref<16x640xbf16, #tpu.memory_space<vmem>>, vector<4x384xbf16>
    %cst_12 = arith.constant dense<0.000000e+00> : vector<4x384xf32>
    %14 = tpu.matmul %12, %13, %cst_12 {dimension_numbers = #tpu.dot_dimension_numbers<[1], [0], [0], [1], [0, 0, 1, 1], [], []>} : vector<4x4xbf16>, vector<4x384xbf16>, vector<4x384xf32> -> vector<4x384xf32>
    %15 = arith.addf %10, %14 : vector<4x384xf32>
    %c1 = arith.constant 1 : index
    %c0_13 = arith.constant 0 : index
    %c0_14 = arith.constant 0 : index
    %16 = vector.load %arg3[%c1, %c0_13, %c0_14] : memref<9x4x4xbf16, #tpu.memory_space<vmem>>, vector<1x4x4xbf16>
    %17 = vector.shape_cast %16 : vector<1x4x4xbf16> to vector<4x4xbf16>
    %c0_15 = arith.constant 0 : index
    %c110 = arith.constant 110 : index
    %18 = vector.load %arg12[%c0_15, %c110] : memref<16x640xbf16, #tpu.memory_space<vmem>>, vector<4x384xbf16>
    %cst_16 = arith.constant dense<0.000000e+00> : vector<4x384xf32>
    %19 = tpu.matmul %17, %18, %cst_16 {dimension_numbers = #tpu.dot_dimension_numbers<[1], [0], [0], [1], [0, 0, 1, 1], [], []>} : vector<4x4xbf16>, vector<4x384xbf16>, vector<4x384xf32> -> vector<4x384xf32>
    %20 = arith.addf %15, %19 : vector<4x384xf32>
    %c2 = arith.constant 2 : index
    %c0_17 = arith.constant 0 : index
    %c0_18 = arith.constant 0 : index
    %21 = vector.load %arg3[%c2, %c0_17, %c0_18] : memref<9x4x4xbf16, #tpu.memory_space<vmem>>, vector<1x4x4xbf16>
    %22 = vector.shape_cast %21 : vector<1x4x4xbf16> to vector<4x4xbf16>
    %c0_19 = arith.constant 0 : index
    %c111 = arith.constant 111 : index
    %23 = vector.load %arg12[%c0_19, %c111] : memref<16x640xbf16, #tpu.memory_space<vmem>>, vector<4x384xbf16>
    %cst_20 = arith.constant dense<0.000000e+00> : vector<4x384xf32>
    %24 = tpu.matmul %22, %23, %cst_20 {dimension_numbers = #tpu.dot_dimension_numbers<[1], [0], [0], [1], [0, 0, 1, 1], [], []>} : vector<4x4xbf16>, vector<4x384xbf16>, vector<4x384xf32> -> vector<4x384xf32>
    %25 = arith.addf %20, %24 : vector<4x384xf32>
    %c3 = arith.constant 3 : index
    %c0_21 = arith.constant 0 : index
    %c0_22 = arith.constant 0 : index
    %26 = vector.load %arg3[%c3, %c0_21, %c0_22] : memref<9x4x4xbf16, #tpu.memory_space<vmem>>, vector<1x4x4xbf16>
    %27 = vector.shape_cast %26 : vector<1x4x4xbf16> to vector<4x4xbf16>
    %c0_23 = arith.constant 0 : index
    %c127 = arith.constant 127 : index
    %28 = vector.load %arg12[%c0_23, %c127] : memref<16x640xbf16, #tpu.memory_space<vmem>>, vector<4x384xbf16>
    %cst_24 = arith.constant dense<0.000000e+00> : vector<4x384xf32>
    %29 = tpu.matmul %27, %28, %cst_24 {dimension_numbers = #tpu.dot_dimension_numbers<[1], [0], [0], [1], [0, 0, 1, 1], [], []>} : vector<4x4xbf16>, vector<4x384xbf16>, vector<4x384xf32> -> vector<4x384xf32>
    %30 = arith.addf %25, %29 : vector<4x384xf32>
    %c4 = arith.constant 4 : index
    %c0_25 = arith.constant 0 : index
    %c0_26 = arith.constant 0 : index
    %31 = vector.load %arg3[%c4, %c0_25, %c0_26] : memref<9x4x4xbf16, #tpu.memory_space<vmem>>, vector<1x4x4xbf16>
    %32 = vector.shape_cast %31 : vector<1x4x4xbf16> to vector<4x4xbf16>
    %c0_27 = arith.constant 0 : index
    %c128 = arith.constant 128 : index
    %33 = vector.load %arg12[%c0_27, %c128] : memref<16x640xbf16, #tpu.memory_space<vmem>>, vector<4x384xbf16>
    %cst_28 = arith.constant dense<0.000000e+00> : vector<4x384xf32>
    %34 = tpu.matmul %32, %33, %cst_28 {dimension_numbers = #tpu.dot_dimension_numbers<[1], [0], [0], [1], [0, 0, 1, 1], [], []>} : vector<4x4xbf16>, vector<4x384xbf16>, vector<4x384xf32> -> vector<4x384xf32>
    %35 = arith.addf %30, %34 : vector<4x384xf32>
    %c5 = arith.constant 5 : index
    %c0_29 = arith.constant 0 : index
    %c0_30 = arith.constant 0 : index
    %36 = vector.load %arg3[%c5, %c0_29, %c0_30] : memref<9x4x4xbf16, #tpu.memory_space<vmem>>, vector<1x4x4xbf16>
    %37 = vector.shape_cast %36 : vector<1x4x4xbf16> to vector<4x4xbf16>
    %c0_31 = arith.constant 0 : index
    %c129 = arith.constant 129 : index
    %38 = vector.load %arg12[%c0_31, %c129] : memref<16x640xbf16, #tpu.memory_space<vmem>>, vector<4x384xbf16>
    %cst_32 = arith.constant dense<0.000000e+00> : vector<4x384xf32>
    %39 = tpu.matmul %37, %38, %cst_32 {dimension_numbers = #tpu.dot_dimension_numbers<[1], [0], [0], [1], [0, 0, 1, 1], [], []>} : vector<4x4xbf16>, vector<4x384xbf16>, vector<4x384xf32> -> vector<4x384xf32>
    %40 = arith.addf %35, %39 : vector<4x384xf32>
    %c6 = arith.constant 6 : index
    %c0_33 = arith.constant 0 : index
    %c0_34 = arith.constant 0 : index
    %41 = vector.load %arg3[%c6, %c0_33, %c0_34] : memref<9x4x4xbf16, #tpu.memory_space<vmem>>, vector<1x4x4xbf16>
    %42 = vector.shape_cast %41 : vector<1x4x4xbf16> to vector<4x4xbf16>
    %c0_35 = arith.constant 0 : index
    %c145 = arith.constant 145 : index
    %43 = vector.load %arg12[%c0_35, %c145] : memref<16x640xbf16, #tpu.memory_space<vmem>>, vector<4x384xbf16>
    %cst_36 = arith.constant dense<0.000000e+00> : vector<4x384xf32>
    %44 = tpu.matmul %42, %43, %cst_36 {dimension_numbers = #tpu.dot_dimension_numbers<[1], [0], [0], [1], [0, 0, 1, 1], [], []>} : vector<4x4xbf16>, vector<4x384xbf16>, vector<4x384xf32> -> vector<4x384xf32>
    %45 = arith.addf %40, %44 : vector<4x384xf32>
    %c7 = arith.constant 7 : index
    %c0_37 = arith.constant 0 : index
    %c0_38 = arith.constant 0 : index
    %46 = vector.load %arg3[%c7, %c0_37, %c0_38] : memref<9x4x4xbf16, #tpu.memory_space<vmem>>, vector<1x4x4xbf16>
    %47 = vector.shape_cast %46 : vector<1x4x4xbf16> to vector<4x4xbf16>
    %c0_39 = arith.constant 0 : index
    %c146 = arith.constant 146 : index
    %48 = vector.load %arg12[%c0_39, %c146] : memref<16x640xbf16, #tpu.memory_space<vmem>>, vector<4x384xbf16>
    %cst_40 = arith.constant dense<0.000000e+00> : vector<4x384xf32>
    %49 = tpu.matmul %47, %48, %cst_40 {dimension_numbers = #tpu.dot_dimension_numbers<[1], [0], [0], [1], [0, 0, 1, 1], [], []>} : vector<4x4xbf16>, vector<4x384xbf16>, vector<4x384xf32> -> vector<4x384xf32>
    %50 = arith.addf %45, %49 : vector<4x384xf32>
    %c8 = arith.constant 8 : index
    %c0_41 = arith.constant 0 : index
    %c0_42 = arith.constant 0 : index
    %51 = vector.load %arg3[%c8, %c0_41, %c0_42] : memref<9x4x4xbf16, #tpu.memory_space<vmem>>, vector<1x4x4xbf16>
    %52 = vector.shape_cast %51 : vector<1x4x4xbf16> to vector<4x4xbf16>
    %c0_43 = arith.constant 0 : index
    %c147 = arith.constant 147 : index
    %53 = vector.load %arg12[%c0_43, %c147] : memref<16x640xbf16, #tpu.memory_space<vmem>>, vector<4x384xbf16>
    %cst_44 = arith.constant dense<0.000000e+00> : vector<4x384xf32>
    %54 = tpu.matmul %52, %53, %cst_44 {dimension_numbers = #tpu.dot_dimension_numbers<[1], [0], [0], [1], [0, 0, 1, 1], [], []>} : vector<4x4xbf16>, vector<4x384xbf16>, vector<4x384xf32> -> vector<4x384xf32>
    %55 = arith.addf %50, %54 : vector<4x384xf32>
    %c0_45 = arith.constant 0 : index
    %c0_46 = arith.constant 0 : index
    %c0_47 = arith.constant 0 : index
    %56 = vector.load %arg6[%c0_45, %c0_46, %c0_47] : memref<3x4x1xf32, #tpu.memory_space<vmem>>, vector<1x4x1xf32>
    %57 = vector.shape_cast %56 : vector<1x4x1xf32> to vector<4x1xf32>
    %58 = vector.broadcast %57 : vector<4x1xf32> to vector<4x384xf32>
    %59 = arith.addf %55, %58 : vector<4x384xf32>
    %cst_48 = arith.constant 0.000000e+00 : f32
    %60 = vector.broadcast %cst_48 : f32 to vector<4x384xf32>
    %61 = arith.maximumf %59, %60 : vector<4x384xf32>
    %cst_49 = arith.constant 0.000000e+00 : f32
    %62 = vector.shape_cast %5 : vector<1x384xi1> to vector<1x384xi1>
    %63 = vector.broadcast %62 : vector<1x384xi1> to vector<4x384xi1>
    %64 = vector.broadcast %cst_49 : f32 to vector<4x384xf32>
    %65 = arith.select %63, %61, %64 : vector<4x384xi1>, vector<4x384xf32>
    %66 = arith.truncf %65 : vector<4x384xf32> to vector<4x384xbf16>
    %c4_50 = arith.constant 4 : index
    %c128_51 = arith.constant 128 : index
    %67 = vector.load %arg12[%c4_50, %c128_51] : memref<16x640xbf16, #tpu.memory_space<vmem>>, vector<4x384xbf16>
    tpu.vector_store %arg12[%c4_50, %c128_51], %66 {strides = array<i32>} : memref<16x640xbf16, #tpu.memory_space<vmem>>, vector<4x384xbf16>,
    %cst_52 = arith.constant 0.000000e+00 : f32
    %68 = vector.broadcast %cst_52 : f32 to vector<4x384xf32>
    %c0_53 = arith.constant 0 : index
    %c0_54 = arith.constant 0 : index
    %c0_55 = arith.constant 0 : index
    %69 = vector.load %arg4[%c0_53, %c0_54, %c0_55] : memref<9x4x8xbf16, #tpu.memory_space<vmem>>, vector<1x4x8xbf16>
    %70 = vector.shape_cast %69 : vector<1x4x8xbf16> to vector<4x8xbf16>
    %c0_56 = arith.constant 0 : index
    %c109_57 = arith.constant 109 : index
    %71 = vector.load %arg12[%c0_56, %c109_57] : memref<16x640xbf16, #tpu.memory_space<vmem>>, vector<8x384xbf16>
    %cst_58 = arith.constant dense<0.000000e+00> : vector<4x384xf32>
    %72 = tpu.matmul %70, %71, %cst_58 {dimension_numbers = #tpu.dot_dimension_numbers<[1], [0], [0], [1], [0, 0, 1, 1], [], []>} : vector<4x8xbf16>, vector<8x384xbf16>, vector<4x384xf32> -> vector<4x384xf32>
    %73 = arith.addf %68, %72 : vector<4x384xf32>
    %c1_59 = arith.constant 1 : index
    %c0_60 = arith.constant 0 : index
    %c0_61 = arith.constant 0 : index
    %74 = vector.load %arg4[%c1_59, %c0_60, %c0_61] : memref<9x4x8xbf16, #tpu.memory_space<vmem>>, vector<1x4x8xbf16>
    %75 = vector.shape_cast %74 : vector<1x4x8xbf16> to vector<4x8xbf16>
    %c0_62 = arith.constant 0 : index
    %c110_63 = arith.constant 110 : index
    %76 = vector.load %arg12[%c0_62, %c110_63] : memref<16x640xbf16, #tpu.memory_space<vmem>>, vector<8x384xbf16>
    %cst_64 = arith.constant dense<0.000000e+00> : vector<4x384xf32>
    %77 = tpu.matmul %75, %76, %cst_64 {dimension_numbers = #tpu.dot_dimension_numbers<[1], [0], [0], [1], [0, 0, 1, 1], [], []>} : vector<4x8xbf16>, vector<8x384xbf16>, vector<4x384xf32> -> vector<4x384xf32>
    %78 = arith.addf %73, %77 : vector<4x384xf32>
    %c2_65 = arith.constant 2 : index
    %c0_66 = arith.constant 0 : index
    %c0_67 = arith.constant 0 : index
    %79 = vector.load %arg4[%c2_65, %c0_66, %c0_67] : memref<9x4x8xbf16, #tpu.memory_space<vmem>>, vector<1x4x8xbf16>
    %80 = vector.shape_cast %79 : vector<1x4x8xbf16> to vector<4x8xbf16>
    %c0_68 = arith.constant 0 : index
    %c111_69 = arith.constant 111 : index
    %81 = vector.load %arg12[%c0_68, %c111_69] : memref<16x640xbf16, #tpu.memory_space<vmem>>, vector<8x384xbf16>
    %cst_70 = arith.constant dense<0.000000e+00> : vector<4x384xf32>
    %82 = tpu.matmul %80, %81, %cst_70 {dimension_numbers = #tpu.dot_dimension_numbers<[1], [0], [0], [1], [0, 0, 1, 1], [], []>} : vector<4x8xbf16>, vector<8x384xbf16>, vector<4x384xf32> -> vector<4x384xf32>
    %83 = arith.addf %78, %82 : vector<4x384xf32>
    %c3_71 = arith.constant 3 : index
    %c0_72 = arith.constant 0 : index
    %c0_73 = arith.constant 0 : index
    %84 = vector.load %arg4[%c3_71, %c0_72, %c0_73] : memref<9x4x8xbf16, #tpu.memory_space<vmem>>, vector<1x4x8xbf16>
    %85 = vector.shape_cast %84 : vector<1x4x8xbf16> to vector<4x8xbf16>
    %c0_74 = arith.constant 0 : index
    %c127_75 = arith.constant 127 : index
    %86 = vector.load %arg12[%c0_74, %c127_75] : memref<16x640xbf16, #tpu.memory_space<vmem>>, vector<8x384xbf16>
    %cst_76 = arith.constant dense<0.000000e+00> : vector<4x384xf32>
    %87 = tpu.matmul %85, %86, %cst_76 {dimension_numbers = #tpu.dot_dimension_numbers<[1], [0], [0], [1], [0, 0, 1, 1], [], []>} : vector<4x8xbf16>, vector<8x384xbf16>, vector<4x384xf32> -> vector<4x384xf32>
    %88 = arith.addf %83, %87 : vector<4x384xf32>
    %c4_77 = arith.constant 4 : index
    %c0_78 = arith.constant 0 : index
    %c0_79 = arith.constant 0 : index
    %89 = vector.load %arg4[%c4_77, %c0_78, %c0_79] : memref<9x4x8xbf16, #tpu.memory_space<vmem>>, vector<1x4x8xbf16>
    %90 = vector.shape_cast %89 : vector<1x4x8xbf16> to vector<4x8xbf16>
    %c0_80 = arith.constant 0 : index
    %c128_81 = arith.constant 128 : index
    %91 = vector.load %arg12[%c0_80, %c128_81] : memref<16x640xbf16, #tpu.memory_space<vmem>>, vector<8x384xbf16>
    %cst_82 = arith.constant dense<0.000000e+00> : vector<4x384xf32>
    %92 = tpu.matmul %90, %91, %cst_82 {dimension_numbers = #tpu.dot_dimension_numbers<[1], [0], [0], [1], [0, 0, 1, 1], [], []>} : vector<4x8xbf16>, vector<8x384xbf16>, vector<4x384xf32> -> vector<4x384xf32>
    %93 = arith.addf %88, %92 : vector<4x384xf32>
    %c5_83 = arith.constant 5 : index
    %c0_84 = arith.constant 0 : index
    %c0_85 = arith.constant 0 : index
    %94 = vector.load %arg4[%c5_83, %c0_84, %c0_85] : memref<9x4x8xbf16, #tpu.memory_space<vmem>>, vector<1x4x8xbf16>
    %95 = vector.shape_cast %94 : vector<1x4x8xbf16> to vector<4x8xbf16>
    %c0_86 = arith.constant 0 : index
    %c129_87 = arith.constant 129 : index
    %96 = vector.load %arg12[%c0_86, %c129_87] : memref<16x640xbf16, #tpu.memory_space<vmem>>, vector<8x384xbf16>
    %cst_88 = arith.constant dense<0.000000e+00> : vector<4x384xf32>
    %97 = tpu.matmul %95, %96, %cst_88 {dimension_numbers = #tpu.dot_dimension_numbers<[1], [0], [0], [1], [0, 0, 1, 1], [], []>} : vector<4x8xbf16>, vector<8x384xbf16>, vector<4x384xf32> -> vector<4x384xf32>
    %98 = arith.addf %93, %97 : vector<4x384xf32>
    %c6_89 = arith.constant 6 : index
    %c0_90 = arith.constant 0 : index
    %c0_91 = arith.constant 0 : index
    %99 = vector.load %arg4[%c6_89, %c0_90, %c0_91] : memref<9x4x8xbf16, #tpu.memory_space<vmem>>, vector<1x4x8xbf16>
    %100 = vector.shape_cast %99 : vector<1x4x8xbf16> to vector<4x8xbf16>
    %c0_92 = arith.constant 0 : index
    %c145_93 = arith.constant 145 : index
    %101 = vector.load %arg12[%c0_92, %c145_93] : memref<16x640xbf16, #tpu.memory_space<vmem>>, vector<8x384xbf16>
    %cst_94 = arith.constant dense<0.000000e+00> : vector<4x384xf32>
    %102 = tpu.matmul %100, %101, %cst_94 {dimension_numbers = #tpu.dot_dimension_numbers<[1], [0], [0], [1], [0, 0, 1, 1], [], []>} : vector<4x8xbf16>, vector<8x384xbf16>, vector<4x384xf32> -> vector<4x384xf32>
    %103 = arith.addf %98, %102 : vector<4x384xf32>
    %c7_95 = arith.constant 7 : index
    %c0_96 = arith.constant 0 : index
    %c0_97 = arith.constant 0 : index
    %104 = vector.load %arg4[%c7_95, %c0_96, %c0_97] : memref<9x4x8xbf16, #tpu.memory_space<vmem>>, vector<1x4x8xbf16>
    %105 = vector.shape_cast %104 : vector<1x4x8xbf16> to vector<4x8xbf16>
    %c0_98 = arith.constant 0 : index
    %c146_99 = arith.constant 146 : index
    %106 = vector.load %arg12[%c0_98, %c146_99] : memref<16x640xbf16, #tpu.memory_space<vmem>>, vector<8x384xbf16>
    %cst_100 = arith.constant dense<0.000000e+00> : vector<4x384xf32>
    %107 = tpu.matmul %105, %106, %cst_100 {dimension_numbers = #tpu.dot_dimension_numbers<[1], [0], [0], [1], [0, 0, 1, 1], [], []>} : vector<4x8xbf16>, vector<8x384xbf16>, vector<4x384xf32> -> vector<4x384xf32>
    %108 = arith.addf %103, %107 : vector<4x384xf32>
    %c8_101 = arith.constant 8 : index
    %c0_102 = arith.constant 0 : index
    %c0_103 = arith.constant 0 : index
    %109 = vector.load %arg4[%c8_101, %c0_102, %c0_103] : memref<9x4x8xbf16, #tpu.memory_space<vmem>>, vector<1x4x8xbf16>
    %110 = vector.shape_cast %109 : vector<1x4x8xbf16> to vector<4x8xbf16>
    %c0_104 = arith.constant 0 : index
    %c147_105 = arith.constant 147 : index
    %111 = vector.load %arg12[%c0_104, %c147_105] : memref<16x640xbf16, #tpu.memory_space<vmem>>, vector<8x384xbf16>
    %cst_106 = arith.constant dense<0.000000e+00> : vector<4x384xf32>
    %112 = tpu.matmul %110, %111, %cst_106 {dimension_numbers = #tpu.dot_dimension_numbers<[1], [0], [0], [1], [0, 0, 1, 1], [], []>} : vector<4x8xbf16>, vector<8x384xbf16>, vector<4x384xf32> -> vector<4x384xf32>
    %113 = arith.addf %108, %112 : vector<4x384xf32>
    %c1_107 = arith.constant 1 : index
    %c0_108 = arith.constant 0 : index
    %c0_109 = arith.constant 0 : index
    %114 = vector.load %arg6[%c1_107, %c0_108, %c0_109] : memref<3x4x1xf32, #tpu.memory_space<vmem>>, vector<1x4x1xf32>
    %115 = vector.shape_cast %114 : vector<1x4x1xf32> to vector<4x1xf32>
    %116 = vector.broadcast %115 : vector<4x1xf32> to vector<4x384xf32>
    %117 = arith.addf %113, %116 : vector<4x384xf32>
    %cst_110 = arith.constant 0.000000e+00 : f32
    %118 = vector.broadcast %cst_110 : f32 to vector<4x384xf32>
    %119 = arith.maximumf %117, %118 : vector<4x384xf32>
    %cst_111 = arith.constant 0.000000e+00 : f32
    %120 = vector.shape_cast %5 : vector<1x384xi1> to vector<1x384xi1>
    %121 = vector.broadcast %120 : vector<1x384xi1> to vector<4x384xi1>
    %122 = vector.broadcast %cst_111 : f32 to vector<4x384xf32>
    %123 = arith.select %121, %119, %122 : vector<4x384xi1>, vector<4x384xf32>
    %124 = arith.truncf %123 : vector<4x384xf32> to vector<4x384xbf16>
    %c8_112 = arith.constant 8 : index
    %c128_113 = arith.constant 128 : index
    %125 = vector.load %arg12[%c8_112, %c128_113] : memref<16x640xbf16, #tpu.memory_space<vmem>>, vector<4x384xbf16>
    tpu.vector_store %arg12[%c8_112, %c128_113], %124 {strides = array<i32>} : memref<16x640xbf16, #tpu.memory_space<vmem>>, vector<4x384xbf16>,
    %cst_114 = arith.constant 0.000000e+00 : f32
    %126 = vector.broadcast %cst_114 : f32 to vector<4x384xf32>
    %c0_115 = arith.constant 0 : index
    %c0_116 = arith.constant 0 : index
    %c0_117 = arith.constant 0 : index
    %127 = vector.load %arg5[%c0_115, %c0_116, %c0_117] : memref<9x4x12xbf16, #tpu.memory_space<vmem>>, vector<1x4x12xbf16>
    %128 = vector.shape_cast %127 : vector<1x4x12xbf16> to vector<4x12xbf16>
    %c0_118 = arith.constant 0 : index
    %c109_119 = arith.constant 109 : index
    %129 = vector.load %arg12[%c0_118, %c109_119] : memref<16x640xbf16, #tpu.memory_space<vmem>>, vector<12x384xbf16>
    %cst_120 = arith.constant dense<0.000000e+00> : vector<4x384xf32>
    %130 = tpu.matmul %128, %129, %cst_120 {dimension_numbers = #tpu.dot_dimension_numbers<[1], [0], [0], [1], [0, 0, 1, 1], [], []>} : vector<4x12xbf16>, vector<12x384xbf16>, vector<4x384xf32> -> vector<4x384xf32>
    %131 = arith.addf %126, %130 : vector<4x384xf32>
    %c1_121 = arith.constant 1 : index
    %c0_122 = arith.constant 0 : index
    %c0_123 = arith.constant 0 : index
    %132 = vector.load %arg5[%c1_121, %c0_122, %c0_123] : memref<9x4x12xbf16, #tpu.memory_space<vmem>>, vector<1x4x12xbf16>
    %133 = vector.shape_cast %132 : vector<1x4x12xbf16> to vector<4x12xbf16>
    %c0_124 = arith.constant 0 : index
    %c110_125 = arith.constant 110 : index
    %134 = vector.load %arg12[%c0_124, %c110_125] : memref<16x640xbf16, #tpu.memory_space<vmem>>, vector<12x384xbf16>
    %cst_126 = arith.constant dense<0.000000e+00> : vector<4x384xf32>
    %135 = tpu.matmul %133, %134, %cst_126 {dimension_numbers = #tpu.dot_dimension_numbers<[1], [0], [0], [1], [0, 0, 1, 1], [], []>} : vector<4x12xbf16>, vector<12x384xbf16>, vector<4x384xf32> -> vector<4x384xf32>
    %136 = arith.addf %131, %135 : vector<4x384xf32>
    %c2_127 = arith.constant 2 : index
    %c0_128 = arith.constant 0 : index
    %c0_129 = arith.constant 0 : index
    %137 = vector.load %arg5[%c2_127, %c0_128, %c0_129] : memref<9x4x12xbf16, #tpu.memory_space<vmem>>, vector<1x4x12xbf16>
    %138 = vector.shape_cast %137 : vector<1x4x12xbf16> to vector<4x12xbf16>
    %c0_130 = arith.constant 0 : index
    %c111_131 = arith.constant 111 : index
    %139 = vector.load %arg12[%c0_130, %c111_131] : memref<16x640xbf16, #tpu.memory_space<vmem>>, vector<12x384xbf16>
    %cst_132 = arith.constant dense<0.000000e+00> : vector<4x384xf32>
    %140 = tpu.matmul %138, %139, %cst_132 {dimension_numbers = #tpu.dot_dimension_numbers<[1], [0], [0], [1], [0, 0, 1, 1], [], []>} : vector<4x12xbf16>, vector<12x384xbf16>, vector<4x384xf32> -> vector<4x384xf32>
    %141 = arith.addf %136, %140 : vector<4x384xf32>
    %c3_133 = arith.constant 3 : index
    %c0_134 = arith.constant 0 : index
    %c0_135 = arith.constant 0 : index
    %142 = vector.load %arg5[%c3_133, %c0_134, %c0_135] : memref<9x4x12xbf16, #tpu.memory_space<vmem>>, vector<1x4x12xbf16>
    %143 = vector.shape_cast %142 : vector<1x4x12xbf16> to vector<4x12xbf16>
    %c0_136 = arith.constant 0 : index
    %c127_137 = arith.constant 127 : index
    %144 = vector.load %arg12[%c0_136, %c127_137] : memref<16x640xbf16, #tpu.memory_space<vmem>>, vector<12x384xbf16>
    %cst_138 = arith.constant dense<0.000000e+00> : vector<4x384xf32>
    %145 = tpu.matmul %143, %144, %cst_138 {dimension_numbers = #tpu.dot_dimension_numbers<[1], [0], [0], [1], [0, 0, 1, 1], [], []>} : vector<4x12xbf16>, vector<12x384xbf16>, vector<4x384xf32> -> vector<4x384xf32>
    %146 = arith.addf %141, %145 : vector<4x384xf32>
    %c4_139 = arith.constant 4 : index
    %c0_140 = arith.constant 0 : index
    %c0_141 = arith.constant 0 : index
    %147 = vector.load %arg5[%c4_139, %c0_140, %c0_141] : memref<9x4x12xbf16, #tpu.memory_space<vmem>>, vector<1x4x12xbf16>
    %148 = vector.shape_cast %147 : vector<1x4x12xbf16> to vector<4x12xbf16>
    %c0_142 = arith.constant 0 : index
    %c128_143 = arith.constant 128 : index
    %149 = vector.load %arg12[%c0_142, %c128_143] : memref<16x640xbf16, #tpu.memory_space<vmem>>, vector<12x384xbf16>
    %cst_144 = arith.constant dense<0.000000e+00> : vector<4x384xf32>
    %150 = tpu.matmul %148, %149, %cst_144 {dimension_numbers = #tpu.dot_dimension_numbers<[1], [0], [0], [1], [0, 0, 1, 1], [], []>} : vector<4x12xbf16>, vector<12x384xbf16>, vector<4x384xf32> -> vector<4x384xf32>
    %151 = arith.addf %146, %150 : vector<4x384xf32>
    %c5_145 = arith.constant 5 : index
    %c0_146 = arith.constant 0 : index
    %c0_147 = arith.constant 0 : index
    %152 = vector.load %arg5[%c5_145, %c0_146, %c0_147] : memref<9x4x12xbf16, #tpu.memory_space<vmem>>, vector<1x4x12xbf16>
    %153 = vector.shape_cast %152 : vector<1x4x12xbf16> to vector<4x12xbf16>
    %c0_148 = arith.constant 0 : index
    %c129_149 = arith.constant 129 : index
    %154 = vector.load %arg12[%c0_148, %c129_149] : memref<16x640xbf16, #tpu.memory_space<vmem>>, vector<12x384xbf16>
    %cst_150 = arith.constant dense<0.000000e+00> : vector<4x384xf32>
    %155 = tpu.matmul %153, %154, %cst_150 {dimension_numbers = #tpu.dot_dimension_numbers<[1], [0], [0], [1], [0, 0, 1, 1], [], []>} : vector<4x12xbf16>, vector<12x384xbf16>, vector<4x384xf32> -> vector<4x384xf32>
    %156 = arith.addf %151, %155 : vector<4x384xf32>
    %c6_151 = arith.constant 6 : index
    %c0_152 = arith.constant 0 : index
    %c0_153 = arith.constant 0 : index
    %157 = vector.load %arg5[%c6_151, %c0_152, %c0_153] : memref<9x4x12xbf16, #tpu.memory_space<vmem>>, vector<1x4x12xbf16>
    %158 = vector.shape_cast %157 : vector<1x4x12xbf16> to vector<4x12xbf16>
    %c0_154 = arith.constant 0 : index
    %c145_155 = arith.constant 145 : index
    %159 = vector.load %arg12[%c0_154, %c145_155] : memref<16x640xbf16, #tpu.memory_space<vmem>>, vector<12x384xbf16>
    %cst_156 = arith.constant dense<0.000000e+00> : vector<4x384xf32>
    %160 = tpu.matmul %158, %159, %cst_156 {dimension_numbers = #tpu.dot_dimension_numbers<[1], [0], [0], [1], [0, 0, 1, 1], [], []>} : vector<4x12xbf16>, vector<12x384xbf16>, vector<4x384xf32> -> vector<4x384xf32>
    %161 = arith.addf %156, %160 : vector<4x384xf32>
    %c7_157 = arith.constant 7 : index
    %c0_158 = arith.constant 0 : index
    %c0_159 = arith.constant 0 : index
    %162 = vector.load %arg5[%c7_157, %c0_158, %c0_159] : memref<9x4x12xbf16, #tpu.memory_space<vmem>>, vector<1x4x12xbf16>
    %163 = vector.shape_cast %162 : vector<1x4x12xbf16> to vector<4x12xbf16>
    %c0_160 = arith.constant 0 : index
    %c146_161 = arith.constant 146 : index
    %164 = vector.load %arg12[%c0_160, %c146_161] : memref<16x640xbf16, #tpu.memory_space<vmem>>, vector<12x384xbf16>
    %cst_162 = arith.constant dense<0.000000e+00> : vector<4x384xf32>
    %165 = tpu.matmul %163, %164, %cst_162 {dimension_numbers = #tpu.dot_dimension_numbers<[1], [0], [0], [1], [0, 0, 1, 1], [], []>} : vector<4x12xbf16>, vector<12x384xbf16>, vector<4x384xf32> -> vector<4x384xf32>
    %166 = arith.addf %161, %165 : vector<4x384xf32>
    %c8_163 = arith.constant 8 : index
    %c0_164 = arith.constant 0 : index
    %c0_165 = arith.constant 0 : index
    %167 = vector.load %arg5[%c8_163, %c0_164, %c0_165] : memref<9x4x12xbf16, #tpu.memory_space<vmem>>, vector<1x4x12xbf16>
    %168 = vector.shape_cast %167 : vector<1x4x12xbf16> to vector<4x12xbf16>
    %c0_166 = arith.constant 0 : index
    %c147_167 = arith.constant 147 : index
    %169 = vector.load %arg12[%c0_166, %c147_167] : memref<16x640xbf16, #tpu.memory_space<vmem>>, vector<12x384xbf16>
    %cst_168 = arith.constant dense<0.000000e+00> : vector<4x384xf32>
    %170 = tpu.matmul %168, %169, %cst_168 {dimension_numbers = #tpu.dot_dimension_numbers<[1], [0], [0], [1], [0, 0, 1, 1], [], []>} : vector<4x12xbf16>, vector<12x384xbf16>, vector<4x384xf32> -> vector<4x384xf32>
    %171 = arith.addf %166, %170 : vector<4x384xf32>
    %c2_169 = arith.constant 2 : index
    %c0_170 = arith.constant 0 : index
    %c0_171 = arith.constant 0 : index
    %172 = vector.load %arg6[%c2_169, %c0_170, %c0_171] : memref<3x4x1xf32, #tpu.memory_space<vmem>>, vector<1x4x1xf32>
    %173 = vector.shape_cast %172 : vector<1x4x1xf32> to vector<4x1xf32>
    %174 = vector.broadcast %173 : vector<4x1xf32> to vector<4x384xf32>
    %175 = arith.addf %171, %174 : vector<4x384xf32>
    %cst_172 = arith.constant 0.000000e+00 : f32
    %176 = vector.broadcast %cst_172 : f32 to vector<4x384xf32>
    %177 = arith.maximumf %175, %176 : vector<4x384xf32>
    %cst_173 = arith.constant 0.000000e+00 : f32
    %178 = vector.shape_cast %5 : vector<1x384xi1> to vector<1x384xi1>
    %179 = vector.broadcast %178 : vector<1x384xi1> to vector<4x384xi1>
    %180 = vector.broadcast %cst_173 : f32 to vector<4x384xf32>
    %181 = arith.select %179, %177, %180 : vector<4x384xi1>, vector<4x384xf32>
    %182 = arith.truncf %181 : vector<4x384xf32> to vector<4x384xbf16>
    %c12 = arith.constant 12 : index
    %c128_174 = arith.constant 128 : index
    %183 = vector.load %arg12[%c12, %c128_174] : memref<16x640xbf16, #tpu.memory_space<vmem>>, vector<4x384xbf16>
    tpu.vector_store %arg12[%c12, %c128_174], %182 {strides = array<i32>} : memref<16x640xbf16, #tpu.memory_space<vmem>>, vector<4x384xbf16>,
    %c0_175 = arith.constant 0 : index
    %c128_176 = arith.constant 128 : index
    %184 = vector.load %arg12[%c0_175, %c128_176] : memref<16x640xbf16, #tpu.memory_space<vmem>>, vector<16x384xbf16>
    %c0_177 = arith.constant 0 : index
    %c0_178 = arith.constant 0 : index
    %185 = vector.load %arg7[%c0_177, %c0_178] : memref<8x16xbf16, #tpu.memory_space<vmem>>, vector<8x16xbf16>
    %cst_179 = arith.constant dense<0.000000e+00> : vector<8x384xf32>
    %186 = tpu.matmul %185, %184, %cst_179 {dimension_numbers = #tpu.dot_dimension_numbers<[1], [0], [0], [1], [0, 0, 1, 1], [], []>} : vector<8x16xbf16>, vector<16x384xbf16>, vector<8x384xf32> -> vector<8x384xf32>
    %c0_180 = arith.constant 0 : index
    %c0_181 = arith.constant 0 : index
    %187 = vector.load %arg8[%c0_180, %c0_181] : memref<8x1xf32, #tpu.memory_space<vmem>>, vector<8x1xf32>
    %188 = vector.broadcast %187 : vector<8x1xf32> to vector<8x384xf32>
    %189 = arith.addf %186, %188 : vector<8x384xf32>
    %cst_182 = arith.constant 0.000000e+00 : f32
    %190 = vector.broadcast %cst_182 : f32 to vector<8x384xf32>
    %191 = arith.maximumf %189, %190 : vector<8x384xf32>
    %c0_183 = arith.constant 0 : index
    %c0_184 = arith.constant 0 : index
    %192 = vector.load %arg9[%c0_183, %c0_184] : memref<8x4xbf16, #tpu.memory_space<vmem>>, vector<8x4xbf16>
    %c0_185 = arith.constant 0 : index
    %c128_186 = arith.constant 128 : index
    %193 = vector.load %arg12[%c0_185, %c128_186] : memref<16x640xbf16, #tpu.memory_space<vmem>>, vector<4x384xbf16>
    %cst_187 = arith.constant dense<0.000000e+00> : vector<8x384xf32>
    %194 = tpu.matmul %192, %193, %cst_187 {dimension_numbers = #tpu.dot_dimension_numbers<[1], [0], [0], [1], [0, 0, 1, 1], [], []>} : vector<8x4xbf16>, vector<4x384xbf16>, vector<8x384xf32> -> vector<8x384xf32>
    %c0_188 = arith.constant 0 : index
    %c0_189 = arith.constant 0 : index
    %195 = vector.load %arg10[%c0_188, %c0_189] : memref<8x1xf32, #tpu.memory_space<vmem>>, vector<8x1xf32>
    %196 = vector.broadcast %195 : vector<8x1xf32> to vector<8x384xf32>
    %197 = arith.addf %194, %196 : vector<8x384xf32>
    %198 = arith.addf %191, %197 : vector<8x384xf32>
    %c0_190 = arith.constant 0 : index
    %c0_191 = arith.constant 0 : index
    %c0_192 = arith.constant 0 : index
    %199 = vector.load %arg11[%c0_190, %c0_191, %c0_192] : memref<1x8x384xf32, #tpu.memory_space<vmem>>, vector<1x8x384xf32>
    %200 = vector.shape_cast %199 : vector<1x8x384xf32> to vector<8x384xf32>
    %201 = vector.shape_cast %198 : vector<8x384xf32> to vector<1x8x384xf32>
    tpu.vector_store %arg11[%c0_190, %c0_191, %c0_192], %201 {strides = array<i32>} : memref<1x8x384xf32, #tpu.memory_space<vmem>>, vector<1x8x384xf32>,
    return
  }
  func.func @transform_0(%arg0: i32) -> (i32, i32, i32) {
    %c0_i32 = arith.constant 0 : i32
    %c0_i32_0 = arith.constant 0 : i32
    %c0_i32_1 = arith.constant 0 : i32
    return %arg0, %c0_i32, %c0_i32_0 : i32, i32, i32
  }
  func.func @transform_1(%arg0: i32) -> (i32, i32) {
    %c0_i32 = arith.constant 0 : i32
    %c0_i32_0 = arith.constant 0 : i32
    %c0_i32_1 = arith.constant 0 : i32
    return %c0_i32, %c0_i32_0 : i32, i32
  }
  func.func @transform_2(%arg0: i32) -> (i32, i32, i32) {
    %c0_i32 = arith.constant 0 : i32
    %c0_i32_0 = arith.constant 0 : i32
    %c0_i32_1 = arith.constant 0 : i32
    %c0_i32_2 = arith.constant 0 : i32
    return %c0_i32, %c0_i32_0, %c0_i32_1 : i32, i32, i32
  }
  func.func @transform_3(%arg0: i32) -> (i32, i32, i32) {
    %c0_i32 = arith.constant 0 : i32
    %c0_i32_0 = arith.constant 0 : i32
    %c0_i32_1 = arith.constant 0 : i32
    %c0_i32_2 = arith.constant 0 : i32
    return %c0_i32, %c0_i32_0, %c0_i32_1 : i32, i32, i32
  }
  func.func @transform_4(%arg0: i32) -> (i32, i32, i32) {
    %c0_i32 = arith.constant 0 : i32
    %c0_i32_0 = arith.constant 0 : i32
    %c0_i32_1 = arith.constant 0 : i32
    %c0_i32_2 = arith.constant 0 : i32
    return %c0_i32, %c0_i32_0, %c0_i32_1 : i32, i32, i32
  }
  func.func @transform_5(%arg0: i32) -> (i32, i32, i32) {
    %c0_i32 = arith.constant 0 : i32
    %c0_i32_0 = arith.constant 0 : i32
    %c0_i32_1 = arith.constant 0 : i32
    %c0_i32_2 = arith.constant 0 : i32
    return %c0_i32, %c0_i32_0, %c0_i32_1 : i32, i32, i32
  }
  func.func @transform_6(%arg0: i32) -> (i32, i32) {
    %c0_i32 = arith.constant 0 : i32
    %c0_i32_0 = arith.constant 0 : i32
    %c0_i32_1 = arith.constant 0 : i32
    return %c0_i32, %c0_i32_0 : i32, i32
  }
  func.func @transform_7(%arg0: i32) -> (i32, i32) {
    %c0_i32 = arith.constant 0 : i32
    %c0_i32_0 = arith.constant 0 : i32
    %c0_i32_1 = arith.constant 0 : i32
    return %c0_i32, %c0_i32_0 : i32, i32
  }
  func.func @transform_8(%arg0: i32) -> (i32, i32) {
    %c0_i32 = arith.constant 0 : i32
    %c0_i32_0 = arith.constant 0 : i32
    %c0_i32_1 = arith.constant 0 : i32
    return %c0_i32, %c0_i32_0 : i32, i32
  }
  func.func @transform_9(%arg0: i32) -> (i32, i32) {
    %c0_i32 = arith.constant 0 : i32
    %c0_i32_0 = arith.constant 0 : i32
    %c0_i32_1 = arith.constant 0 : i32
    return %c0_i32, %c0_i32_0 : i32, i32
  }
  func.func @transform_10(%arg0: i32) -> (i32, i32, i32) {
    %c0_i32 = arith.constant 0 : i32
    %c0_i32_0 = arith.constant 0 : i32
    %c0_i32_1 = arith.constant 0 : i32
    return %arg0, %c0_i32, %c0_i32_0 : i32, i32, i32
  }
}

</mosaic_0001>

<llo_original>
// kernel: _lambda_.1
$region0: #{_lambda_.1}
  #allocation0 [shape = 'u32[]', space=smem, size = 0x4, offset = 0x4, fixed_abs, tag = 'smem constant byte address 0x4 - core index']
  #allocation1 [shape = 'u32[144,128]{1,0:T(1,128)}', space=vmem, size = 0x12000, scoped, tag = 'internal scratch']
  #allocation2 [shape = 'bf16[16,640]{1,0:T(16,128)(2,1)}', space=vmem, size = 0x5000, scoped, tag = 'scratch operand']
  %s0 = inlined_call_operand.vmem [shape: f32[2,4,640], index: 0, kind: input, shape index: {}]
  %s1 = inlined_call_operand.vmem [shape: f32[1,384], index: 1, kind: input, shape index: {}]
  %s2 = inlined_call_operand.vmem [shape: bf16[9,4,4], index: 2, kind: input, shape index: {}]
  %s3 = inlined_call_operand.vmem [shape: bf16[9,4,8], index: 3, kind: input, shape index: {}]
  %s4 = inlined_call_operand.vmem [shape: bf16[9,4,12], index: 4, kind: input, shape index: {}]
  %s5 = inlined_call_operand.vmem [shape: f32[3,4,1], index: 5, kind: input, shape index: {}]
  %s6 = inlined_call_operand.vmem [shape: bf16[8,16], index: 6, kind: input, shape index: {}]
  %s7 = inlined_call_operand.vmem [shape: f32[8,1], index: 7, kind: input, shape index: {}]
  %s8 = inlined_call_operand.vmem [shape: bf16[8,4], index: 8, kind: input, shape index: {}]
  %s9 = inlined_call_operand.vmem [shape: f32[8,1], index: 9, kind: input, shape index: {}]
  %s10 = inlined_call_operand.vmem [shape: f32[2,8,384], index: 10, kind: output, shape index: {}]
  %s11 = sld [smem:[#allocation0]]
  $region77: #{_lambda_.1} parent=0
    _
  %s13 = ssub.s32 1, %s11
  %s14 = scalar_select 0, %s13, %s11
  loop: start=0, step=1, limit=4
  $region2: #{_lambda_.1} parent=0 // loop_pre_header
    _
  $region3: #{_lambda_.1} parent=0 // loop_header
    %s16 = sphi 0, %s20
    %p17 = scmp.ge.s32.totalorder %s16, 4
    %s26 = sphi 0, %s28
    %s29 = sphi 0, %s26
    %s30 = sphi 0, %s29
    %s46 = sphi 0, %s30
    %s50 = sphi 0, %s50
    %s52 = sphi 0, %s50
    %s53 = sphi 0, %s52
    %s67 = sphi 0, %s53
    %s71 = sphi 0, %s71
    %s73 = sphi 0, %s71
    %s74 = sphi 0, %s73
    %s88 = sphi 0, %s74
    %s92 = sphi 0, %s92
    %s94 = sphi 0, %s92
    %s95 = sphi 0, %s94
    %s109 = sphi 0, %s95
    %s113 = sphi 0, %s113
    %s115 = sphi 0, %s113
    %s116 = sphi 0, %s115
    %s130 = sphi 0, %s116
    %s134 = sphi 0, %s134
    %s136 = sphi 0, %s134
    %s137 = sphi 0, %s136
    %s151 = sphi 0, %s137
    %s155 = sphi 0, %s155
    %s157 = sphi 0, %s155
    %s158 = sphi 0, %s157
    %s172 = sphi 0, %s158
    %s176 = sphi 0, %s176
    %s178 = sphi 0, %s176
    %s179 = sphi 0, %s178
    %s193 = sphi 0, %s179
    %s197 = sphi 0, %s197
    %s199 = sphi 0, %s197
    %s200 = sphi 0, %s199
    %s214 = sphi 0, %s200
    %s218 = sphi 0, %s218
    %s220 = sphi 0, %s218
    %s221 = sphi 0, %s220
    %s235 = sphi 0, %s221
    %s241 = sphi 0, %s243
    %s244 = sphi 0, %s241
    %s245 = sphi 0, %s244
    %s261 = sphi 0, %s245
  $region4: #{_lambda_.1} parent=0 // loop_header_branch
    %19 = sbr.rel (%p17) target = $region8
  $region5: #{_lambda_.1} parent=0 // loop_body
    %s21 = ssub.s32 %s16, 1
    %s22 = ssub.s32 %s16, 2
    %s23 = sadd.s32 %s16, 1
    %s24 = ssub.s32 %s16, %s23
    %p25 = scmp.eq.s32.totalorder %s24, 0
    %s27 = sadd.s32 %s26, 1
    %s28 = scalar_select %p25, %s26, %s27
    %p31 = pneg %p25
    %p32 = scmp.eq.s32.totalorder %s16, 1
    %p33 = por %p31, %p32
    %p34 = scmp.ne.s32.totalorder %s26, %s29
    %p35 = scmp.eq.s32.totalorder %s16, 0
    %p36 = por %p34, %p35
    %p37 = scmp.ne.s32.totalorder %s26, %s29
    %p38 = scmp.eq.s32.totalorder %s21, 1
    %p39 = por %p37, %p38
    %p40 = scmp.ne.s32.totalorder %s29, %s30
    %p41 = scmp.eq.s32.totalorder %s21, 0
    %p42 = por %p40, %p41
    %p43 = scmp.ne.s32.totalorder %s29, %s30
    %p44 = scmp.eq.s32.totalorder %s22, 1
    %p45 = por %p43, %p44
    %p47 = scmp.ne.s32.totalorder %s30, %s46
    %p48 = scmp.eq.s32.totalorder %s22, 0
    %p49 = por %p47, %p48
    %s51 = sadd.s32 %s50, 1
    %p54 = scmp.eq.s32.totalorder %s16, 1
    %p55 = scmp.ne.s32.totalorder %s50, %s52
    %p56 = scmp.eq.s32.totalorder %s16, 0
    %p57 = por %p55, %p56
    %p58 = scmp.ne.s32.totalorder %s50, %s52
    %p59 = scmp.eq.s32.totalorder %s21, 1
    %p60 = por %p58, %p59
    %p61 = scmp.ne.s32.totalorder %s52, %s53
    %p62 = scmp.eq.s32.totalorder %s21, 0
    %p63 = por %p61, %p62
    %p64 = scmp.ne.s32.totalorder %s52, %s53
    %p65 = scmp.eq.s32.totalorder %s22, 1
    %p66 = por %p64, %p65
    %p68 = scmp.ne.s32.totalorder %s53, %s67
    %p69 = scmp.eq.s32.totalorder %s22, 0
    %p70 = por %p68, %p69
    %s72 = sadd.s32 %s71, 1
    %p75 = scmp.eq.s32.totalorder %s16, 1
    %p76 = scmp.ne.s32.totalorder %s71, %s73
    %p77 = scmp.eq.s32.totalorder %s16, 0
    %p78 = por %p76, %p77
    %p79 = scmp.ne.s32.totalorder %s71, %s73
    %p80 = scmp.eq.s32.totalorder %s21, 1
    %p81 = por %p79, %p80
    %p82 = scmp.ne.s32.totalorder %s73, %s74
    %p83 = scmp.eq.s32.totalorder %s21, 0
    %p84 = por %p82, %p83
    %p85 = scmp.ne.s32.totalorder %s73, %s74
    %p86 = scmp.eq.s32.totalorder %s22, 1
    %p87 = por %p85, %p86
    %p89 = scmp.ne.s32.totalorder %s74, %s88
    %p90 = scmp.eq.s32.totalorder %s22, 0
    %p91 = por %p89, %p90
    %s93 = sadd.s32 %s92, 1
    %p96 = scmp.eq.s32.totalorder %s16, 1
    %p97 = scmp.ne.s32.totalorder %s92, %s94
    %p98 = scmp.eq.s32.totalorder %s16, 0
    %p99 = por %p97, %p98
    %p100 = scmp.ne.s32.totalorder %s92, %s94
    %p101 = scmp.eq.s32.totalorder %s21, 1
    %p102 = por %p100, %p101
    %p103 = scmp.ne.s32.totalorder %s94, %s95
    %p104 = scmp.eq.s32.totalorder %s21, 0
    %p105 = por %p103, %p104
    %p106 = scmp.ne.s32.totalorder %s94, %s95
    %p107 = scmp.eq.s32.totalorder %s22, 1
    %p108 = por %p106, %p107
    %p110 = scmp.ne.s32.totalorder %s95, %s109
    %p111 = scmp.eq.s32.totalorder %s22, 0
    %p112 = por %p110, %p111
    %s114 = sadd.s32 %s113, 1
    %p117 = scmp.eq.s32.totalorder %s16, 1
    %p118 = scmp.ne.s32.totalorder %s113, %s115
    %p119 = scmp.eq.s32.totalorder %s16, 0
    %p120 = por %p118, %p119
    %p121 = scmp.ne.s32.totalorder %s113, %s115
    %p122 = scmp.eq.s32.totalorder %s21, 1
    %p123 = por %p121, %p122
    %p124 = scmp.ne.s32.totalorder %s115, %s116
    %p125 = scmp.eq.s32.totalorder %s21, 0
    %p126 = por %p124, %p125
    %p127 = scmp.ne.s32.totalorder %s115, %s116
    %p128 = scmp.eq.s32.totalorder %s22, 1
    %p129 = por %p127, %p128
    %p131 = scmp.ne.s32.totalorder %s116, %s130
    %p132 = scmp.eq.s32.totalorder %s22, 0
    %p133 = por %p131, %p132
    %s135 = sadd.s32 %s134, 1
    %p138 = scmp.eq.s32.totalorder %s16, 1
    %p139 = scmp.ne.s32.totalorder %s134, %s136
    %p140 = scmp.eq.s32.totalorder %s16, 0
    %p141 = por %p139, %p140
    %p142 = scmp.ne.s32.totalorder %s134, %s136
    %p143 = scmp.eq.s32.totalorder %s21, 1
    %p144 = por %p142, %p143
    %p145 = scmp.ne.s32.totalorder %s136, %s137
    %p146 = scmp.eq.s32.totalorder %s21, 0
    %p147 = por %p145, %p146
    %p148 = scmp.ne.s32.totalorder %s136, %s137
    %p149 = scmp.eq.s32.totalorder %s22, 1
    %p150 = por %p148, %p149
    %p152 = scmp.ne.s32.totalorder %s137, %s151
    %p153 = scmp.eq.s32.totalorder %s22, 0
    %p154 = por %p152, %p153
    %s156 = sadd.s32 %s155, 1
    %p159 = scmp.eq.s32.totalorder %s16, 1
    %p160 = scmp.ne.s32.totalorder %s155, %s157
    %p161 = scmp.eq.s32.totalorder %s16, 0
    %p162 = por %p160, %p161
    %p163 = scmp.ne.s32.totalorder %s155, %s157
    %p164 = scmp.eq.s32.totalorder %s21, 1
    %p165 = por %p163, %p164
    %p166 = scmp.ne.s32.totalorder %s157, %s158
    %p167 = scmp.eq.s32.totalorder %s21, 0
    %p168 = por %p166, %p167
    %p169 = scmp.ne.s32.totalorder %s157, %s158
    %p170 = scmp.eq.s32.totalorder %s22, 1
    %p171 = por %p169, %p170
    %p173 = scmp.ne.s32.totalorder %s158, %s172
    %p174 = scmp.eq.s32.totalorder %s22, 0
    %p175 = por %p173, %p174
    %s177 = sadd.s32 %s176, 1
    %p180 = scmp.eq.s32.totalorder %s16, 1
    %p181 = scmp.ne.s32.totalorder %s176, %s178
    %p182 = scmp.eq.s32.totalorder %s16, 0
    %p183 = por %p181, %p182
    %p184 = scmp.ne.s32.totalorder %s176, %s178
    %p185 = scmp.eq.s32.totalorder %s21, 1
    %p186 = por %p184, %p185
    %p187 = scmp.ne.s32.totalorder %s178, %s179
    %p188 = scmp.eq.s32.totalorder %s21, 0
    %p189 = por %p187, %p188
    %p190 = scmp.ne.s32.totalorder %s178, %s179
    %p191 = scmp.eq.s32.totalorder %s22, 1
    %p192 = por %p190, %p191
    %p194 = scmp.ne.s32.totalorder %s179, %s193
    %p195 = scmp.eq.s32.totalorder %s22, 0
    %p196 = por %p194, %p195
    %s198 = sadd.s32 %s197, 1
    %p201 = scmp.eq.s32.totalorder %s16, 1
    %p202 = scmp.ne.s32.totalorder %s197, %s199
    %p203 = scmp.eq.s32.totalorder %s16, 0
    %p204 = por %p202, %p203
    %p205 = scmp.ne.s32.totalorder %s197, %s199
    %p206 = scmp.eq.s32.totalorder %s21, 1
    %p207 = por %p205, %p206
    %p208 = scmp.ne.s32.totalorder %s199, %s200
    %p209 = scmp.eq.s32.totalorder %s21, 0
    %p210 = por %p208, %p209
    %p211 = scmp.ne.s32.totalorder %s199, %s200
    %p212 = scmp.eq.s32.totalorder %s22, 1
    %p213 = por %p211, %p212
    %p215 = scmp.ne.s32.totalorder %s200, %s214
    %p216 = scmp.eq.s32.totalorder %s22, 0
    %p217 = por %p215, %p216
    %s219 = sadd.s32 %s218, 1
    %p222 = scmp.eq.s32.totalorder %s16, 1
    %p223 = scmp.ne.s32.totalorder %s218, %s220
    %p224 = scmp.eq.s32.totalorder %s16, 0
    %p225 = por %p223, %p224
    %p226 = scmp.ne.s32.totalorder %s218, %s220
    %p227 = scmp.eq.s32.totalorder %s21, 1
    %p228 = por %p226, %p227
    %p229 = scmp.ne.s32.totalorder %s220, %s221
    %p230 = scmp.eq.s32.totalorder %s21, 0
    %p231 = por %p229, %p230
    %p232 = scmp.ne.s32.totalorder %s220, %s221
    %p233 = scmp.eq.s32.totalorder %s22, 1
    %p234 = por %p232, %p233
    %p236 = scmp.ne.s32.totalorder %s221, %s235
    %p237 = scmp.eq.s32.totalorder %s22, 0
    %p238 = por %p236, %p237
    %s239 = ssub.s32 %s16, %s23
    %p240 = scmp.eq.s32.totalorder %s239, 0
    %s242 = sadd.s32 %s241, 1
    %s243 = scalar_select %p240, %s241, %s242
    %p246 = pneg %p240
    %p247 = scmp.eq.s32.totalorder %s16, 1
    %p248 = por %p246, %p247
    %p249 = scmp.ne.s32.totalorder %s241, %s244
    %p250 = scmp.eq.s32.totalorder %s16, 0
    %p251 = por %p249, %p250
    %p252 = scmp.ne.s32.totalorder %s241, %s244
    %p253 = scmp.eq.s32.totalorder %s21, 1
    %p254 = por %p252, %p253
    %p255 = scmp.ne.s32.totalorder %s244, %s245
    %p256 = scmp.eq.s32.totalorder %s21, 0
    %p257 = por %p255, %p256
    %p258 = scmp.ne.s32.totalorder %s244, %s245
    %p259 = scmp.eq.s32.totalorder %s22, 1
    %p260 = por %p258, %p259
    %p262 = scmp.ne.s32.totalorder %s245, %s261
    %p263 = scmp.eq.s32.totalorder %s22, 0
    %p264 = por %p262, %p263
    %p265 = scmp.le.s32.totalorder 1, %s16
    %p266 = scmp.lt.s32.totalorder %s16, 3
    %p267 = pnand %p265, %p266
    %p268 = pneg %p267
    // Predicated region
    $region9: #{_lambda_.1} parent=5 // pred_check
      _
    $region10: #{_lambda_.1} parent=5 // pred_check_branch
      %270 = sbr.rel (%p267) target = $region12
    $region11: #{_lambda_.1} parent=5 // pred_region
      %s271 = ssub.s32 %s16, 1
      // Predicated region
      $region13: #{_lambda_.1} parent=11 // pred_check
        %p272 = pneg %p63
      $region14: #{_lambda_.1} parent=11 // pred_check_branch
        %274 = sbr.rel (%p272) target = $region16
      $region15: #{_lambda_.1} parent=11 // pred_region
        _
      $region16: #{_lambda_.1} parent=11 // pred_fallthru
        _
      // Predicated region
      $region17: #{_lambda_.1} parent=11 // pred_check
        %p275 = pneg %p84
      $region18: #{_lambda_.1} parent=11 // pred_check_branch
        %277 = sbr.rel (%p275) target = $region20
      $region19: #{_lambda_.1} parent=11 // pred_region
        _
      $region20: #{_lambda_.1} parent=11 // pred_fallthru
        _
      // Predicated region
      $region21: #{_lambda_.1} parent=11 // pred_check
        %p278 = pneg %p105
      $region22: #{_lambda_.1} parent=11 // pred_check_branch
        %280 = sbr.rel (%p278) target = $region24
      $region23: #{_lambda_.1} parent=11 // pred_region
        _
      $region24: #{_lambda_.1} parent=11 // pred_fallthru
        _
      // Predicated region
      $region25: #{_lambda_.1} parent=11 // pred_check
        %p281 = pneg %p126
      $region26: #{_lambda_.1} parent=11 // pred_check_branch
        %283 = sbr.rel (%p281) target = $region28
      $region27: #{_lambda_.1} parent=11 // pred_region
        _
      $region28: #{_lambda_.1} parent=11 // pred_fallthru
        _
      // Predicated region
      $region29: #{_lambda_.1} parent=11 // pred_check
        %p284 = pneg %p147
      $region30: #{_lambda_.1} parent=11 // pred_check_branch
        %286 = sbr.rel (%p284) target = $region32
      $region31: #{_lambda_.1} parent=11 // pred_region
        _
      $region32: #{_lambda_.1} parent=11 // pred_fallthru
        _
      // Predicated region
      $region33: #{_lambda_.1} parent=11 // pred_check
        %p287 = pneg %p168
      $region34: #{_lambda_.1} parent=11 // pred_check_branch
        %289 = sbr.rel (%p287) target = $region36
      $region35: #{_lambda_.1} parent=11 // pred_region
        _
      $region36: #{_lambda_.1} parent=11 // pred_fallthru
        _
      // Predicated region
      $region37: #{_lambda_.1} parent=11 // pred_check
        %p290 = pneg %p189
      $region38: #{_lambda_.1} parent=11 // pred_check_branch
        %292 = sbr.rel (%p290) target = $region40
      $region39: #{_lambda_.1} parent=11 // pred_region
        _
      $region40: #{_lambda_.1} parent=11 // pred_fallthru
        _
      // Predicated region
      $region41: #{_lambda_.1} parent=11 // pred_check
        %p293 = pneg %p210
      $region42: #{_lambda_.1} parent=11 // pred_check_branch
        %295 = sbr.rel (%p293) target = $region44
      $region43: #{_lambda_.1} parent=11 // pred_region
        _
      $region44: #{_lambda_.1} parent=11 // pred_fallthru
        _
      // Predicated region
      $region45: #{_lambda_.1} parent=11 // pred_check
        %p296 = pneg %p231
      $region46: #{_lambda_.1} parent=11 // pred_check_branch
        %298 = sbr.rel (%p296) target = $region48
      $region47: #{_lambda_.1} parent=11 // pred_region
        _
      $region48: #{_lambda_.1} parent=11 // pred_fallthru
        _
    $region12: #{_lambda_.1} parent=5 // pred_fallthru
      _
    %p299 = scmp.lt.s32.totalorder %s16, 2
    // Predicated region
    $region49: #{_lambda_.1} parent=5 // pred_check
      %p300 = pneg %p299
    $region50: #{_lambda_.1} parent=5 // pred_check_branch
      %302 = sbr.rel (%p300) target = $region52
    $region51: #{_lambda_.1} parent=5 // pred_region
      // Predicated region
      $region53: #{_lambda_.1} parent=51 // pred_check
        %p303 = pneg %p36
      $region54: #{_lambda_.1} parent=51 // pred_check_branch
        %305 = sbr.rel (%p303) target = $region56
      $region55: #{_lambda_.1} parent=51 // pred_region
        %p306 = scmp.lt.s32.totalorder %s16, 1
        %s307 = scalar_select %p306, %s16, 1
        %s308 = smul.addr %s307, 5
        %s309 = smul.addr %s308, 4
        %s310 = scalar_lea.vmem %s0, %s309
      $region56: #{_lambda_.1} parent=51 // pred_fallthru
        _
    $region52: #{_lambda_.1} parent=5 // pred_fallthru
      _
    %p311 = scmp.le.s32.totalorder 1, %s16
    %p312 = scmp.lt.s32.totalorder %s16, 3
    %p313 = pnand %p311, %p312
    %p314 = pneg %p313
    // Predicated region
    $region57: #{_lambda_.1} parent=5 // pred_check
      _
    $region58: #{_lambda_.1} parent=5 // pred_check_branch
      %316 = sbr.rel (%p313) target = $region60
    $region59: #{_lambda_.1} parent=5 // pred_region
      %s317 = ssub.s32 %s16, 1
      %p318 = scmp.lt.s32.totalorder %s21, 1
      %s319 = scalar_select %p318, %s21, 1
      %s320 = smul.addr %s319, 5
      %s321 = smul.addr %s320, 4
      %s322 = scalar_lea.vmem %s0, %s321
      %p323 = pneg %p42
      %p324 = pneg %p39
      %p325 = pneg %p63
      %p326 = pneg %p60
      %p327 = pneg %p84
      %p328 = pneg %p81
      %p329 = pneg %p105
      %p330 = pneg %p102
      %p331 = pneg %p126
      %p332 = pneg %p123
      %p333 = pneg %p147
      %p334 = pneg %p144
      %p335 = pneg %p168
      %p336 = pneg %p165
      %p337 = pneg %p189
      %p338 = pneg %p186
      %p339 = pneg %p210
      %p340 = pneg %p207
      %p341 = pneg %p231
      %p342 = pneg %p228
      %p343 = pneg %p257
      %p344 = pneg %p254
      %p345 = scmp.lt.s32.totalorder %s21, 1
      %s346 = scalar_select %p345, %s21, 1
      %s347 = smul.addr %s346, 3
      %s348 = smul.addr %s347, 8
      %s349 = scalar_lea.vmem %s10, %s348
      %p350 = scmp.lt.s32.totalorder %s21, 1
      %s351 = scalar_select %p350, %s21, 1
      %s352 = smul.addr %s351, 5
      %s353 = smul.addr %s352, 4
      %s354 = scalar_lea.vmem %s0, %s353
      %p355 = scmp.lt.s32.totalorder %s21, 1
      %s356 = scalar_select %p355, %s21, 1
      %s357 = smul.addr %s356, 3
      %s358 = smul.addr %s357, 8
      %s359 = scalar_lea.vmem %s10, %s358
      %p361 = scmp.eq.s32.totalorder %s21, 0
      // Predicated region
      $region61: #{_lambda_.1} parent=59 // pred_check
        %p362 = pneg %p361
      $region62: #{_lambda_.1} parent=59 // pred_check_branch
        %364 = sbr.rel (%p362) target = $region64
      $region63: #{_lambda_.1} parent=59 // pred_region
        %365 = vst [vmem:[#allocation2] sm:$0xff] 0
        %366 = vst [vmem:[#allocation2 + $0x8] sm:$0xff] 0
        %367 = vst [vmem:[#allocation2 + $0x10] sm:$0xff] 0
        %368 = vst [vmem:[#allocation2 + $0x18] sm:$0xff] 0
        %369 = vst [vmem:[#allocation2 + $0x20] sm:$0xff] 0
      $region64: #{_lambda_.1} parent=59 // pred_fallthru
        _
      %v370 = vld [vmem:[%s1] sm:$0x7]
      %vm371 = vcmp.ne.f32.partialorder %v370, 0.0
      %v372 = vld [vmem:[%s354] sm:$0xff]
      %v373 = vld [vmem:[%s354 + $0x8] sm:$0xff]
      %v374 = vld [vmem:[%s354 + $0x10] sm:$0xf]
      %v377 = vcombine.high %v372, %v372
      %v378 = vcombine.high %v373, %v373
      %v381 = vpack.c.bf16 %v372, %v372
      %v382 = vpack.c.bf16 %v377, %v377
      %v383 = vpack.c.bf16 %v373, %v373
      %v384 = vpack.c.bf16 %v378, %v378
      %v385 = vpack.c.bf16 %v374, %v374
      %386 = vst [vmem:[#allocation2] sm:$0x3] %v381
      %387 = vst [vmem:[#allocation2 + $0x8] sm:$0x3] %v382
      %388 = vst [vmem:[#allocation2 + $0x10] sm:$0x3] %v383
      %389 = vst [vmem:[#allocation2 + $0x18] sm:$0x3] %v384
      %390 = vst [vmem:[#allocation2 + $0x20] sm:$0x3] %v385
      %v391 = vld [vmem:[%s2] sm:$0x3]
      %v392 = vld [vmem:[#allocation2] sm:$0x3]
      %v393 = vld [vmem:[#allocation2 + $0x8] sm:$0x3]
      %v394 = vld [vmem:[#allocation2 + $0x10] sm:$0x3]
      %v395 = vld [vmem:[#allocation2 + $0x18] sm:$0x3]
      %s396 = scalar_lea.vmem %s2, 2
      %v397 = vld [vmem:[%s396] sm:$0x3]
      %402 = vrot.lane.b32.xlu0 %v392, 18
      %v403 = vpop.permute.xlu0 %402
      %404 = vrot.lane.b32.xlu0 %v393, 18
      %v405 = vpop.permute.xlu0 %404
      %406 = vrot.lane.b32.xlu0 %v394, 18
      %v407 = vpop.permute.xlu0 %406
      %408 = vrot.lane.b32.xlu0 %v395, 18
      %v409 = vpop.permute.xlu0 %408
      %vm410 = vcmask 146432
      %v411 = vsel %vm410, %v403, %v405
      %v412 = vsel %vm410, %v405, %v407
      %v413 = vsel %vm410, %v407, %v409
      %vm414 = vcmask 31744
      %v416 = vsel %vm414, %v397, 0
      %vm418 = vcmask 1041408
      %v420 = vsel %vm418, %v411, 0
      %v423 = vsel %vm418, %v412, 0
      %v426 = vsel %vm418, %v413, 0
      %428 = vmatprep.subr.bf16.mxu0 %v423
      %429 = vmatpush1.bf16.msra.mxu0 %v420
      %430 = vmatprep.subr.bf16.mxu0 0
      %431 = vmatpush1.bf16.msra.mxu0 0
      %432 = vmatprep.subr.bf16.mxu0 0
      %433 = vmatpush1.bf16.msra.mxu0 0
      %434 = vmatprep.subr.bf16.mxu0 0
      %435 = vmatpush1.bf16.msra.mxu0 0
      %436 = vmatprep.subr.bf16.mxu0 0
      %437 = vmatpush1.bf16.msra.mxu0 0
      %438 = vmatprep.subr.bf16.mxu0 0
      %439 = vmatpush1.bf16.msra.mxu0 0
      %440 = vmatprep.subr.bf16.mxu0 0
      %441 = vmatpush1.bf16.msra.mxu0 0
      %442 = vmatprep.subr.bf16.mxu0 0
      %443 = vmatpush1.bf16.msra.mxu0 0
      %444 = vmatprep.subr.bf16.mxu0 0
      %445 = vmatpush1.bf16.msra.mxu0 0
      %446 = vmatprep.subr.bf16.mxu0 0
      %447 = vmatpush1.bf16.msra.mxu0 0
      %448 = vmatprep.subr.bf16.mxu0 0
      %449 = vmatpush1.bf16.msra.mxu0 0
      %450 = vmatprep.subr.bf16.mxu0 0
      %451 = vmatpush1.bf16.msra.mxu0 0
      %452 = vmatprep.subr.bf16.mxu0 0
      %453 = vmatpush1.bf16.msra.mxu0 0
      %454 = vmatprep.subr.bf16.mxu0 0
      %455 = vmatpush1.bf16.msra.mxu0 0
      %456 = vmatprep.subr.bf16.mxu0 0
      %457 = vmatpush1.bf16.msra.mxu0 0
      %458 = vmatprep.subr.bf16.mxu0 0
      %459 = vmatpush1.bf16.msra.mxu0 0
      %460 = vmatprep.mubr.bf16.mxu0 0
      %461 = vmatmul.mubr.bf16.gmra.mrb[0].mxu0 %v416
      %v462 = vpop.f32.mrb[0].mxu0
      %v463 = vadd.f32 0.0, %v462
      %v464 = vpop.f32.mrb[0].mxu0
      %v465 = vadd.f32 0.0, %v464
      %v466 = vpop.f32.mrb[0].mxu0
      %v467 = vpop.f32.mrb[0].mxu0
      %468 = vdwg.mxu0
      %469 = vmatprep.subr.bf16.mxu0 0
      %470 = vmatpush1.bf16.msra.mxu0 %v426
      %471 = vmatprep.subr.bf16.mxu0 0
      %472 = vmatpush1.bf16.msra.mxu0 0
      %473 = vmatprep.subr.bf16.mxu0 0
      %474 = vmatpush1.bf16.msra.mxu0 0
      %475 = vmatprep.subr.bf16.mxu0 0
      %476 = vmatpush1.bf16.msra.mxu0 0
      %477 = vmatprep.subr.bf16.mxu0 0
      %478 = vmatpush1.bf16.msra.mxu0 0
      %479 = vmatprep.subr.bf16.mxu0 0
      %480 = vmatpush1.bf16.msra.mxu0 0
      %481 = vmatprep.subr.bf16.mxu0 0
      %482 = vmatpush1.bf16.msra.mxu0 0
      %483 = vmatprep.subr.bf16.mxu0 0
      %484 = vmatpush1.bf16.msra.mxu0 0
      %485 = vmatprep.subr.bf16.mxu0 0
      %486 = vmatpush1.bf16.msra.mxu0 0
      %487 = vmatprep.subr.bf16.mxu0 0
      %488 = vmatpush1.bf16.msra.mxu0 0
      %489 = vmatprep.subr.bf16.mxu0 0
      %490 = vmatpush1.bf16.msra.mxu0 0
      %491 = vmatprep.subr.bf16.mxu0 0
      %492 = vmatpush1.bf16.msra.mxu0 0
      %493 = vmatprep.subr.bf16.mxu0 0
      %494 = vmatpush1.bf16.msra.mxu0 0
      %495 = vmatprep.subr.bf16.mxu0 0
      %496 = vmatpush1.bf16.msra.mxu0 0
      %497 = vmatprep.subr.bf16.mxu0 0
      %498 = vmatpush1.bf16.msra.mxu0 0
      %499 = vmatprep.subr.bf16.mxu0 0
      %500 = vmatpush1.bf16.msra.mxu0 0
      %501 = vmatprep.mubr.bf16.mxu0 0
      %502 = vmatmul.mubr.bf16.gmra.mrb[0].mxu0 %v416
      %v503 = vpop.f32.mrb[0].mxu0
      %v504 = vadd.f32 0.0, %v503
      %v505 = vpop.f32.mrb[0].mxu0
      %v506 = vpop.f32.mrb[0].mxu0
      %v507 = vpop.f32.mrb[0].mxu0
      %508 = vdwg.mxu0
      %509 = vrot.lane.b32.xlu0 %v392, 19
      %v510 = vpop.permute.xlu0 %509
      %511 = vrot.lane.b32.xlu0 %v393, 19
      %v512 = vpop.permute.xlu0 %511
      %513 = vrot.lane.b32.xlu0 %v394, 19
      %v514 = vpop.permute.xlu0 %513
      %515 = vrot.lane.b32.xlu0 %v395, 19
      %v516 = vpop.permute.xlu0 %515
      %vm517 = vcmask 154624
      %v518 = vsel %vm517, %v510, %v512
      %v519 = vsel %vm517, %v512, %v514
      %v520 = vsel %vm517, %v514, %v516
      %v522 = vsel %vm414, %v391, 0
      %v525 = vsel %vm418, %v518, 0
      %v528 = vsel %vm418, %v519, 0
      %v531 = vsel %vm418, %v520, 0
      %533 = vmatprep.subr.bf16.mxu0 %v528
      %534 = vmatpush1.bf16.msra.mxu0 %v525
      %535 = vmatprep.subr.bf16.mxu0 0
      %536 = vmatpush1.bf16.msra.mxu0 0
      %537 = vmatprep.subr.bf16.mxu0 0
      %538 = vmatpush1.bf16.msra.mxu0 0
      %539 = vmatprep.subr.bf16.mxu0 0
      %540 = vmatpush1.bf16.msra.mxu0 0
      %541 = vmatprep.subr.bf16.mxu0 0
      %542 = vmatpush1.bf16.msra.mxu0 0
      %543 = vmatprep.subr.bf16.mxu0 0
      %544 = vmatpush1.bf16.msra.mxu0 0
      %545 = vmatprep.subr.bf16.mxu0 0
      %546 = vmatpush1.bf16.msra.mxu0 0
      %547 = vmatprep.subr.bf16.mxu0 0
      %548 = vmatpush1.bf16.msra.mxu0 0
      %549 = vmatprep.subr.bf16.mxu0 0
      %550 = vmatpush1.bf16.msra.mxu0 0
      %551 = vmatprep.subr.bf16.mxu0 0
      %552 = vmatpush1.bf16.msra.mxu0 0
      %553 = vmatprep.subr.bf16.mxu0 0
      %554 = vmatpush1.bf16.msra.mxu0 0
      %555 = vmatprep.subr.bf16.mxu0 0
      %556 = vmatpush1.bf16.msra.mxu0 0
      %557 = vmatprep.subr.bf16.mxu0 0
      %558 = vmatpush1.bf16.msra.mxu0 0
      %559 = vmatprep.subr.bf16.mxu0 0
      %560 = vmatpush1.bf16.msra.mxu0 0
      %561 = vmatprep.subr.bf16.mxu0 0
      %562 = vmatpush1.bf16.msra.mxu0 0
      %563 = vmatprep.subr.bf16.mxu0 0
      %564 = vmatpush1.bf16.msra.mxu0 0
      %565 = vmatprep.mubr.bf16.mxu0 0
      %566 = vmatmul.mubr.bf16.gmra.mrb[0].mxu0 %v522
      %v567 = vpop.f32.mrb[0].mxu0
      %v568 = vadd.f32 %v463, %v567
      %v569 = vpop.f32.mrb[0].mxu0
      %v570 = vadd.f32 %v465, %v569
      %v571 = vpop.f32.mrb[0].mxu0
      %v572 = vpop.f32.mrb[0].mxu0
      %573 = vdwg.mxu0
      %574 = vmatprep.subr.bf16.mxu0 0
      %575 = vmatpush1.bf16.msra.mxu0 %v531
      %576 = vmatprep.subr.bf16.mxu0 0
      %577 = vmatpush1.bf16.msra.mxu0 0
      %578 = vmatprep.subr.bf16.mxu0 0
      %579 = vmatpush1.bf16.msra.mxu0 0
      %580 = vmatprep.subr.bf16.mxu0 0
      %581 = vmatpush1.bf16.msra.mxu0 0
      %582 = vmatprep.subr.bf16.mxu0 0
      %583 = vmatpush1.bf16.msra.mxu0 0
      %584 = vmatprep.subr.bf16.mxu0 0
      %585 = vmatpush1.bf16.msra.mxu0 0
      %586 = vmatprep.subr.bf16.mxu0 0
      %587 = vmatpush1.bf16.msra.mxu0 0
      %588 = vmatprep.subr.bf16.mxu0 0
      %589 = vmatpush1.bf16.msra.mxu0 0
      %590 = vmatprep.subr.bf16.mxu0 0
      %591 = vmatpush1.bf16.msra.mxu0 0
      %592 = vmatprep.subr.bf16.mxu0 0
      %593 = vmatpush1.bf16.msra.mxu0 0
      %594 = vmatprep.subr.bf16.mxu0 0
      %595 = vmatpush1.bf16.msra.mxu0 0
      %596 = vmatprep.subr.bf16.mxu0 0
      %597 = vmatpush1.bf16.msra.mxu0 0
      %598 = vmatprep.subr.bf16.mxu0 0
      %599 = vmatpush1.bf16.msra.mxu0 0
      %600 = vmatprep.subr.bf16.mxu0 0
      %601 = vmatpush1.bf16.msra.mxu0 0
      %602 = vmatprep.subr.bf16.mxu0 0
      %603 = vmatpush1.bf16.msra.mxu0 0
      %604 = vmatprep.subr.bf16.mxu0 0
      %605 = vmatpush1.bf16.msra.mxu0 0
      %606 = vmatprep.mubr.bf16.mxu0 0
      %607 = vmatmul.mubr.bf16.gmra.mrb[0].mxu0 %v522
      %v608 = vpop.f32.mrb[0].mxu0
      %v609 = vadd.f32 %v504, %v608
      %v610 = vpop.f32.mrb[0].mxu0
      %v611 = vpop.f32.mrb[0].mxu0
      %v612 = vpop.f32.mrb[0].mxu0
      %613 = vdwg.mxu0
      %s614 = scalar_lea.vmem %s2, 4
      %v615 = vld [vmem:[%s614] sm:$0x3]
      %616 = vrot.lane.b32.xlu0 %v392, 17
      %v617 = vpop.permute.xlu0 %616
      %618 = vrot.lane.b32.xlu0 %v393, 17
      %v619 = vpop.permute.xlu0 %618
      %620 = vrot.lane.b32.xlu0 %v394, 17
      %v621 = vpop.permute.xlu0 %620
      %622 = vrot.lane.b32.xlu0 %v395, 17
      %v623 = vpop.permute.xlu0 %622
      %vm624 = vcmask 138240
      %v625 = vsel %vm624, %v617, %v619
      %v626 = vsel %vm624, %v619, %v621
      %v627 = vsel %vm624, %v621, %v623
      %v629 = vsel %vm414, %v615, 0
      %v632 = vsel %vm418, %v625, 0
      %v635 = vsel %vm418, %v626, 0
      %v638 = vsel %vm418, %v627, 0
      %640 = vmatprep.subr.bf16.mxu0 %v635
      %641 = vmatpush1.bf16.msra.mxu0 %v632
      %642 = vmatprep.subr.bf16.mxu0 0
      %643 = vmatpush1.bf16.msra.mxu0 0
      %644 = vmatprep.subr.bf16.mxu0 0
      %645 = vmatpush1.bf16.msra.mxu0 0
      %646 = vmatprep.subr.bf16.mxu0 0
      %647 = vmatpush1.bf16.msra.mxu0 0
      %648 = vmatprep.subr.bf16.mxu0 0
      %649 = vmatpush1.bf16.msra.mxu0 0
      %650 = vmatprep.subr.bf16.mxu0 0
      %651 = vmatpush1.bf16.msra.mxu0 0
      %652 = vmatprep.subr.bf16.mxu0 0
      %653 = vmatpush1.bf16.msra.mxu0 0
      %654 = vmatprep.subr.bf16.mxu0 0
      %655 = vmatpush1.bf16.msra.mxu0 0
      %656 = vmatprep.subr.bf16.mxu0 0
      %657 = vmatpush1.bf16.msra.mxu0 0
      %658 = vmatprep.subr.bf16.mxu0 0
      %659 = vmatpush1.bf16.msra.mxu0 0
      %660 = vmatprep.subr.bf16.mxu0 0
      %661 = vmatpush1.bf16.msra.mxu0 0
      %662 = vmatprep.subr.bf16.mxu0 0
      %663 = vmatpush1.bf16.msra.mxu0 0
      %664 = vmatprep.subr.bf16.mxu0 0
      %665 = vmatpush1.bf16.msra.mxu0 0
      %666 = vmatprep.subr.bf16.mxu0 0
      %667 = vmatpush1.bf16.msra.mxu0 0
      %668 = vmatprep.subr.bf16.mxu0 0
      %669 = vmatpush1.bf16.msra.mxu0 0
      %670 = vmatprep.subr.bf16.mxu0 0
      %671 = vmatpush1.bf16.msra.mxu0 0
      %672 = vmatprep.mubr.bf16.mxu0 0
      %673 = vmatmul.mubr.bf16.gmra.mrb[0].mxu0 %v629
      %v674 = vpop.f32.mrb[0].mxu0
      %v675 = vadd.f32 0.0, %v674
      %v676 = vpop.f32.mrb[0].mxu0
      %v677 = vadd.f32 0.0, %v676
      %v678 = vpop.f32.mrb[0].mxu0
      %v679 = vpop.f32.mrb[0].mxu0
      %680 = vdwg.mxu0
      %681 = vmatprep.subr.bf16.mxu0 0
      %682 = vmatpush1.bf16.msra.mxu0 %v638
      %683 = vmatprep.subr.bf16.mxu0 0
      %684 = vmatpush1.bf16.msra.mxu0 0
      %685 = vmatprep.subr.bf16.mxu0 0
      %686 = vmatpush1.bf16.msra.mxu0 0
      %687 = vmatprep.subr.bf16.mxu0 0
      %688 = vmatpush1.bf16.msra.mxu0 0
      %689 = vmatprep.subr.bf16.mxu0 0
      %690 = vmatpush1.bf16.msra.mxu0 0
      %691 = vmatprep.subr.bf16.mxu0 0
      %692 = vmatpush1.bf16.msra.mxu0 0
      %693 = vmatprep.subr.bf16.mxu0 0
      %694 = vmatpush1.bf16.msra.mxu0 0
      %695 = vmatprep.subr.bf16.mxu0 0
      %696 = vmatpush1.bf16.msra.mxu0 0
      %697 = vmatprep.subr.bf16.mxu0 0
      %698 = vmatpush1.bf16.msra.mxu0 0
      %699 = vmatprep.subr.bf16.mxu0 0
      %700 = vmatpush1.bf16.msra.mxu0 0
      %701 = vmatprep.subr.bf16.mxu0 0
      %702 = vmatpush1.bf16.msra.mxu0 0
      %703 = vmatprep.subr.bf16.mxu0 0
      %704 = vmatpush1.bf16.msra.mxu0 0
      %705 = vmatprep.subr.bf16.mxu0 0
      %706 = vmatpush1.bf16.msra.mxu0 0
      %707 = vmatprep.subr.bf16.mxu0 0
      %708 = vmatpush1.bf16.msra.mxu0 0
      %709 = vmatprep.subr.bf16.mxu0 0
      %710 = vmatpush1.bf16.msra.mxu0 0
      %711 = vmatprep.subr.bf16.mxu0 0
      %712 = vmatpush1.bf16.msra.mxu0 0
      %713 = vmatprep.mubr.bf16.mxu0 0
      %714 = vmatmul.mubr.bf16.gmra.mrb[0].mxu0 %v629
      %v715 = vpop.f32.mrb[0].mxu0
      %v716 = vadd.f32 0.0, %v715
      %v717 = vpop.f32.mrb[0].mxu0
      %v718 = vpop.f32.mrb[0].mxu0
      %v719 = vpop.f32.mrb[0].mxu0
      %720 = vdwg.mxu0
      %v721 = vadd.f32 %v568, %v675
      %v722 = vadd.f32 %v570, %v677
      %v723 = vadd.f32 %v609, %v716
      %s724 = scalar_lea.vmem %s2, 6
      %v725 = vld [vmem:[%s724] sm:$0x3]
      %726 = vrot.lane.b32.xlu0 %v392, 1
      %v727 = vpop.permute.xlu0 %726
      %728 = vrot.lane.b32.xlu0 %v393, 1
      %v729 = vpop.permute.xlu0 %728
      %730 = vrot.lane.b32.xlu0 %v394, 1
      %v731 = vpop.permute.xlu0 %730
      %732 = vrot.lane.b32.xlu0 %v395, 1
      %v733 = vpop.permute.xlu0 %732
      %vm734 = vcmask 7168
      %v735 = vsel %vm734, %v727, %v729
      %v736 = vsel %vm734, %v729, %v731
      %v737 = vsel %vm734, %v731, %v733
      %v739 = vsel %vm414, %v725, 0
      %v742 = vsel %vm418, %v735, 0
      %v745 = vsel %vm418, %v736, 0
      %v748 = vsel %vm418, %v737, 0
      %750 = vmatprep.subr.bf16.mxu0 %v745
      %751 = vmatpush1.bf16.msra.mxu0 %v742
      %752 = vmatprep.subr.bf16.mxu0 0
      %753 = vmatpush1.bf16.msra.mxu0 0
      %754 = vmatprep.subr.bf16.mxu0 0
      %755 = vmatpush1.bf16.msra.mxu0 0
      %756 = vmatprep.subr.bf16.mxu0 0
      %757 = vmatpush1.bf16.msra.mxu0 0
      %758 = vmatprep.subr.bf16.mxu0 0
      %759 = vmatpush1.bf16.msra.mxu0 0
      %760 = vmatprep.subr.bf16.mxu0 0
      %761 = vmatpush1.bf16.msra.mxu0 0
      %762 = vmatprep.subr.bf16.mxu0 0
      %763 = vmatpush1.bf16.msra.mxu0 0
      %764 = vmatprep.subr.bf16.mxu0 0
      %765 = vmatpush1.bf16.msra.mxu0 0
      %766 = vmatprep.subr.bf16.mxu0 0
      %767 = vmatpush1.bf16.msra.mxu0 0
      %768 = vmatprep.subr.bf16.mxu0 0
      %769 = vmatpush1.bf16.msra.mxu0 0
      %770 = vmatprep.subr.bf16.mxu0 0
      %771 = vmatpush1.bf16.msra.mxu0 0
      %772 = vmatprep.subr.bf16.mxu0 0
      %773 = vmatpush1.bf16.msra.mxu0 0
      %774 = vmatprep.subr.bf16.mxu0 0
      %775 = vmatpush1.bf16.msra.mxu0 0
      %776 = vmatprep.subr.bf16.mxu0 0
      %777 = vmatpush1.bf16.msra.mxu0 0
      %778 = vmatprep.subr.bf16.mxu0 0
      %779 = vmatpush1.bf16.msra.mxu0 0
      %780 = vmatprep.subr.bf16.mxu0 0
      %781 = vmatpush1.bf16.msra.mxu0 0
      %782 = vmatprep.mubr.bf16.mxu0 0
      %783 = vmatmul.mubr.bf16.gmra.mrb[0].mxu0 %v739
      %v784 = vpop.f32.mrb[0].mxu0
      %v785 = vadd.f32 0.0, %v784
      %v786 = vpop.f32.mrb[0].mxu0
      %v787 = vadd.f32 0.0, %v786
      %v788 = vpop.f32.mrb[0].mxu0
      %v789 = vpop.f32.mrb[0].mxu0
      %790 = vdwg.mxu0
      %791 = vmatprep.subr.bf16.mxu0 0
      %792 = vmatpush1.bf16.msra.mxu0 %v748
      %793 = vmatprep.subr.bf16.mxu0 0
      %794 = vmatpush1.bf16.msra.mxu0 0
      %795 = vmatprep.subr.bf16.mxu0 0
      %796 = vmatpush1.bf16.msra.mxu0 0
      %797 = vmatprep.subr.bf16.mxu0 0
      %798 = vmatpush1.bf16.msra.mxu0 0
      %799 = vmatprep.subr.bf16.mxu0 0
      %800 = vmatpush1.bf16.msra.mxu0 0
      %801 = vmatprep.subr.bf16.mxu0 0
      %802 = vmatpush1.bf16.msra.mxu0 0
      %803 = vmatprep.subr.bf16.mxu0 0
      %804 = vmatpush1.bf16.msra.mxu0 0
      %805 = vmatprep.subr.bf16.mxu0 0
      %806 = vmatpush1.bf16.msra.mxu0 0
      %807 = vmatprep.subr.bf16.mxu0 0
      %808 = vmatpush1.bf16.msra.mxu0 0
      %809 = vmatprep.subr.bf16.mxu0 0
      %810 = vmatpush1.bf16.msra.mxu0 0
      %811 = vmatprep.subr.bf16.mxu0 0
      %812 = vmatpush1.bf16.msra.mxu0 0
      %813 = vmatprep.subr.bf16.mxu0 0
      %814 = vmatpush1.bf16.msra.mxu0 0
      %815 = vmatprep.subr.bf16.mxu0 0
      %816 = vmatpush1.bf16.msra.mxu0 0
      %817 = vmatprep.subr.bf16.mxu0 0
      %818 = vmatpush1.bf16.msra.mxu0 0
      %819 = vmatprep.subr.bf16.mxu0 0
      %820 = vmatpush1.bf16.msra.mxu0 0
      %821 = vmatprep.subr.bf16.mxu0 0
      %822 = vmatpush1.bf16.msra.mxu0 0
      %823 = vmatprep.mubr.bf16.mxu0 0
      %824 = vmatmul.mubr.bf16.gmra.mrb[0].mxu0 %v739
      %v825 = vpop.f32.mrb[0].mxu0
      %v826 = vadd.f32 0.0, %v825
      %v827 = vpop.f32.mrb[0].mxu0
      %v828 = vpop.f32.mrb[0].mxu0
      %v829 = vpop.f32.mrb[0].mxu0
      %830 = vdwg.mxu0
      %v831 = vadd.f32 %v721, %v785
      %v832 = vadd.f32 %v722, %v787
      %v833 = vadd.f32 %v723, %v826
      %s834 = scalar_lea.vmem %s2, 8
      %v835 = vld [vmem:[%s834] sm:$0x3]
      %v837 = vsel %vm414, %v835, 0
      %v840 = vsel %vm418, %v393, 0
      %v843 = vsel %vm418, %v394, 0
      %v846 = vsel %vm418, %v395, 0
      %848 = vmatprep.subr.bf16.mxu0 %v843
      %849 = vmatpush1.bf16.msra.mxu0 %v840
      %850 = vmatprep.subr.bf16.mxu0 0
      %851 = vmatpush1.bf16.msra.mxu0 0
      %852 = vmatprep.subr.bf16.mxu0 0
      %853 = vmatpush1.bf16.msra.mxu0 0
      %854 = vmatprep.subr.bf16.mxu0 0
      %855 = vmatpush1.bf16.msra.mxu0 0
      %856 = vmatprep.subr.bf16.mxu0 0
      %857 = vmatpush1.bf16.msra.mxu0 0
      %858 = vmatprep.subr.bf16.mxu0 0
      %859 = vmatpush1.bf16.msra.mxu0 0
      %860 = vmatprep.subr.bf16.mxu0 0
      %861 = vmatpush1.bf16.msra.mxu0 0
      %862 = vmatprep.subr.bf16.mxu0 0
      %863 = vmatpush1.bf16.msra.mxu0 0
      %864 = vmatprep.subr.bf16.mxu0 0
      %865 = vmatpush1.bf16.msra.mxu0 0
      %866 = vmatprep.subr.bf16.mxu0 0
      %867 = vmatpush1.bf16.msra.mxu0 0
      %868 = vmatprep.subr.bf16.mxu0 0
      %869 = vmatpush1.bf16.msra.mxu0 0
      %870 = vmatprep.subr.bf16.mxu0 0
      %871 = vmatpush1.bf16.msra.mxu0 0
      %872 = vmatprep.subr.bf16.mxu0 0
      %873 = vmatpush1.bf16.msra.mxu0 0
      %874 = vmatprep.subr.bf16.mxu0 0
      %875 = vmatpush1.bf16.msra.mxu0 0
      %876 = vmatprep.subr.bf16.mxu0 0
      %877 = vmatpush1.bf16.msra.mxu0 0
      %878 = vmatprep.subr.bf16.mxu0 0
      %879 = vmatpush1.bf16.msra.mxu0 0
      %880 = vmatprep.mubr.bf16.mxu0 0
      %881 = vmatmul.mubr.bf16.gmra.mrb[0].mxu0 %v837
      %v882 = vpop.f32.mrb[0].mxu0
      %v883 = vadd.f32 0.0, %v882
      %v884 = vpop.f32.mrb[0].mxu0
      %v885 = vadd.f32 0.0, %v884
      %v886 = vpop.f32.mrb[0].mxu0
      %v887 = vpop.f32.mrb[0].mxu0
      %888 = vdwg.mxu0
      %889 = vmatprep.subr.bf16.mxu0 0
      %890 = vmatpush1.bf16.msra.mxu0 %v846
      %891 = vmatprep.subr.bf16.mxu0 0
      %892 = vmatpush1.bf16.msra.mxu0 0
      %893 = vmatprep.subr.bf16.mxu0 0
      %894 = vmatpush1.bf16.msra.mxu0 0
      %895 = vmatprep.subr.bf16.mxu0 0
      %896 = vmatpush1.bf16.msra.mxu0 0
      %897 = vmatprep.subr.bf16.mxu0 0
      %898 = vmatpush1.bf16.msra.mxu0 0
      %899 = vmatprep.subr.bf16.mxu0 0
      %900 = vmatpush1.bf16.msra.mxu0 0
      %901 = vmatprep.subr.bf16.mxu0 0
      %902 = vmatpush1.bf16.msra.mxu0 0
      %903 = vmatprep.subr.bf16.mxu0 0
      %904 = vmatpush1.bf16.msra.mxu0 0
      %905 = vmatprep.subr.bf16.mxu0 0
      %906 = vmatpush1.bf16.msra.mxu0 0
      %907 = vmatprep.subr.bf16.mxu0 0
      %908 = vmatpush1.bf16.msra.mxu0 0
      %909 = vmatprep.subr.bf16.mxu0 0
      %910 = vmatpush1.bf16.msra.mxu0 0
      %911 = vmatprep.subr.bf16.mxu0 0
      %912 = vmatpush1.bf16.msra.mxu0 0
      %913 = vmatprep.subr.bf16.mxu0 0
      %914 = vmatpush1.bf16.msra.mxu0 0
      %915 = vmatprep.subr.bf16.mxu0 0
      %916 = vmatpush1.bf16.msra.mxu0 0
      %917 = vmatprep.subr.bf16.mxu0 0
      %918 = vmatpush1.bf16.msra.mxu0 0
      %919 = vmatprep.subr.bf16.mxu0 0
      %920 = vmatpush1.bf16.msra.mxu0 0
      %921 = vmatprep.mubr.bf16.mxu0 0
      %922 = vmatmul.mubr.bf16.gmra.mrb[0].mxu0 %v837
      %v923 = vpop.f32.mrb[0].mxu0
      %v924 = vadd.f32 0.0, %v923
      %v925 = vpop.f32.mrb[0].mxu0
      %v926 = vpop.f32.mrb[0].mxu0
      %v927 = vpop.f32.mrb[0].mxu0
      %928 = vdwg.mxu0
      %v929 = vadd.f32 %v831, %v883
      %v930 = vadd.f32 %v832, %v885
      %v931 = vadd.f32 %v833, %v924
      %s932 = scalar_lea.vmem %s2, 10
      %v933 = vld [vmem:[%s932] sm:$0x3]
      %v934 = vld [vmem:[#allocation2 + $0x8] sm:$0x3]
      %v935 = vld [vmem:[#allocation2 + $0x10] sm:$0x3]
      %v936 = vld [vmem:[#allocation2 + $0x18] sm:$0x3]
      %v937 = vld [vmem:[#allocation2 + $0x20] sm:$0x3]
      %942 = vrot.lane.b32.xlu0 %v934, 127
      %v943 = vpop.permute.xlu0 %942
      %944 = vrot.lane.b32.xlu0 %v935, 127
      %v945 = vpop.permute.xlu0 %944
      %946 = vrot.lane.b32.xlu0 %v936, 127
      %v947 = vpop.permute.xlu0 %946
      %948 = vrot.lane.b32.xlu0 %v937, 127
      %v949 = vpop.permute.xlu0 %948
      %vm950 = vcmask 1039360
      %v951 = vsel %vm950, %v943, %v945
      %v952 = vsel %vm950, %v945, %v947
      %v953 = vsel %vm950, %v947, %v949
      %v955 = vsel %vm414, %v933, 0
      %v958 = vsel %vm418, %v951, 0
      %v961 = vsel %vm418, %v952, 0
      %v964 = vsel %vm418, %v953, 0
      %966 = vmatprep.subr.bf16.mxu0 %v961
      %967 = vmatpush1.bf16.msra.mxu0 %v958
      %968 = vmatprep.subr.bf16.mxu0 0
      %969 = vmatpush1.bf16.msra.mxu0 0
      %970 = vmatprep.subr.bf16.mxu0 0
      %971 = vmatpush1.bf16.msra.mxu0 0
      %972 = vmatprep.subr.bf16.mxu0 0
      %973 = vmatpush1.bf16.msra.mxu0 0
      %974 = vmatprep.subr.bf16.mxu0 0
      %975 = vmatpush1.bf16.msra.mxu0 0
      %976 = vmatprep.subr.bf16.mxu0 0
      %977 = vmatpush1.bf16.msra.mxu0 0
      %978 = vmatprep.subr.bf16.mxu0 0
      %979 = vmatpush1.bf16.msra.mxu0 0
      %980 = vmatprep.subr.bf16.mxu0 0
      %981 = vmatpush1.bf16.msra.mxu0 0
      %982 = vmatprep.subr.bf16.mxu0 0
      %983 = vmatpush1.bf16.msra.mxu0 0
      %984 = vmatprep.subr.bf16.mxu0 0
      %985 = vmatpush1.bf16.msra.mxu0 0
      %986 = vmatprep.subr.bf16.mxu0 0
      %987 = vmatpush1.bf16.msra.mxu0 0
      %988 = vmatprep.subr.bf16.mxu0 0
      %989 = vmatpush1.bf16.msra.mxu0 0
      %990 = vmatprep.subr.bf16.mxu0 0
      %991 = vmatpush1.bf16.msra.mxu0 0
      %992 = vmatprep.subr.bf16.mxu0 0
      %993 = vmatpush1.bf16.msra.mxu0 0
      %994 = vmatprep.subr.bf16.mxu0 0
      %995 = vmatpush1.bf16.msra.mxu0 0
      %996 = vmatprep.subr.bf16.mxu0 0
      %997 = vmatpush1.bf16.msra.mxu0 0
      %998 = vmatprep.mubr.bf16.mxu0 0
      %999 = vmatmul.mubr.bf16.gmra.mrb[0].mxu0 %v955
      %v1000 = vpop.f32.mrb[0].mxu0
      %v1001 = vadd.f32 0.0, %v1000
      %v1002 = vpop.f32.mrb[0].mxu0
      %v1003 = vadd.f32 0.0, %v1002
      %v1004 = vpop.f32.mrb[0].mxu0
      %v1005 = vpop.f32.mrb[0].mxu0
      %1006 = vdwg.mxu0
      %1007 = vmatprep.subr.bf16.mxu0 0
      %1008 = vmatpush1.bf16.msra.mxu0 %v964
      %1009 = vmatprep.subr.bf16.mxu0 0
      %1010 = vmatpush1.bf16.msra.mxu0 0
      %1011 = vmatprep.subr.bf16.mxu0 0
      %1012 = vmatpush1.bf16.msra.mxu0 0
      %1013 = vmatprep.subr.bf16.mxu0 0
      %1014 = vmatpush1.bf16.msra.mxu0 0
      %1015 = vmatprep.subr.bf16.mxu0 0
      %1016 = vmatpush1.bf16.msra.mxu0 0
      %1017 = vmatprep.subr.bf16.mxu0 0
      %1018 = vmatpush1.bf16.msra.mxu0 0
      %1019 = vmatprep.subr.bf16.mxu0 0
      %1020 = vmatpush1.bf16.msra.mxu0 0
      %1021 = vmatprep.subr.bf16.mxu0 0
      %1022 = vmatpush1.bf16.msra.mxu0 0
      %1023 = vmatprep.subr.bf16.mxu0 0
      %1024 = vmatpush1.bf16.msra.mxu0 0
      %1025 = vmatprep.subr.bf16.mxu0 0
      %1026 = vmatpush1.bf16.msra.mxu0 0
      %1027 = vmatprep.subr.bf16.mxu0 0
      %1028 = vmatpush1.bf16.msra.mxu0 0
      %1029 = vmatprep.subr.bf16.mxu0 0
      %1030 = vmatpush1.bf16.msra.mxu0 0
      %1031 = vmatprep.subr.bf16.mxu0 0
      %1032 = vmatpush1.bf16.msra.mxu0 0
      %1033 = vmatprep.subr.bf16.mxu0 0
      %1034 = vmatpush1.bf16.msra.mxu0 0
      %1035 = vmatprep.subr.bf16.mxu0 0
      %1036 = vmatpush1.bf16.msra.mxu0 0
      %1037 = vmatprep.subr.bf16.mxu0 0
      %1038 = vmatpush1.bf16.msra.mxu0 0
      %1039 = vmatprep.mubr.bf16.mxu0 0
      %1040 = vmatmul.mubr.bf16.gmra.mrb[0].mxu0 %v955
      %v1041 = vpop.f32.mrb[0].mxu0
      %v1042 = vadd.f32 0.0, %v1041
      %v1043 = vpop.f32.mrb[0].mxu0
      %v1044 = vpop.f32.mrb[0].mxu0
      %v1045 = vpop.f32.mrb[0].mxu0
      %1046 = vdwg.mxu0
      %v1047 = vadd.f32 %v929, %v1001
      %v1048 = vadd.f32 %v930, %v1003
      %v1049 = vadd.f32 %v931, %v1042
      %s1050 = scalar_lea.vmem %s2, 12
      %v1051 = vld [vmem:[%s1050] sm:$0x3]
      %1052 = vrot.lane.b32.xlu0 %v934, 111
      %v1053 = vpop.permute.xlu0 %1052
      %1054 = vrot.lane.b32.xlu0 %v935, 111
      %v1055 = vpop.permute.xlu0 %1054
      %1056 = vrot.lane.b32.xlu0 %v936, 111
      %v1057 = vpop.permute.xlu0 %1056
      %1058 = vrot.lane.b32.xlu0 %v937, 111
      %v1059 = vpop.permute.xlu0 %1058
      %vm1060 = vcmask 908288
      %v1061 = vsel %vm1060, %v1053, %v1055
      %v1062 = vsel %vm1060, %v1055, %v1057
      %v1063 = vsel %vm1060, %v1057, %v1059
      %v1065 = vsel %vm414, %v1051, 0
      %v1068 = vsel %vm418, %v1061, 0
      %v1071 = vsel %vm418, %v1062, 0
      %v1074 = vsel %vm418, %v1063, 0
      %1076 = vmatprep.subr.bf16.mxu0 %v1071
      %1077 = vmatpush1.bf16.msra.mxu0 %v1068
      %1078 = vmatprep.subr.bf16.mxu0 0
      %1079 = vmatpush1.bf16.msra.mxu0 0
      %1080 = vmatprep.subr.bf16.mxu0 0
      %1081 = vmatpush1.bf16.msra.mxu0 0
      %1082 = vmatprep.subr.bf16.mxu0 0
      %1083 = vmatpush1.bf16.msra.mxu0 0
      %1084 = vmatprep.subr.bf16.mxu0 0
      %1085 = vmatpush1.bf16.msra.mxu0 0
      %1086 = vmatprep.subr.bf16.mxu0 0
      %1087 = vmatpush1.bf16.msra.mxu0 0
      %1088 = vmatprep.subr.bf16.mxu0 0
      %1089 = vmatpush1.bf16.msra.mxu0 0
      %1090 = vmatprep.subr.bf16.mxu0 0
      %1091 = vmatpush1.bf16.msra.mxu0 0
      %1092 = vmatprep.subr.bf16.mxu0 0
      %1093 = vmatpush1.bf16.msra.mxu0 0
      %1094 = vmatprep.subr.bf16.mxu0 0
      %1095 = vmatpush1.bf16.msra.mxu0 0
      %1096 = vmatprep.subr.bf16.mxu0 0
      %1097 = vmatpush1.bf16.msra.mxu0 0
      %1098 = vmatprep.subr.bf16.mxu0 0
      %1099 = vmatpush1.bf16.msra.mxu0 0
      %1100 = vmatprep.subr.bf16.mxu0 0
      %1101 = vmatpush1.bf16.msra.mxu0 0
      %1102 = vmatprep.subr.bf16.mxu0 0
      %1103 = vmatpush1.bf16.msra.mxu0 0
      %1104 = vmatprep.subr.bf16.mxu0 0
      %1105 = vmatpush1.bf16.msra.mxu0 0
      %1106 = vmatprep.subr.bf16.mxu0 0
      %1107 = vmatpush1.bf16.msra.mxu0 0
      %1108 = vmatprep.mubr.bf16.mxu0 0
      %1109 = vmatmul.mubr.bf16.gmra.mrb[0].mxu0 %v1065
      %v1110 = vpop.f32.mrb[0].mxu0
      %v1111 = vadd.f32 0.0, %v1110
      %v1112 = vpop.f32.mrb[0].mxu0
      %v1113 = vadd.f32 0.0, %v1112
      %v1114 = vpop.f32.mrb[0].mxu0
      %v1115 = vpop.f32.mrb[0].mxu0
      %1116 = vdwg.mxu0
      %1117 = vmatprep.subr.bf16.mxu0 0
      %1118 = vmatpush1.bf16.msra.mxu0 %v1074
      %1119 = vmatprep.subr.bf16.mxu0 0
      %1120 = vmatpush1.bf16.msra.mxu0 0
      %1121 = vmatprep.subr.bf16.mxu0 0
      %1122 = vmatpush1.bf16.msra.mxu0 0
      %1123 = vmatprep.subr.bf16.mxu0 0
      %1124 = vmatpush1.bf16.msra.mxu0 0
      %1125 = vmatprep.subr.bf16.mxu0 0
      %1126 = vmatpush1.bf16.msra.mxu0 0
      %1127 = vmatprep.subr.bf16.mxu0 0
      %1128 = vmatpush1.bf16.msra.mxu0 0
      %1129 = vmatprep.subr.bf16.mxu0 0
      %1130 = vmatpush1.bf16.msra.mxu0 0
      %1131 = vmatprep.subr.bf16.mxu0 0
      %1132 = vmatpush1.bf16.msra.mxu0 0
      %1133 = vmatprep.subr.bf16.mxu0 0
      %1134 = vmatpush1.bf16.msra.mxu0 0
      %1135 = vmatprep.subr.bf16.mxu0 0
      %1136 = vmatpush1.bf16.msra.mxu0 0
      %1137 = vmatprep.subr.bf16.mxu0 0
      %1138 = vmatpush1.bf16.msra.mxu0 0
      %1139 = vmatprep.subr.bf16.mxu0 0
      %1140 = vmatpush1.bf16.msra.mxu0 0
      %1141 = vmatprep.subr.bf16.mxu0 0
      %1142 = vmatpush1.bf16.msra.mxu0 0
      %1143 = vmatprep.subr.bf16.mxu0 0
      %1144 = vmatpush1.bf16.msra.mxu0 0
      %1145 = vmatprep.subr.bf16.mxu0 0
      %1146 = vmatpush1.bf16.msra.mxu0 0
      %1147 = vmatprep.subr.bf16.mxu0 0
      %1148 = vmatpush1.bf16.msra.mxu0 0
      %1149 = vmatprep.mubr.bf16.mxu0 0
      %1150 = vmatmul.mubr.bf16.gmra.mrb[0].mxu0 %v1065
      %v1151 = vpop.f32.mrb[0].mxu0
      %v1152 = vadd.f32 0.0, %v1151
      %v1153 = vpop.f32.mrb[0].mxu0
      %v1154 = vpop.f32.mrb[0].mxu0
      %v1155 = vpop.f32.mrb[0].mxu0
      %1156 = vdwg.mxu0
      %v1157 = vadd.f32 %v1047, %v1111
      %v1158 = vadd.f32 %v1048, %v1113
      %v1159 = vadd.f32 %v1049, %v1152
      %s1160 = scalar_lea.vmem %s2, 14
      %v1161 = vld [vmem:[%s1160] sm:$0x3]
      %1162 = vrot.lane.b32.xlu0 %v934, 110
      %v1163 = vpop.permute.xlu0 %1162
      %1164 = vrot.lane.b32.xlu0 %v935, 110
      %v1165 = vpop.permute.xlu0 %1164
      %1166 = vrot.lane.b32.xlu0 %v936, 110
      %v1167 = vpop.permute.xlu0 %1166
      %1168 = vrot.lane.b32.xlu0 %v937, 110
      %v1169 = vpop.permute.xlu0 %1168
      %vm1170 = vcmask 900096
      %v1171 = vsel %vm1170, %v1163, %v1165
      %v1172 = vsel %vm1170, %v1165, %v1167
      %v1173 = vsel %vm1170, %v1167, %v1169
      %v1175 = vsel %vm414, %v1161, 0
      %v1178 = vsel %vm418, %v1171, 0
      %v1181 = vsel %vm418, %v1172, 0
      %v1184 = vsel %vm418, %v1173, 0
      %1186 = vmatprep.subr.bf16.mxu0 %v1181
      %1187 = vmatpush1.bf16.msra.mxu0 %v1178
      %1188 = vmatprep.subr.bf16.mxu0 0
      %1189 = vmatpush1.bf16.msra.mxu0 0
      %1190 = vmatprep.subr.bf16.mxu0 0
      %1191 = vmatpush1.bf16.msra.mxu0 0
      %1192 = vmatprep.subr.bf16.mxu0 0
      %1193 = vmatpush1.bf16.msra.mxu0 0
      %1194 = vmatprep.subr.bf16.mxu0 0
      %1195 = vmatpush1.bf16.msra.mxu0 0
      %1196 = vmatprep.subr.bf16.mxu0 0
      %1197 = vmatpush1.bf16.msra.mxu0 0
      %1198 = vmatprep.subr.bf16.mxu0 0
      %1199 = vmatpush1.bf16.msra.mxu0 0
      %1200 = vmatprep.subr.bf16.mxu0 0
      %1201 = vmatpush1.bf16.msra.mxu0 0
      %1202 = vmatprep.subr.bf16.mxu0 0
      %1203 = vmatpush1.bf16.msra.mxu0 0
      %1204 = vmatprep.subr.bf16.mxu0 0
      %1205 = vmatpush1.bf16.msra.mxu0 0
      %1206 = vmatprep.subr.bf16.mxu0 0
      %1207 = vmatpush1.bf16.msra.mxu0 0
      %1208 = vmatprep.subr.bf16.mxu0 0
      %1209 = vmatpush1.bf16.msra.mxu0 0
      %1210 = vmatprep.subr.bf16.mxu0 0
      %1211 = vmatpush1.bf16.msra.mxu0 0
      %1212 = vmatprep.subr.bf16.mxu0 0
      %1213 = vmatpush1.bf16.msra.mxu0 0
      %1214 = vmatprep.subr.bf16.mxu0 0
      %1215 = vmatpush1.bf16.msra.mxu0 0
      %1216 = vmatprep.subr.bf16.mxu0 0
      %1217 = vmatpush1.bf16.msra.mxu0 0
      %1218 = vmatprep.mubr.bf16.mxu0 0
      %1219 = vmatmul.mubr.bf16.gmra.mrb[0].mxu0 %v1175
      %v1220 = vpop.f32.mrb[0].mxu0
      %v1221 = vadd.f32 0.0, %v1220
      %v1222 = vpop.f32.mrb[0].mxu0
      %v1223 = vadd.f32 0.0, %v1222
      %v1224 = vpop.f32.mrb[0].mxu0
      %v1225 = vpop.f32.mrb[0].mxu0
      %1226 = vdwg.mxu0
      %1227 = vmatprep.subr.bf16.mxu0 0
      %1228 = vmatpush1.bf16.msra.mxu0 %v1184
      %1229 = vmatprep.subr.bf16.mxu0 0
      %1230 = vmatpush1.bf16.msra.mxu0 0
      %1231 = vmatprep.subr.bf16.mxu0 0
      %1232 = vmatpush1.bf16.msra.mxu0 0
      %1233 = vmatprep.subr.bf16.mxu0 0
      %1234 = vmatpush1.bf16.msra.mxu0 0
      %1235 = vmatprep.subr.bf16.mxu0 0
      %1236 = vmatpush1.bf16.msra.mxu0 0
      %1237 = vmatprep.subr.bf16.mxu0 0
      %1238 = vmatpush1.bf16.msra.mxu0 0
      %1239 = vmatprep.subr.bf16.mxu0 0
      %1240 = vmatpush1.bf16.msra.mxu0 0
      %1241 = vmatprep.subr.bf16.mxu0 0
      %1242 = vmatpush1.bf16.msra.mxu0 0
      %1243 = vmatprep.subr.bf16.mxu0 0
      %1244 = vmatpush1.bf16.msra.mxu0 0
      %1245 = vmatprep.subr.bf16.mxu0 0
      %1246 = vmatpush1.bf16.msra.mxu0 0
      %1247 = vmatprep.subr.bf16.mxu0 0
      %1248 = vmatpush1.bf16.msra.mxu0 0
      %1249 = vmatprep.subr.bf16.mxu0 0
      %1250 = vmatpush1.bf16.msra.mxu0 0
      %1251 = vmatprep.subr.bf16.mxu0 0
      %1252 = vmatpush1.bf16.msra.mxu0 0
      %1253 = vmatprep.subr.bf16.mxu0 0
      %1254 = vmatpush1.bf16.msra.mxu0 0
      %1255 = vmatprep.subr.bf16.mxu0 0
      %1256 = vmatpush1.bf16.msra.mxu0 0
      %1257 = vmatprep.subr.bf16.mxu0 0
      %1258 = vmatpush1.bf16.msra.mxu0 0
      %1259 = vmatprep.mubr.bf16.mxu0 0
      %1260 = vmatmul.mubr.bf16.gmra.mrb[0].mxu0 %v1175
      %v1261 = vpop.f32.mrb[0].mxu0
      %v1262 = vadd.f32 0.0, %v1261
      %v1263 = vpop.f32.mrb[0].mxu0
      %v1264 = vpop.f32.mrb[0].mxu0
      %v1265 = vpop.f32.mrb[0].mxu0
      %1266 = vdwg.mxu0
      %v1267 = vadd.f32 %v1157, %v1221
      %v1268 = vadd.f32 %v1158, %v1223
      %v1269 = vadd.f32 %v1159, %v1262
      %s1270 = scalar_lea.vmem %s2, 16
      %v1271 = vld [vmem:[%s1270] sm:$0x3]
      %1272 = vrot.lane.b32.xlu0 %v934, 109
      %v1273 = vpop.permute.xlu0 %1272
      %1274 = vrot.lane.b32.xlu0 %v935, 109
      %v1275 = vpop.permute.xlu0 %1274
      %1276 = vrot.lane.b32.xlu0 %v936, 109
      %v1277 = vpop.permute.xlu0 %1276
      %1278 = vrot.lane.b32.xlu0 %v937, 109
      %v1279 = vpop.permute.xlu0 %1278
      %vm1280 = vcmask 891904
      %v1281 = vsel %vm1280, %v1273, %v1275
      %v1282 = vsel %vm1280, %v1275, %v1277
      %v1283 = vsel %vm1280, %v1277, %v1279
      %v1285 = vsel %vm414, %v1271, 0
      %v1288 = vsel %vm418, %v1281, 0
      %v1291 = vsel %vm418, %v1282, 0
      %v1294 = vsel %vm418, %v1283, 0
      %1296 = vmatprep.subr.bf16.mxu0 %v1291
      %1297 = vmatpush1.bf16.msra.mxu0 %v1288
      %1298 = vmatprep.subr.bf16.mxu0 0
      %1299 = vmatpush1.bf16.msra.mxu0 0
      %1300 = vmatprep.subr.bf16.mxu0 0
      %1301 = vmatpush1.bf16.msra.mxu0 0
      %1302 = vmatprep.subr.bf16.mxu0 0
      %1303 = vmatpush1.bf16.msra.mxu0 0
      %1304 = vmatprep.subr.bf16.mxu0 0
      %1305 = vmatpush1.bf16.msra.mxu0 0
      %1306 = vmatprep.subr.bf16.mxu0 0
      %1307 = vmatpush1.bf16.msra.mxu0 0
      %1308 = vmatprep.subr.bf16.mxu0 0
      %1309 = vmatpush1.bf16.msra.mxu0 0
      %1310 = vmatprep.subr.bf16.mxu0 0
      %1311 = vmatpush1.bf16.msra.mxu0 0
      %1312 = vmatprep.subr.bf16.mxu0 0
      %1313 = vmatpush1.bf16.msra.mxu0 0
      %1314 = vmatprep.subr.bf16.mxu0 0
      %1315 = vmatpush1.bf16.msra.mxu0 0
      %1316 = vmatprep.subr.bf16.mxu0 0
      %1317 = vmatpush1.bf16.msra.mxu0 0
      %1318 = vmatprep.subr.bf16.mxu0 0
      %1319 = vmatpush1.bf16.msra.mxu0 0
      %1320 = vmatprep.subr.bf16.mxu0 0
      %1321 = vmatpush1.bf16.msra.mxu0 0
      %1322 = vmatprep.subr.bf16.mxu0 0
      %1323 = vmatpush1.bf16.msra.mxu0 0
      %1324 = vmatprep.subr.bf16.mxu0 0
      %1325 = vmatpush1.bf16.msra.mxu0 0
      %1326 = vmatprep.subr.bf16.mxu0 0
      %1327 = vmatpush1.bf16.msra.mxu0 0
      %1328 = vmatprep.mubr.bf16.mxu0 0
      %1329 = vmatmul.mubr.bf16.gmra.mrb[0].mxu0 %v1285
      %v1330 = vpop.f32.mrb[0].mxu0
      %v1331 = vadd.f32 0.0, %v1330
      %v1332 = vpop.f32.mrb[0].mxu0
      %v1333 = vadd.f32 0.0, %v1332
      %v1334 = vpop.f32.mrb[0].mxu0
      %v1335 = vpop.f32.mrb[0].mxu0
      %1336 = vdwg.mxu0
      %1337 = vmatprep.subr.bf16.mxu0 0
      %1338 = vmatpush1.bf16.msra.mxu0 %v1294
      %1339 = vmatprep.subr.bf16.mxu0 0
      %1340 = vmatpush1.bf16.msra.mxu0 0
      %1341 = vmatprep.subr.bf16.mxu0 0
      %1342 = vmatpush1.bf16.msra.mxu0 0
      %1343 = vmatprep.subr.bf16.mxu0 0
      %1344 = vmatpush1.bf16.msra.mxu0 0
      %1345 = vmatprep.subr.bf16.mxu0 0
      %1346 = vmatpush1.bf16.msra.mxu0 0
      %1347 = vmatprep.subr.bf16.mxu0 0
      %1348 = vmatpush1.bf16.msra.mxu0 0
      %1349 = vmatprep.subr.bf16.mxu0 0
      %1350 = vmatpush1.bf16.msra.mxu0 0
      %1351 = vmatprep.subr.bf16.mxu0 0
      %1352 = vmatpush1.bf16.msra.mxu0 0
      %1353 = vmatprep.subr.bf16.mxu0 0
      %1354 = vmatpush1.bf16.msra.mxu0 0
      %1355 = vmatprep.subr.bf16.mxu0 0
      %1356 = vmatpush1.bf16.msra.mxu0 0
      %1357 = vmatprep.subr.bf16.mxu0 0
      %1358 = vmatpush1.bf16.msra.mxu0 0
      %1359 = vmatprep.subr.bf16.mxu0 0
      %1360 = vmatpush1.bf16.msra.mxu0 0
      %1361 = vmatprep.subr.bf16.mxu0 0
      %1362 = vmatpush1.bf16.msra.mxu0 0
      %1363 = vmatprep.subr.bf16.mxu0 0
      %1364 = vmatpush1.bf16.msra.mxu0 0
      %1365 = vmatprep.subr.bf16.mxu0 0
      %1366 = vmatpush1.bf16.msra.mxu0 0
      %1367 = vmatprep.subr.bf16.mxu0 0
      %1368 = vmatpush1.bf16.msra.mxu0 0
      %1369 = vmatprep.mubr.bf16.mxu0 0
      %1370 = vmatmul.mubr.bf16.gmra.mrb[0].mxu0 %v1285
      %v1371 = vpop.f32.mrb[0].mxu0
      %v1372 = vadd.f32 0.0, %v1371
      %v1373 = vpop.f32.mrb[0].mxu0
      %v1374 = vpop.f32.mrb[0].mxu0
      %v1375 = vpop.f32.mrb[0].mxu0
      %1376 = vdwg.mxu0
      %v1377 = vadd.f32 %v1267, %v1331
      %v1378 = vadd.f32 %v1268, %v1333
      %v1379 = vadd.f32 %v1269, %v1372
      %v1380 = vld [vmem:[%s5] sm:$0xf]
      %1382 = vset.pattern.permute.xlu0 0
      %1383 = vperm.xlu0 %1382, %v1380
      %v1384 = vpop.permute.xlu0 %1383
      %v1386 = vadd.f32 %v1377, %v1384
      %v1387 = vadd.f32 %v1378, %v1384
      %v1388 = vadd.f32 %v1379, %v1384
      %v1389 = vmax.f32 %v1386, 0.0
      %v1390 = vmax.f32 %v1387, 0.0
      %v1391 = vmax.f32 %v1388, 0.0
      %v1392 = vsel %vm371, 1, 0
      %v1393 = vlaneseq
      %v1394 = vshrl.u32 %v1393, 7
      %v1395 = vsub.s32 0, %v1394
      %v1396 = vrot.slane %v1392, %v1395
      %v1397 = vlaneseq
      %v1398 = vshrl.u32 %v1397, 7
      %v1399 = vsub.s32 1, %v1398
      %v1400 = vrot.slane %v1392, %v1399
      %v1401 = vlaneseq
      %v1402 = vshrl.u32 %v1401, 7
      %v1403 = vsub.s32 2, %v1402
      %v1404 = vrot.slane %v1392, %v1403
      %vm1405 = vcmp.eq.s32.totalorder %v1396, 1
      %vm1406 = vcmp.eq.s32.totalorder %v1400, 1
      %vm1407 = vcmp.eq.s32.totalorder %v1404, 1
      %v1408 = vsel %vm1405, %v1389, 0.0
      %v1409 = vsel %vm1406, %v1390, 0.0
      %v1410 = vsel %vm1407, %v1391, 0.0
      %v1411 = vpack.c.bf16 %v1408, %v1408
      %v1412 = vpack.c.bf16 %v1409, %v1409
      %v1413 = vpack.c.bf16 %v1410, %v1410
      %v1417 = vrot.slane %v1411, 6
      %v1418 = vrot.slane %v1412, 6
      %v1419 = vrot.slane %v1413, 6
      %1423 = vst [vmem:[#allocation2 + $0x8] sm:$0xc] %v1417
      %1424 = vst [vmem:[#allocation2 + $0x10] sm:$0xc] %v1418
      %1425 = vst [vmem:[#allocation2 + $0x18] sm:$0xc] %v1419
      %v1426 = vld [vmem:[%s3] sm:$0x3]
      %v1427 = vld [vmem:[#allocation2] sm:$0xf]
      %v1428 = vld [vmem:[#allocation2 + $0x8] sm:$0xf]
      %v1429 = vld [vmem:[#allocation2 + $0x10] sm:$0xf]
      %v1430 = vld [vmem:[#allocation2 + $0x18] sm:$0xf]
      %s1431 = scalar_lea.vmem %s3, 2
      %v1432 = vld [vmem:[%s1431] sm:$0x3]
      %1437 = vrot.lane.b32.xlu0 %v1427, 18
      %v1438 = vpop.permute.xlu0 %1437
      %1439 = vrot.lane.b32.xlu0 %v1428, 18
      %v1440 = vpop.permute.xlu0 %1439
      %1441 = vrot.lane.b32.xlu0 %v1429, 18
      %v1442 = vpop.permute.xlu0 %1441
      %1443 = vrot.lane.b32.xlu0 %v1430, 18
      %v1444 = vpop.permute.xlu0 %1443
      %v1445 = vsel %vm410, %v1438, %v1440
      %v1446 = vsel %vm410, %v1440, %v1442
      %v1447 = vsel %vm410, %v1442, %v1444
      %vm1448 = vcmask 64512
      %v1450 = vsel %vm1448, %v1432, 0
      %vm1452 = vcmask 1043456
      %v1454 = vsel %vm1452, %v1445, 0
      %v1457 = vsel %vm1452, %v1446, 0
      %v1460 = vsel %vm1452, %v1447, 0
      %1462 = vmatprep.subr.bf16.mxu0 %v1457
      %1463 = vmatpush1.bf16.msra.mxu0 %v1454
      %1464 = vmatprep.subr.bf16.mxu0 0
      %1465 = vmatpush1.bf16.msra.mxu0 0
      %1466 = vmatprep.subr.bf16.mxu0 0
      %1467 = vmatpush1.bf16.msra.mxu0 0
      %1468 = vmatprep.subr.bf16.mxu0 0
      %1469 = vmatpush1.bf16.msra.mxu0 0
      %1470 = vmatprep.subr.bf16.mxu0 0
      %1471 = vmatpush1.bf16.msra.mxu0 0
      %1472 = vmatprep.subr.bf16.mxu0 0
      %1473 = vmatpush1.bf16.msra.mxu0 0
      %1474 = vmatprep.subr.bf16.mxu0 0
      %1475 = vmatpush1.bf16.msra.mxu0 0
      %1476 = vmatprep.subr.bf16.mxu0 0
      %1477 = vmatpush1.bf16.msra.mxu0 0
      %1478 = vmatprep.subr.bf16.mxu0 0
      %1479 = vmatpush1.bf16.msra.mxu0 0
      %1480 = vmatprep.subr.bf16.mxu0 0
      %1481 = vmatpush1.bf16.msra.mxu0 0
      %1482 = vmatprep.subr.bf16.mxu0 0
      %1483 = vmatpush1.bf16.msra.mxu0 0
      %1484 = vmatprep.subr.bf16.mxu0 0
      %1485 = vmatpush1.bf16.msra.mxu0 0
      %1486 = vmatprep.subr.bf16.mxu0 0
      %1487 = vmatpush1.bf16.msra.mxu0 0
      %1488 = vmatprep.subr.bf16.mxu0 0
      %1489 = vmatpush1.bf16.msra.mxu0 0
      %1490 = vmatprep.subr.bf16.mxu0 0
      %1491 = vmatpush1.bf16.msra.mxu0 0
      %1492 = vmatprep.subr.bf16.mxu0 0
      %1493 = vmatpush1.bf16.msra.mxu0 0
      %1494 = vmatprep.mubr.bf16.mxu0 0
      %1495 = vmatmul.mubr.bf16.gmra.mrb[0].mxu0 %v1450
      %v1496 = vpop.f32.mrb[0].mxu0
      %v1497 = vadd.f32 0.0, %v1496
      %v1498 = vpop.f32.mrb[0].mxu0
      %v1499 = vadd.f32 0.0, %v1498
      %v1500 = vpop.f32.mrb[0].mxu0
      %v1501 = vpop.f32.mrb[0].mxu0
      %1502 = vdwg.mxu0
      %1503 = vmatprep.subr.bf16.mxu0 0
      %1504 = vmatpush1.bf16.msra.mxu0 %v1460
      %1505 = vmatprep.subr.bf16.mxu0 0
      %1506 = vmatpush1.bf16.msra.mxu0 0
      %1507 = vmatprep.subr.bf16.mxu0 0
      %1508 = vmatpush1.bf16.msra.mxu0 0
      %1509 = vmatprep.subr.bf16.mxu0 0
      %1510 = vmatpush1.bf16.msra.mxu0 0
      %1511 = vmatprep.subr.bf16.mxu0 0
      %1512 = vmatpush1.bf16.msra.mxu0 0
      %1513 = vmatprep.subr.bf16.mxu0 0
      %1514 = vmatpush1.bf16.msra.mxu0 0
      %1515 = vmatprep.subr.bf16.mxu0 0
      %1516 = vmatpush1.bf16.msra.mxu0 0
      %1517 = vmatprep.subr.bf16.mxu0 0
      %1518 = vmatpush1.bf16.msra.mxu0 0
      %1519 = vmatprep.subr.bf16.mxu0 0
      %1520 = vmatpush1.bf16.msra.mxu0 0
      %1521 = vmatprep.subr.bf16.mxu0 0
      %1522 = vmatpush1.bf16.msra.mxu0 0
      %1523 = vmatprep.subr.bf16.mxu0 0
      %1524 = vmatpush1.bf16.msra.mxu0 0
      %1525 = vmatprep.subr.bf16.mxu0 0
      %1526 = vmatpush1.bf16.msra.mxu0 0
      %1527 = vmatprep.subr.bf16.mxu0 0
      %1528 = vmatpush1.bf16.msra.mxu0 0
      %1529 = vmatprep.subr.bf16.mxu0 0
      %1530 = vmatpush1.bf16.msra.mxu0 0
      %1531 = vmatprep.subr.bf16.mxu0 0
      %1532 = vmatpush1.bf16.msra.mxu0 0
      %1533 = vmatprep.subr.bf16.mxu0 0
      %1534 = vmatpush1.bf16.msra.mxu0 0
      %1535 = vmatprep.mubr.bf16.mxu0 0
      %1536 = vmatmul.mubr.bf16.gmra.mrb[0].mxu0 %v1450
      %v1537 = vpop.f32.mrb[0].mxu0
      %v1538 = vadd.f32 0.0, %v1537
      %v1539 = vpop.f32.mrb[0].mxu0
      %v1540 = vpop.f32.mrb[0].mxu0
      %v1541 = vpop.f32.mrb[0].mxu0
      %1542 = vdwg.mxu0
      %1543 = vrot.lane.b32.xlu0 %v1427, 19
      %v1544 = vpop.permute.xlu0 %1543
      %1545 = vrot.lane.b32.xlu0 %v1428, 19
      %v1546 = vpop.permute.xlu0 %1545
      %1547 = vrot.lane.b32.xlu0 %v1429, 19
      %v1548 = vpop.permute.xlu0 %1547
      %1549 = vrot.lane.b32.xlu0 %v1430, 19
      %v1550 = vpop.permute.xlu0 %1549
      %v1551 = vsel %vm517, %v1544, %v1546
      %v1552 = vsel %vm517, %v1546, %v1548
      %v1553 = vsel %vm517, %v1548, %v1550
      %v1555 = vsel %vm1448, %v1426, 0
      %v1558 = vsel %vm1452, %v1551, 0
      %v1561 = vsel %vm1452, %v1552, 0
      %v1564 = vsel %vm1452, %v1553, 0
      %1566 = vmatprep.subr.bf16.mxu0 %v1561
      %1567 = vmatpush1.bf16.msra.mxu0 %v1558
      %1568 = vmatprep.subr.bf16.mxu0 0
      %1569 = vmatpush1.bf16.msra.mxu0 0
      %1570 = vmatprep.subr.bf16.mxu0 0
      %1571 = vmatpush1.bf16.msra.mxu0 0
      %1572 = vmatprep.subr.bf16.mxu0 0
      %1573 = vmatpush1.bf16.msra.mxu0 0
      %1574 = vmatprep.subr.bf16.mxu0 0
      %1575 = vmatpush1.bf16.msra.mxu0 0
      %1576 = vmatprep.subr.bf16.mxu0 0
      %1577 = vmatpush1.bf16.msra.mxu0 0
      %1578 = vmatprep.subr.bf16.mxu0 0
      %1579 = vmatpush1.bf16.msra.mxu0 0
      %1580 = vmatprep.subr.bf16.mxu0 0
      %1581 = vmatpush1.bf16.msra.mxu0 0
      %1582 = vmatprep.subr.bf16.mxu0 0
      %1583 = vmatpush1.bf16.msra.mxu0 0
      %1584 = vmatprep.subr.bf16.mxu0 0
      %1585 = vmatpush1.bf16.msra.mxu0 0
      %1586 = vmatprep.subr.bf16.mxu0 0
      %1587 = vmatpush1.bf16.msra.mxu0 0
      %1588 = vmatprep.subr.bf16.mxu0 0
      %1589 = vmatpush1.bf16.msra.mxu0 0
      %1590 = vmatprep.subr.bf16.mxu0 0
      %1591 = vmatpush1.bf16.msra.mxu0 0
      %1592 = vmatprep.subr.bf16.mxu0 0
      %1593 = vmatpush1.bf16.msra.mxu0 0
      %1594 = vmatprep.subr.bf16.mxu0 0
      %1595 = vmatpush1.bf16.msra.mxu0 0
      %1596 = vmatprep.subr.bf16.mxu0 0
      %1597 = vmatpush1.bf16.msra.mxu0 0
      %1598 = vmatprep.mubr.bf16.mxu0 0
      %1599 = vmatmul.mubr.bf16.gmra.mrb[0].mxu0 %v1555
      %v1600 = vpop.f32.mrb[0].mxu0
      %v1601 = vadd.f32 %v1497, %v1600
      %v1602 = vpop.f32.mrb[0].mxu0
      %v1603 = vadd.f32 %v1499, %v1602
      %v1604 = vpop.f32.mrb[0].mxu0
      %v1605 = vpop.f32.mrb[0].mxu0
      %1606 = vdwg.mxu0
      %1607 = vmatprep.subr.bf16.mxu0 0
      %1608 = vmatpush1.bf16.msra.mxu0 %v1564
      %1609 = vmatprep.subr.bf16.mxu0 0
      %1610 = vmatpush1.bf16.msra.mxu0 0
      %1611 = vmatprep.subr.bf16.mxu0 0
      %1612 = vmatpush1.bf16.msra.mxu0 0
      %1613 = vmatprep.subr.bf16.mxu0 0
      %1614 = vmatpush1.bf16.msra.mxu0 0
      %1615 = vmatprep.subr.bf16.mxu0 0
      %1616 = vmatpush1.bf16.msra.mxu0 0
      %1617 = vmatprep.subr.bf16.mxu0 0
      %1618 = vmatpush1.bf16.msra.mxu0 0
      %1619 = vmatprep.subr.bf16.mxu0 0
      %1620 = vmatpush1.bf16.msra.mxu0 0
      %1621 = vmatprep.subr.bf16.mxu0 0
      %1622 = vmatpush1.bf16.msra.mxu0 0
      %1623 = vmatprep.subr.bf16.mxu0 0
      %1624 = vmatpush1.bf16.msra.mxu0 0
      %1625 = vmatprep.subr.bf16.mxu0 0
      %1626 = vmatpush1.bf16.msra.mxu0 0
      %1627 = vmatprep.subr.bf16.mxu0 0
      %1628 = vmatpush1.bf16.msra.mxu0 0
      %1629 = vmatprep.subr.bf16.mxu0 0
      %1630 = vmatpush1.bf16.msra.mxu0 0
      %1631 = vmatprep.subr.bf16.mxu0 0
      %1632 = vmatpush1.bf16.msra.mxu0 0
      %1633 = vmatprep.subr.bf16.mxu0 0
      %1634 = vmatpush1.bf16.msra.mxu0 0
      %1635 = vmatprep.subr.bf16.mxu0 0
      %1636 = vmatpush1.bf16.msra.mxu0 0
      %1637 = vmatprep.subr.bf16.mxu0 0
      %1638 = vmatpush1.bf16.msra.mxu0 0
      %1639 = vmatprep.mubr.bf16.mxu0 0
      %1640 = vmatmul.mubr.bf16.gmra.mrb[0].mxu0 %v1555
      %v1641 = vpop.f32.mrb[0].mxu0
      %v1642 = vadd.f32 %v1538, %v1641
      %v1643 = vpop.f32.mrb[0].mxu0
      %v1644 = vpop.f32.mrb[0].mxu0
      %v1645 = vpop.f32.mrb[0].mxu0
      %1646 = vdwg.mxu0
      %s1647 = scalar_lea.vmem %s3, 4
      %v1648 = vld [vmem:[%s1647] sm:$0x3]
      %1649 = vrot.lane.b32.xlu0 %v1427, 17
      %v1650 = vpop.permute.xlu0 %1649
      %1651 = vrot.lane.b32.xlu0 %v1428, 17
      %v1652 = vpop.permute.xlu0 %1651
      %1653 = vrot.lane.b32.xlu0 %v1429, 17
      %v1654 = vpop.permute.xlu0 %1653
      %1655 = vrot.lane.b32.xlu0 %v1430, 17
      %v1656 = vpop.permute.xlu0 %1655
      %v1657 = vsel %vm624, %v1650, %v1652
      %v1658 = vsel %vm624, %v1652, %v1654
      %v1659 = vsel %vm624, %v1654, %v1656
      %v1661 = vsel %vm1448, %v1648, 0
      %v1664 = vsel %vm1452, %v1657, 0
      %v1667 = vsel %vm1452, %v1658, 0
      %v1670 = vsel %vm1452, %v1659, 0
      %1672 = vmatprep.subr.bf16.mxu0 %v1667
      %1673 = vmatpush1.bf16.msra.mxu0 %v1664
      %1674 = vmatprep.subr.bf16.mxu0 0
      %1675 = vmatpush1.bf16.msra.mxu0 0
      %1676 = vmatprep.subr.bf16.mxu0 0
      %1677 = vmatpush1.bf16.msra.mxu0 0
      %1678 = vmatprep.subr.bf16.mxu0 0
      %1679 = vmatpush1.bf16.msra.mxu0 0
      %1680 = vmatprep.subr.bf16.mxu0 0
      %1681 = vmatpush1.bf16.msra.mxu0 0
      %1682 = vmatprep.subr.bf16.mxu0 0
      %1683 = vmatpush1.bf16.msra.mxu0 0
      %1684 = vmatprep.subr.bf16.mxu0 0
      %1685 = vmatpush1.bf16.msra.mxu0 0
      %1686 = vmatprep.subr.bf16.mxu0 0
      %1687 = vmatpush1.bf16.msra.mxu0 0
      %1688 = vmatprep.subr.bf16.mxu0 0
      %1689 = vmatpush1.bf16.msra.mxu0 0
      %1690 = vmatprep.subr.bf16.mxu0 0
      %1691 = vmatpush1.bf16.msra.mxu0 0
      %1692 = vmatprep.subr.bf16.mxu0 0
      %1693 = vmatpush1.bf16.msra.mxu0 0
      %1694 = vmatprep.subr.bf16.mxu0 0
      %1695 = vmatpush1.bf16.msra.mxu0 0
      %1696 = vmatprep.subr.bf16.mxu0 0
      %1697 = vmatpush1.bf16.msra.mxu0 0
      %1698 = vmatprep.subr.bf16.mxu0 0
      %1699 = vmatpush1.bf16.msra.mxu0 0
      %1700 = vmatprep.subr.bf16.mxu0 0
      %1701 = vmatpush1.bf16.msra.mxu0 0
      %1702 = vmatprep.subr.bf16.mxu0 0
      %1703 = vmatpush1.bf16.msra.mxu0 0
      %1704 = vmatprep.mubr.bf16.mxu0 0
      %1705 = vmatmul.mubr.bf16.gmra.mrb[0].mxu0 %v1661
      %v1706 = vpop.f32.mrb[0].mxu0
      %v1707 = vadd.f32 0.0, %v1706
      %v1708 = vpop.f32.mrb[0].mxu0
      %v1709 = vadd.f32 0.0, %v1708
      %v1710 = vpop.f32.mrb[0].mxu0
      %v1711 = vpop.f32.mrb[0].mxu0
      %1712 = vdwg.mxu0
      %1713 = vmatprep.subr.bf16.mxu0 0
      %1714 = vmatpush1.bf16.msra.mxu0 %v1670
      %1715 = vmatprep.subr.bf16.mxu0 0
      %1716 = vmatpush1.bf16.msra.mxu0 0
      %1717 = vmatprep.subr.bf16.mxu0 0
      %1718 = vmatpush1.bf16.msra.mxu0 0
      %1719 = vmatprep.subr.bf16.mxu0 0
      %1720 = vmatpush1.bf16.msra.mxu0 0
      %1721 = vmatprep.subr.bf16.mxu0 0
      %1722 = vmatpush1.bf16.msra.mxu0 0
      %1723 = vmatprep.subr.bf16.mxu0 0
      %1724 = vmatpush1.bf16.msra.mxu0 0
      %1725 = vmatprep.subr.bf16.mxu0 0
      %1726 = vmatpush1.bf16.msra.mxu0 0
      %1727 = vmatprep.subr.bf16.mxu0 0
      %1728 = vmatpush1.bf16.msra.mxu0 0
      %1729 = vmatprep.subr.bf16.mxu0 0
      %1730 = vmatpush1.bf16.msra.mxu0 0
      %1731 = vmatprep.subr.bf16.mxu0 0
      %1732 = vmatpush1.bf16.msra.mxu0 0
      %1733 = vmatprep.subr.bf16.mxu0 0
      %1734 = vmatpush1.bf16.msra.mxu0 0
      %1735 = vmatprep.subr.bf16.mxu0 0
      %1736 = vmatpush1.bf16.msra.mxu0 0
      %1737 = vmatprep.subr.bf16.mxu0 0
      %1738 = vmatpush1.bf16.msra.mxu0 0
      %1739 = vmatprep.subr.bf16.mxu0 0
      %1740 = vmatpush1.bf16.msra.mxu0 0
      %1741 = vmatprep.subr.bf16.mxu0 0
      %1742 = vmatpush1.bf16.msra.mxu0 0
      %1743 = vmatprep.subr.bf16.mxu0 0
      %1744 = vmatpush1.bf16.msra.mxu0 0
      %1745 = vmatprep.mubr.bf16.mxu0 0
      %1746 = vmatmul.mubr.bf16.gmra.mrb[0].mxu0 %v1661
      %v1747 = vpop.f32.mrb[0].mxu0
      %v1748 = vadd.f32 0.0, %v1747
      %v1749 = vpop.f32.mrb[0].mxu0
      %v1750 = vpop.f32.mrb[0].mxu0
      %v1751 = vpop.f32.mrb[0].mxu0
      %1752 = vdwg.mxu0
      %v1753 = vadd.f32 %v1601, %v1707
      %v1754 = vadd.f32 %v1603, %v1709
      %v1755 = vadd.f32 %v1642, %v1748
      %s1756 = scalar_lea.vmem %s3, 6
      %v1757 = vld [vmem:[%s1756] sm:$0x3]
      %1758 = vrot.lane.b32.xlu0 %v1427, 1
      %v1759 = vpop.permute.xlu0 %1758
      %1760 = vrot.lane.b32.xlu0 %v1428, 1
      %v1761 = vpop.permute.xlu0 %1760
      %1762 = vrot.lane.b32.xlu0 %v1429, 1
      %v1763 = vpop.permute.xlu0 %1762
      %1764 = vrot.lane.b32.xlu0 %v1430, 1
      %v1765 = vpop.permute.xlu0 %1764
      %v1766 = vsel %vm734, %v1759, %v1761
      %v1767 = vsel %vm734, %v1761, %v1763
      %v1768 = vsel %vm734, %v1763, %v1765
      %v1770 = vsel %vm1448, %v1757, 0
      %v1773 = vsel %vm1452, %v1766, 0
      %v1776 = vsel %vm1452, %v1767, 0
      %v1779 = vsel %vm1452, %v1768, 0
      %1781 = vmatprep.subr.bf16.mxu0 %v1776
      %1782 = vmatpush1.bf16.msra.mxu0 %v1773
      %1783 = vmatprep.subr.bf16.mxu0 0
      %1784 = vmatpush1.bf16.msra.mxu0 0
      %1785 = vmatprep.subr.bf16.mxu0 0
      %1786 = vmatpush1.bf16.msra.mxu0 0
      %1787 = vmatprep.subr.bf16.mxu0 0
      %1788 = vmatpush1.bf16.msra.mxu0 0
      %1789 = vmatprep.subr.bf16.mxu0 0
      %1790 = vmatpush1.bf16.msra.mxu0 0
      %1791 = vmatprep.subr.bf16.mxu0 0
      %1792 = vmatpush1.bf16.msra.mxu0 0
      %1793 = vmatprep.subr.bf16.mxu0 0
      %1794 = vmatpush1.bf16.msra.mxu0 0
      %1795 = vmatprep.subr.bf16.mxu0 0
      %1796 = vmatpush1.bf16.msra.mxu0 0
      %1797 = vmatprep.subr.bf16.mxu0 0
      %1798 = vmatpush1.bf16.msra.mxu0 0
      %1799 = vmatprep.subr.bf16.mxu0 0
      %1800 = vmatpush1.bf16.msra.mxu0 0
      %1801 = vmatprep.subr.bf16.mxu0 0
      %1802 = vmatpush1.bf16.msra.mxu0 0
      %1803 = vmatprep.subr.bf16.mxu0 0
      %1804 = vmatpush1.bf16.msra.mxu0 0
      %1805 = vmatprep.subr.bf16.mxu0 0
      %1806 = vmatpush1.bf16.msra.mxu0 0
      %1807 = vmatprep.subr.bf16.mxu0 0
      %1808 = vmatpush1.bf16.msra.mxu0 0
      %1809 = vmatprep.subr.bf16.mxu0 0
      %1810 = vmatpush1.bf16.msra.mxu0 0
      %1811 = vmatprep.subr.bf16.mxu0 0
      %1812 = vmatpush1.bf16.msra.mxu0 0
      %1813 = vmatprep.mubr.bf16.mxu0 0
      %1814 = vmatmul.mubr.bf16.gmra.mrb[0].mxu0 %v1770
      %v1815 = vpop.f32.mrb[0].mxu0
      %v1816 = vadd.f32 0.0, %v1815
      %v1817 = vpop.f32.mrb[0].mxu0
      %v1818 = vadd.f32 0.0, %v1817
      %v1819 = vpop.f32.mrb[0].mxu0
      %v1820 = vpop.f32.mrb[0].mxu0
      %1821 = vdwg.mxu0
      %1822 = vmatprep.subr.bf16.mxu0 0
      %1823 = vmatpush1.bf16.msra.mxu0 %v1779
      %1824 = vmatprep.subr.bf16.mxu0 0
      %1825 = vmatpush1.bf16.msra.mxu0 0
      %1826 = vmatprep.subr.bf16.mxu0 0
      %1827 = vmatpush1.bf16.msra.mxu0 0
      %1828 = vmatprep.subr.bf16.mxu0 0
      %1829 = vmatpush1.bf16.msra.mxu0 0
      %1830 = vmatprep.subr.bf16.mxu0 0
      %1831 = vmatpush1.bf16.msra.mxu0 0
      %1832 = vmatprep.subr.bf16.mxu0 0
      %1833 = vmatpush1.bf16.msra.mxu0 0
      %1834 = vmatprep.subr.bf16.mxu0 0
      %1835 = vmatpush1.bf16.msra.mxu0 0
      %1836 = vmatprep.subr.bf16.mxu0 0
      %1837 = vmatpush1.bf16.msra.mxu0 0
      %1838 = vmatprep.subr.bf16.mxu0 0
      %1839 = vmatpush1.bf16.msra.mxu0 0
      %1840 = vmatprep.subr.bf16.mxu0 0
      %1841 = vmatpush1.bf16.msra.mxu0 0
      %1842 = vmatprep.subr.bf16.mxu0 0
      %1843 = vmatpush1.bf16.msra.mxu0 0
      %1844 = vmatprep.subr.bf16.mxu0 0
      %1845 = vmatpush1.bf16.msra.mxu0 0
      %1846 = vmatprep.subr.bf16.mxu0 0
      %1847 = vmatpush1.bf16.msra.mxu0 0
      %1848 = vmatprep.subr.bf16.mxu0 0
      %1849 = vmatpush1.bf16.msra.mxu0 0
      %1850 = vmatprep.subr.bf16.mxu0 0
      %1851 = vmatpush1.bf16.msra.mxu0 0
      %1852 = vmatprep.subr.bf16.mxu0 0
      %1853 = vmatpush1.bf16.msra.mxu0 0
      %1854 = vmatprep.mubr.bf16.mxu0 0
      %1855 = vmatmul.mubr.bf16.gmra.mrb[0].mxu0 %v1770
      %v1856 = vpop.f32.mrb[0].mxu0
      %v1857 = vadd.f32 0.0, %v1856
      %v1858 = vpop.f32.mrb[0].mxu0
      %v1859 = vpop.f32.mrb[0].mxu0
      %v1860 = vpop.f32.mrb[0].mxu0
      %1861 = vdwg.mxu0
      %v1862 = vadd.f32 %v1753, %v1816
      %v1863 = vadd.f32 %v1754, %v1818
      %v1864 = vadd.f32 %v1755, %v1857
      %s1865 = scalar_lea.vmem %s3, 8
      %v1866 = vld [vmem:[%s1865] sm:$0x3]
      %v1868 = vsel %vm1448, %v1866, 0
      %v1871 = vsel %vm1452, %v1428, 0
      %v1874 = vsel %vm1452, %v1429, 0
      %v1877 = vsel %vm1452, %v1430, 0
      %1879 = vmatprep.subr.bf16.mxu0 %v1874
      %1880 = vmatpush1.bf16.msra.mxu0 %v1871
      %1881 = vmatprep.subr.bf16.mxu0 0
      %1882 = vmatpush1.bf16.msra.mxu0 0
      %1883 = vmatprep.subr.bf16.mxu0 0
      %1884 = vmatpush1.bf16.msra.mxu0 0
      %1885 = vmatprep.subr.bf16.mxu0 0
      %1886 = vmatpush1.bf16.msra.mxu0 0
      %1887 = vmatprep.subr.bf16.mxu0 0
      %1888 = vmatpush1.bf16.msra.mxu0 0
      %1889 = vmatprep.subr.bf16.mxu0 0
      %1890 = vmatpush1.bf16.msra.mxu0 0
      %1891 = vmatprep.subr.bf16.mxu0 0
      %1892 = vmatpush1.bf16.msra.mxu0 0
      %1893 = vmatprep.subr.bf16.mxu0 0
      %1894 = vmatpush1.bf16.msra.mxu0 0
      %1895 = vmatprep.subr.bf16.mxu0 0
      %1896 = vmatpush1.bf16.msra.mxu0 0
      %1897 = vmatprep.subr.bf16.mxu0 0
      %1898 = vmatpush1.bf16.msra.mxu0 0
      %1899 = vmatprep.subr.bf16.mxu0 0
      %1900 = vmatpush1.bf16.msra.mxu0 0
      %1901 = vmatprep.subr.bf16.mxu0 0
      %1902 = vmatpush1.bf16.msra.mxu0 0
      %1903 = vmatprep.subr.bf16.mxu0 0
      %1904 = vmatpush1.bf16.msra.mxu0 0
      %1905 = vmatprep.subr.bf16.mxu0 0
      %1906 = vmatpush1.bf16.msra.mxu0 0
      %1907 = vmatprep.subr.bf16.mxu0 0
      %1908 = vmatpush1.bf16.msra.mxu0 0
      %1909 = vmatprep.subr.bf16.mxu0 0
      %1910 = vmatpush1.bf16.msra.mxu0 0
      %1911 = vmatprep.mubr.bf16.mxu0 0
      %1912 = vmatmul.mubr.bf16.gmra.mrb[0].mxu0 %v1868
      %v1913 = vpop.f32.mrb[0].mxu0
      %v1914 = vadd.f32 0.0, %v1913
      %v1915 = vpop.f32.mrb[0].mxu0
      %v1916 = vadd.f32 0.0, %v1915
      %v1917 = vpop.f32.mrb[0].mxu0
      %v1918 = vpop.f32.mrb[0].mxu0
      %1919 = vdwg.mxu0
      %1920 = vmatprep.subr.bf16.mxu0 0
      %1921 = vmatpush1.bf16.msra.mxu0 %v1877
      %1922 = vmatprep.subr.bf16.mxu0 0
      %1923 = vmatpush1.bf16.msra.mxu0 0
      %1924 = vmatprep.subr.bf16.mxu0 0
      %1925 = vmatpush1.bf16.msra.mxu0 0
      %1926 = vmatprep.subr.bf16.mxu0 0
      %1927 = vmatpush1.bf16.msra.mxu0 0
      %1928 = vmatprep.subr.bf16.mxu0 0
      %1929 = vmatpush1.bf16.msra.mxu0 0
      %1930 = vmatprep.subr.bf16.mxu0 0
      %1931 = vmatpush1.bf16.msra.mxu0 0
      %1932 = vmatprep.subr.bf16.mxu0 0
      %1933 = vmatpush1.bf16.msra.mxu0 0
      %1934 = vmatprep.subr.bf16.mxu0 0
      %1935 = vmatpush1.bf16.msra.mxu0 0
      %1936 = vmatprep.subr.bf16.mxu0 0
      %1937 = vmatpush1.bf16.msra.mxu0 0
      %1938 = vmatprep.subr.bf16.mxu0 0
      %1939 = vmatpush1.bf16.msra.mxu0 0
      %1940 = vmatprep.subr.bf16.mxu0 0
      %1941 = vmatpush1.bf16.msra.mxu0 0
      %1942 = vmatprep.subr.bf16.mxu0 0
      %1943 = vmatpush1.bf16.msra.mxu0 0
      %1944 = vmatprep.subr.bf16.mxu0 0
      %1945 = vmatpush1.bf16.msra.mxu0 0
      %1946 = vmatprep.subr.bf16.mxu0 0
      %1947 = vmatpush1.bf16.msra.mxu0 0
      %1948 = vmatprep.subr.bf16.mxu0 0
      %1949 = vmatpush1.bf16.msra.mxu0 0
      %1950 = vmatprep.subr.bf16.mxu0 0
      %1951 = vmatpush1.bf16.msra.mxu0 0
      %1952 = vmatprep.mubr.bf16.mxu0 0
      %1953 = vmatmul.mubr.bf16.gmra.mrb[0].mxu0 %v1868
      %v1954 = vpop.f32.mrb[0].mxu0
      %v1955 = vadd.f32 0.0, %v1954
      %v1956 = vpop.f32.mrb[0].mxu0
      %v1957 = vpop.f32.mrb[0].mxu0
      %v1958 = vpop.f32.mrb[0].mxu0
      %1959 = vdwg.mxu0
      %v1960 = vadd.f32 %v1862, %v1914
      %v1961 = vadd.f32 %v1863, %v1916
      %v1962 = vadd.f32 %v1864, %v1955
      %s1963 = scalar_lea.vmem %s3, 10
      %v1964 = vld [vmem:[%s1963] sm:$0x3]
      %v1965 = vld [vmem:[#allocation2 + $0x8] sm:$0xf]
      %v1966 = vld [vmem:[#allocation2 + $0x10] sm:$0xf]
      %v1967 = vld [vmem:[#allocation2 + $0x18] sm:$0xf]
      %v1968 = vld [vmem:[#allocation2 + $0x20] sm:$0xf]
      %1973 = vrot.lane.b32.xlu0 %v1965, 127
      %v1974 = vpop.permute.xlu0 %1973
      %1975 = vrot.lane.b32.xlu0 %v1966, 127
      %v1976 = vpop.permute.xlu0 %1975
      %1977 = vrot.lane.b32.xlu0 %v1967, 127
      %v1978 = vpop.permute.xlu0 %1977
      %1979 = vrot.lane.b32.xlu0 %v1968, 127
      %v1980 = vpop.permute.xlu0 %1979
      %v1981 = vsel %vm950, %v1974, %v1976
      %v1982 = vsel %vm950, %v1976, %v1978
      %v1983 = vsel %vm950, %v1978, %v1980
      %v1985 = vsel %vm1448, %v1964, 0
      %v1988 = vsel %vm1452, %v1981, 0
      %v1991 = vsel %vm1452, %v1982, 0
      %v1994 = vsel %vm1452, %v1983, 0
      %1996 = vmatprep.subr.bf16.mxu0 %v1991
      %1997 = vmatpush1.bf16.msra.mxu0 %v1988
      %1998 = vmatprep.subr.bf16.mxu0 0
      %1999 = vmatpush1.bf16.msra.mxu0 0
      %2000 = vmatprep.subr.bf16.mxu0 0
      %2001 = vmatpush1.bf16.msra.mxu0 0
      %2002 = vmatprep.subr.bf16.mxu0 0
      %2003 = vmatpush1.bf16.msra.mxu0 0
      %2004 = vmatprep.subr.bf16.mxu0 0
      %2005 = vmatpush1.bf16.msra.mxu0 0
      %2006 = vmatprep.subr.bf16.mxu0 0
      %2007 = vmatpush1.bf16.msra.mxu0 0
      %2008 = vmatprep.subr.bf16.mxu0 0
      %2009 = vmatpush1.bf16.msra.mxu0 0
      %2010 = vmatprep.subr.bf16.mxu0 0
      %2011 = vmatpush1.bf16.msra.mxu0 0
      %2012 = vmatprep.subr.bf16.mxu0 0
      %2013 = vmatpush1.bf16.msra.mxu0 0
      %2014 = vmatprep.subr.bf16.mxu0 0
      %2015 = vmatpush1.bf16.msra.mxu0 0
      %2016 = vmatprep.subr.bf16.mxu0 0
      %2017 = vmatpush1.bf16.msra.mxu0 0
      %2018 = vmatprep.subr.bf16.mxu0 0
      %2019 = vmatpush1.bf16.msra.mxu0 0
      %2020 = vmatprep.subr.bf16.mxu0 0
      %2021 = vmatpush1.bf16.msra.mxu0 0
      %2022 = vmatprep.subr.bf16.mxu0 0
      %2023 = vmatpush1.bf16.msra.mxu0 0
      %2024 = vmatprep.subr.bf16.mxu0 0
      %2025 = vmatpush1.bf16.msra.mxu0 0
      %2026 = vmatprep.subr.bf16.mxu0 0
      %2027 = vmatpush1.bf16.msra.mxu0 0
      %2028 = vmatprep.mubr.bf16.mxu0 0
      %2029 = vmatmul.mubr.bf16.gmra.mrb[0].mxu0 %v1985
      %v2030 = vpop.f32.mrb[0].mxu0
      %v2031 = vadd.f32 0.0, %v2030
      %v2032 = vpop.f32.mrb[0].mxu0
      %v2033 = vadd.f32 0.0, %v2032
      %v2034 = vpop.f32.mrb[0].mxu0
      %v2035 = vpop.f32.mrb[0].mxu0
      %2036 = vdwg.mxu0
      %2037 = vmatprep.subr.bf16.mxu0 0
      %2038 = vmatpush1.bf16.msra.mxu0 %v1994
      %2039 = vmatprep.subr.bf16.mxu0 0
      %2040 = vmatpush1.bf16.msra.mxu0 0
      %2041 = vmatprep.subr.bf16.mxu0 0
      %2042 = vmatpush1.bf16.msra.mxu0 0
      %2043 = vmatprep.subr.bf16.mxu0 0
      %2044 = vmatpush1.bf16.msra.mxu0 0
      %2045 = vmatprep.subr.bf16.mxu0 0
      %2046 = vmatpush1.bf16.msra.mxu0 0
      %2047 = vmatprep.subr.bf16.mxu0 0
      %2048 = vmatpush1.bf16.msra.mxu0 0
      %2049 = vmatprep.subr.bf16.mxu0 0
      %2050 = vmatpush1.bf16.msra.mxu0 0
      %2051 = vmatprep.subr.bf16.mxu0 0
      %2052 = vmatpush1.bf16.msra.mxu0 0
      %2053 = vmatprep.subr.bf16.mxu0 0
      %2054 = vmatpush1.bf16.msra.mxu0 0
      %2055 = vmatprep.subr.bf16.mxu0 0
      %2056 = vmatpush1.bf16.msra.mxu0 0
      %2057 = vmatprep.subr.bf16.mxu0 0
      %2058 = vmatpush1.bf16.msra.mxu0 0
      %2059 = vmatprep.subr.bf16.mxu0 0
      %2060 = vmatpush1.bf16.msra.mxu0 0
      %2061 = vmatprep.subr.bf16.mxu0 0
      %2062 = vmatpush1.bf16.msra.mxu0 0
      %2063 = vmatprep.subr.bf16.mxu0 0
      %2064 = vmatpush1.bf16.msra.mxu0 0
      %2065 = vmatprep.subr.bf16.mxu0 0
      %2066 = vmatpush1.bf16.msra.mxu0 0
      %2067 = vmatprep.subr.bf16.mxu0 0
      %2068 = vmatpush1.bf16.msra.mxu0 0
      %2069 = vmatprep.mubr.bf16.mxu0 0
      %2070 = vmatmul.mubr.bf16.gmra.mrb[0].mxu0 %v1985
      %v2071 = vpop.f32.mrb[0].mxu0
      %v2072 = vadd.f32 0.0, %v2071
      %v2073 = vpop.f32.mrb[0].mxu0
      %v2074 = vpop.f32.mrb[0].mxu0
      %v2075 = vpop.f32.mrb[0].mxu0
      %2076 = vdwg.mxu0
      %v2077 = vadd.f32 %v1960, %v2031
      %v2078 = vadd.f32 %v1961, %v2033
      %v2079 = vadd.f32 %v1962, %v2072
      %s2080 = scalar_lea.vmem %s3, 12
      %v2081 = vld [vmem:[%s2080] sm:$0x3]
      %2082 = vrot.lane.b32.xlu0 %v1965, 111
      %v2083 = vpop.permute.xlu0 %2082
      %2084 = vrot.lane.b32.xlu0 %v1966, 111
      %v2085 = vpop.permute.xlu0 %2084
      %2086 = vrot.lane.b32.xlu0 %v1967, 111
      %v2087 = vpop.permute.xlu0 %2086
      %2088 = vrot.lane.b32.xlu0 %v1968, 111
      %v2089 = vpop.permute.xlu0 %2088
      %v2090 = vsel %vm1060, %v2083, %v2085
      %v2091 = vsel %vm1060, %v2085, %v2087
      %v2092 = vsel %vm1060, %v2087, %v2089
      %v2094 = vsel %vm1448, %v2081, 0
      %v2097 = vsel %vm1452, %v2090, 0
      %v2100 = vsel %vm1452, %v2091, 0
      %v2103 = vsel %vm1452, %v2092, 0
      %2105 = vmatprep.subr.bf16.mxu0 %v2100
      %2106 = vmatpush1.bf16.msra.mxu0 %v2097
      %2107 = vmatprep.subr.bf16.mxu0 0
      %2108 = vmatpush1.bf16.msra.mxu0 0
      %2109 = vmatprep.subr.bf16.mxu0 0
      %2110 = vmatpush1.bf16.msra.mxu0 0
      %2111 = vmatprep.subr.bf16.mxu0 0
      %2112 = vmatpush1.bf16.msra.mxu0 0
      %2113 = vmatprep.subr.bf16.mxu0 0
      %2114 = vmatpush1.bf16.msra.mxu0 0
      %2115 = vmatprep.subr.bf16.mxu0 0
      %2116 = vmatpush1.bf16.msra.mxu0 0
      %2117 = vmatprep.subr.bf16.mxu0 0
      %2118 = vmatpush1.bf16.msra.mxu0 0
      %2119 = vmatprep.subr.bf16.mxu0 0
      %2120 = vmatpush1.bf16.msra.mxu0 0
      %2121 = vmatprep.subr.bf16.mxu0 0
      %2122 = vmatpush1.bf16.msra.mxu0 0
      %2123 = vmatprep.subr.bf16.mxu0 0
      %2124 = vmatpush1.bf16.msra.mxu0 0
      %2125 = vmatprep.subr.bf16.mxu0 0
      %2126 = vmatpush1.bf16.msra.mxu0 0
      %2127 = vmatprep.subr.bf16.mxu0 0
      %2128 = vmatpush1.bf16.msra.mxu0 0
      %2129 = vmatprep.subr.bf16.mxu0 0
      %2130 = vmatpush1.bf16.msra.mxu0 0
      %2131 = vmatprep.subr.bf16.mxu0 0
      %2132 = vmatpush1.bf16.msra.mxu0 0
      %2133 = vmatprep.subr.bf16.mxu0 0
      %2134 = vmatpush1.bf16.msra.mxu0 0
      %2135 = vmatprep.subr.bf16.mxu0 0
      %2136 = vmatpush1.bf16.msra.mxu0 0
      %2137 = vmatprep.mubr.bf16.mxu0 0
      %2138 = vmatmul.mubr.bf16.gmra.mrb[0].mxu0 %v2094
      %v2139 = vpop.f32.mrb[0].mxu0
      %v2140 = vadd.f32 0.0, %v2139
      %v2141 = vpop.f32.mrb[0].mxu0
      %v2142 = vadd.f32 0.0, %v2141
      %v2143 = vpop.f32.mrb[0].mxu0
      %v2144 = vpop.f32.mrb[0].mxu0
      %2145 = vdwg.mxu0
      %2146 = vmatprep.subr.bf16.mxu0 0
      %2147 = vmatpush1.bf16.msra.mxu0 %v2103
      %2148 = vmatprep.subr.bf16.mxu0 0
      %2149 = vmatpush1.bf16.msra.mxu0 0
      %2150 = vmatprep.subr.bf16.mxu0 0
      %2151 = vmatpush1.bf16.msra.mxu0 0
      %2152 = vmatprep.subr.bf16.mxu0 0
      %2153 = vmatpush1.bf16.msra.mxu0 0
      %2154 = vmatprep.subr.bf16.mxu0 0
      %2155 = vmatpush1.bf16.msra.mxu0 0
      %2156 = vmatprep.subr.bf16.mxu0 0
      %2157 = vmatpush1.bf16.msra.mxu0 0
      %2158 = vmatprep.subr.bf16.mxu0 0
      %2159 = vmatpush1.bf16.msra.mxu0 0
      %2160 = vmatprep.subr.bf16.mxu0 0
      %2161 = vmatpush1.bf16.msra.mxu0 0
      %2162 = vmatprep.subr.bf16.mxu0 0
      %2163 = vmatpush1.bf16.msra.mxu0 0
      %2164 = vmatprep.subr.bf16.mxu0 0
      %2165 = vmatpush1.bf16.msra.mxu0 0
      %2166 = vmatprep.subr.bf16.mxu0 0
      %2167 = vmatpush1.bf16.msra.mxu0 0
      %2168 = vmatprep.subr.bf16.mxu0 0
      %2169 = vmatpush1.bf16.msra.mxu0 0
      %2170 = vmatprep.subr.bf16.mxu0 0
      %2171 = vmatpush1.bf16.msra.mxu0 0
      %2172 = vmatprep.subr.bf16.mxu0 0
      %2173 = vmatpush1.bf16.msra.mxu0 0
      %2174 = vmatprep.subr.bf16.mxu0 0
      %2175 = vmatpush1.bf16.msra.mxu0 0
      %2176 = vmatprep.subr.bf16.mxu0 0
      %2177 = vmatpush1.bf16.msra.mxu0 0
      %2178 = vmatprep.mubr.bf16.mxu0 0
      %2179 = vmatmul.mubr.bf16.gmra.mrb[0].mxu0 %v2094
      %v2180 = vpop.f32.mrb[0].mxu0
      %v2181 = vadd.f32 0.0, %v2180
      %v2182 = vpop.f32.mrb[0].mxu0
      %v2183 = vpop.f32.mrb[0].mxu0
      %v2184 = vpop.f32.mrb[0].mxu0
      %2185 = vdwg.mxu0
      %v2186 = vadd.f32 %v2077, %v2140
      %v2187 = vadd.f32 %v2078, %v2142
      %v2188 = vadd.f32 %v2079, %v2181
      %s2189 = scalar_lea.vmem %s3, 14
      %v2190 = vld [vmem:[%s2189] sm:$0x3]
      %2191 = vrot.lane.b32.xlu0 %v1965, 110
      %v2192 = vpop.permute.xlu0 %2191
      %2193 = vrot.lane.b32.xlu0 %v1966, 110
      %v2194 = vpop.permute.xlu0 %2193
      %2195 = vrot.lane.b32.xlu0 %v1967, 110
      %v2196 = vpop.permute.xlu0 %2195
      %2197 = vrot.lane.b32.xlu0 %v1968, 110
      %v2198 = vpop.permute.xlu0 %2197
      %v2199 = vsel %vm1170, %v2192, %v2194
      %v2200 = vsel %vm1170, %v2194, %v2196
      %v2201 = vsel %vm1170, %v2196, %v2198
      %v2203 = vsel %vm1448, %v2190, 0
      %v2206 = vsel %vm1452, %v2199, 0
      %v2209 = vsel %vm1452, %v2200, 0
      %v2212 = vsel %vm1452, %v2201, 0
      %2214 = vmatprep.subr.bf16.mxu0 %v2209
      %2215 = vmatpush1.bf16.msra.mxu0 %v2206
      %2216 = vmatprep.subr.bf16.mxu0 0
      %2217 = vmatpush1.bf16.msra.mxu0 0
      %2218 = vmatprep.subr.bf16.mxu0 0
      %2219 = vmatpush1.bf16.msra.mxu0 0
      %2220 = vmatprep.subr.bf16.mxu0 0
      %2221 = vmatpush1.bf16.msra.mxu0 0
      %2222 = vmatprep.subr.bf16.mxu0 0
      %2223 = vmatpush1.bf16.msra.mxu0 0
      %2224 = vmatprep.subr.bf16.mxu0 0
      %2225 = vmatpush1.bf16.msra.mxu0 0
      %2226 = vmatprep.subr.bf16.mxu0 0
      %2227 = vmatpush1.bf16.msra.mxu0 0
      %2228 = vmatprep.subr.bf16.mxu0 0
      %2229 = vmatpush1.bf16.msra.mxu0 0
      %2230 = vmatprep.subr.bf16.mxu0 0
      %2231 = vmatpush1.bf16.msra.mxu0 0
      %2232 = vmatprep.subr.bf16.mxu0 0
      %2233 = vmatpush1.bf16.msra.mxu0 0
      %2234 = vmatprep.subr.bf16.mxu0 0
      %2235 = vmatpush1.bf16.msra.mxu0 0
      %2236 = vmatprep.subr.bf16.mxu0 0
      %2237 = vmatpush1.bf16.msra.mxu0 0
      %2238 = vmatprep.subr.bf16.mxu0 0
      %2239 = vmatpush1.bf16.msra.mxu0 0
      %2240 = vmatprep.subr.bf16.mxu0 0
      %2241 = vmatpush1.bf16.msra.mxu0 0
      %2242 = vmatprep.subr.bf16.mxu0 0
      %2243 = vmatpush1.bf16.msra.mxu0 0
      %2244 = vmatprep.subr.bf16.mxu0 0
      %2245 = vmatpush1.bf16.msra.mxu0 0
      %2246 = vmatprep.mubr.bf16.mxu0 0
      %2247 = vmatmul.mubr.bf16.gmra.mrb[0].mxu0 %v2203
      %v2248 = vpop.f32.mrb[0].mxu0
      %v2249 = vadd.f32 0.0, %v2248
      %v2250 = vpop.f32.mrb[0].mxu0
      %v2251 = vadd.f32 0.0, %v2250
      %v2252 = vpop.f32.mrb[0].mxu0
      %v2253 = vpop.f32.mrb[0].mxu0
      %2254 = vdwg.mxu0
      %2255 = vmatprep.subr.bf16.mxu0 0
      %2256 = vmatpush1.bf16.msra.mxu0 %v2212
      %2257 = vmatprep.subr.bf16.mxu0 0
      %2258 = vmatpush1.bf16.msra.mxu0 0
      %2259 = vmatprep.subr.bf16.mxu0 0
      %2260 = vmatpush1.bf16.msra.mxu0 0
      %2261 = vmatprep.subr.bf16.mxu0 0
      %2262 = vmatpush1.bf16.msra.mxu0 0
      %2263 = vmatprep.subr.bf16.mxu0 0
      %2264 = vmatpush1.bf16.msra.mxu0 0
      %2265 = vmatprep.subr.bf16.mxu0 0
      %2266 = vmatpush1.bf16.msra.mxu0 0
      %2267 = vmatprep.subr.bf16.mxu0 0
      %2268 = vmatpush1.bf16.msra.mxu0 0
      %2269 = vmatprep.subr.bf16.mxu0 0
      %2270 = vmatpush1.bf16.msra.mxu0 0
      %2271 = vmatprep.subr.bf16.mxu0 0
      %2272 = vmatpush1.bf16.msra.mxu0 0
      %2273 = vmatprep.subr.bf16.mxu0 0
      %2274 = vmatpush1.bf16.msra.mxu0 0
      %2275 = vmatprep.subr.bf16.mxu0 0
      %2276 = vmatpush1.bf16.msra.mxu0 0
      %2277 = vmatprep.subr.bf16.mxu0 0
      %2278 = vmatpush1.bf16.msra.mxu0 0
      %2279 = vmatprep.subr.bf16.mxu0 0
      %2280 = vmatpush1.bf16.msra.mxu0 0
      %2281 = vmatprep.subr.bf16.mxu0 0
      %2282 = vmatpush1.bf16.msra.mxu0 0
      %2283 = vmatprep.subr.bf16.mxu0 0
      %2284 = vmatpush1.bf16.msra.mxu0 0
      %2285 = vmatprep.subr.bf16.mxu0 0
      %2286 = vmatpush1.bf16.msra.mxu0 0
      %2287 = vmatprep.mubr.bf16.mxu0 0
      %2288 = vmatmul.mubr.bf16.gmra.mrb[0].mxu0 %v2203
      %v2289 = vpop.f32.mrb[0].mxu0
      %v2290 = vadd.f32 0.0, %v2289
      %v2291 = vpop.f32.mrb[0].mxu0
      %v2292 = vpop.f32.mrb[0].mxu0
      %v2293 = vpop.f32.mrb[0].mxu0
      %2294 = vdwg.mxu0
      %v2295 = vadd.f32 %v2186, %v2249
      %v2296 = vadd.f32 %v2187, %v2251
      %v2297 = vadd.f32 %v2188, %v2290
      %s2298 = scalar_lea.vmem %s3, 16
      %v2299 = vld [vmem:[%s2298] sm:$0x3]
      %2300 = vrot.lane.b32.xlu0 %v1965, 109
      %v2301 = vpop.permute.xlu0 %2300
      %2302 = vrot.lane.b32.xlu0 %v1966, 109
      %v2303 = vpop.permute.xlu0 %2302
      %2304 = vrot.lane.b32.xlu0 %v1967, 109
      %v2305 = vpop.permute.xlu0 %2304
      %2306 = vrot.lane.b32.xlu0 %v1968, 109
      %v2307 = vpop.permute.xlu0 %2306
      %v2308 = vsel %vm1280, %v2301, %v2303
      %v2309 = vsel %vm1280, %v2303, %v2305
      %v2310 = vsel %vm1280, %v2305, %v2307
      %v2312 = vsel %vm1448, %v2299, 0
      %v2315 = vsel %vm1452, %v2308, 0
      %v2318 = vsel %vm1452, %v2309, 0
      %v2321 = vsel %vm1452, %v2310, 0
      %2323 = vmatprep.subr.bf16.mxu0 %v2318
      %2324 = vmatpush1.bf16.msra.mxu0 %v2315
      %2325 = vmatprep.subr.bf16.mxu0 0
      %2326 = vmatpush1.bf16.msra.mxu0 0
      %2327 = vmatprep.subr.bf16.mxu0 0
      %2328 = vmatpush1.bf16.msra.mxu0 0
      %2329 = vmatprep.subr.bf16.mxu0 0
      %2330 = vmatpush1.bf16.msra.mxu0 0
      %2331 = vmatprep.subr.bf16.mxu0 0
      %2332 = vmatpush1.bf16.msra.mxu0 0
      %2333 = vmatprep.subr.bf16.mxu0 0
      %2334 = vmatpush1.bf16.msra.mxu0 0
      %2335 = vmatprep.subr.bf16.mxu0 0
      %2336 = vmatpush1.bf16.msra.mxu0 0
      %2337 = vmatprep.subr.bf16.mxu0 0
      %2338 = vmatpush1.bf16.msra.mxu0 0
      %2339 = vmatprep.subr.bf16.mxu0 0
      %2340 = vmatpush1.bf16.msra.mxu0 0
      %2341 = vmatprep.subr.bf16.mxu0 0
      %2342 = vmatpush1.bf16.msra.mxu0 0
      %2343 = vmatprep.subr.bf16.mxu0 0
      %2344 = vmatpush1.bf16.msra.mxu0 0
      %2345 = vmatprep.subr.bf16.mxu0 0
      %2346 = vmatpush1.bf16.msra.mxu0 0
      %2347 = vmatprep.subr.bf16.mxu0 0
      %2348 = vmatpush1.bf16.msra.mxu0 0
      %2349 = vmatprep.subr.bf16.mxu0 0
      %2350 = vmatpush1.bf16.msra.mxu0 0
      %2351 = vmatprep.subr.bf16.mxu0 0
      %2352 = vmatpush1.bf16.msra.mxu0 0
      %2353 = vmatprep.subr.bf16.mxu0 0
      %2354 = vmatpush1.bf16.msra.mxu0 0
      %2355 = vmatprep.mubr.bf16.mxu0 0
      %2356 = vmatmul.mubr.bf16.gmra.mrb[0].mxu0 %v2312
      %v2357 = vpop.f32.mrb[0].mxu0
      %v2358 = vadd.f32 0.0, %v2357
      %v2359 = vpop.f32.mrb[0].mxu0
      %v2360 = vadd.f32 0.0, %v2359
      %v2361 = vpop.f32.mrb[0].mxu0
      %v2362 = vpop.f32.mrb[0].mxu0
      %2363 = vdwg.mxu0
      %2364 = vmatprep.subr.bf16.mxu0 0
      %2365 = vmatpush1.bf16.msra.mxu0 %v2321
      %2366 = vmatprep.subr.bf16.mxu0 0
      %2367 = vmatpush1.bf16.msra.mxu0 0
      %2368 = vmatprep.subr.bf16.mxu0 0
      %2369 = vmatpush1.bf16.msra.mxu0 0
      %2370 = vmatprep.subr.bf16.mxu0 0
      %2371 = vmatpush1.bf16.msra.mxu0 0
      %2372 = vmatprep.subr.bf16.mxu0 0
      %2373 = vmatpush1.bf16.msra.mxu0 0
      %2374 = vmatprep.subr.bf16.mxu0 0
      %2375 = vmatpush1.bf16.msra.mxu0 0
      %2376 = vmatprep.subr.bf16.mxu0 0
      %2377 = vmatpush1.bf16.msra.mxu0 0
      %2378 = vmatprep.subr.bf16.mxu0 0
      %2379 = vmatpush1.bf16.msra.mxu0 0
      %2380 = vmatprep.subr.bf16.mxu0 0
      %2381 = vmatpush1.bf16.msra.mxu0 0
      %2382 = vmatprep.subr.bf16.mxu0 0
      %2383 = vmatpush1.bf16.msra.mxu0 0
      %2384 = vmatprep.subr.bf16.mxu0 0
      %2385 = vmatpush1.bf16.msra.mxu0 0
      %2386 = vmatprep.subr.bf16.mxu0 0
      %2387 = vmatpush1.bf16.msra.mxu0 0
      %2388 = vmatprep.subr.bf16.mxu0 0
      %2389 = vmatpush1.bf16.msra.mxu0 0
      %2390 = vmatprep.subr.bf16.mxu0 0
      %2391 = vmatpush1.bf16.msra.mxu0 0
      %2392 = vmatprep.subr.bf16.mxu0 0
      %2393 = vmatpush1.bf16.msra.mxu0 0
      %2394 = vmatprep.subr.bf16.mxu0 0
      %2395 = vmatpush1.bf16.msra.mxu0 0
      %2396 = vmatprep.mubr.bf16.mxu0 0
      %2397 = vmatmul.mubr.bf16.gmra.mrb[0].mxu0 %v2312
      %v2398 = vpop.f32.mrb[0].mxu0
      %v2399 = vadd.f32 0.0, %v2398
      %v2400 = vpop.f32.mrb[0].mxu0
      %v2401 = vpop.f32.mrb[0].mxu0
      %v2402 = vpop.f32.mrb[0].mxu0
      %2403 = vdwg.mxu0
      %v2404 = vadd.f32 %v2295, %v2358
      %v2405 = vadd.f32 %v2296, %v2360
      %v2406 = vadd.f32 %v2297, %v2399
      %s2407 = scalar_lea.vmem %s5, 4
      %v2408 = vld [vmem:[%s2407] sm:$0xf]
      %2410 = vset.pattern.permute.xlu0 0
      %2411 = vperm.xlu0 %2410, %v2408
      %v2412 = vpop.permute.xlu0 %2411
      %v2414 = vadd.f32 %v2404, %v2412
      %v2415 = vadd.f32 %v2405, %v2412
      %v2416 = vadd.f32 %v2406, %v2412
      %v2417 = vmax.f32 %v2414, 0.0
      %v2418 = vmax.f32 %v2415, 0.0
      %v2419 = vmax.f32 %v2416, 0.0
      %v2420 = vsel %vm1405, %v2417, 0.0
      %v2421 = vsel %vm1406, %v2418, 0.0
      %v2422 = vsel %vm1407, %v2419, 0.0
      %v2423 = vpack.c.bf16 %v2420, %v2420
      %v2424 = vpack.c.bf16 %v2421, %v2421
      %v2425 = vpack.c.bf16 %v2422, %v2422
      %v2429 = vrot.slane %v2423, 4
      %v2430 = vrot.slane %v2424, 4
      %v2431 = vrot.slane %v2425, 4
      %2435 = vst [vmem:[#allocation2 + $0x8] sm:$0x30] %v2429
      %2436 = vst [vmem:[#allocation2 + $0x10] sm:$0x30] %v2430
      %2437 = vst [vmem:[#allocation2 + $0x18] sm:$0x30] %v2431
      %v2438 = vld [vmem:[%s4] sm:$0x3]
      %v2439 = vld [vmem:[#allocation2] sm:$0x3f]
      %v2440 = vld [vmem:[#allocation2 + $0x8] sm:$0x3f]
      %v2441 = vld [vmem:[#allocation2 + $0x10] sm:$0x3f]
      %v2442 = vld [vmem:[#allocation2 + $0x18] sm:$0x3f]
      %s2443 = scalar_lea.vmem %s4, 2
      %v2444 = vld [vmem:[%s2443] sm:$0x3]
      %2449 = vrot.lane.b32.xlu0 %v2439, 18
      %v2450 = vpop.permute.xlu0 %2449
      %2451 = vrot.lane.b32.xlu0 %v2440, 18
      %v2452 = vpop.permute.xlu0 %2451
      %2453 = vrot.lane.b32.xlu0 %v2441, 18
      %v2454 = vpop.permute.xlu0 %2453
      %2455 = vrot.lane.b32.xlu0 %v2442, 18
      %v2456 = vpop.permute.xlu0 %2455
      %v2457 = vsel %vm410, %v2450, %v2452
      %v2458 = vsel %vm410, %v2452, %v2454
      %v2459 = vsel %vm410, %v2454, %v2456
      %vm2460 = vcmask 97280
      %v2462 = vsel %vm2460, %v2444, 0
      %vm2464 = vcmask 1045504
      %v2466 = vsel %vm2464, %v2457, 0
      %v2469 = vsel %vm2464, %v2458, 0
      %v2472 = vsel %vm2464, %v2459, 0
      %2474 = vmatprep.subr.bf16.mxu0 %v2469
      %2475 = vmatpush1.bf16.msra.mxu0 %v2466
      %2476 = vmatprep.subr.bf16.mxu0 0
      %2477 = vmatpush1.bf16.msra.mxu0 0
      %2478 = vmatprep.subr.bf16.mxu0 0
      %2479 = vmatpush1.bf16.msra.mxu0 0
      %2480 = vmatprep.subr.bf16.mxu0 0
      %2481 = vmatpush1.bf16.msra.mxu0 0
      %2482 = vmatprep.subr.bf16.mxu0 0
      %2483 = vmatpush1.bf16.msra.mxu0 0
      %2484 = vmatprep.subr.bf16.mxu0 0
      %2485 = vmatpush1.bf16.msra.mxu0 0
      %2486 = vmatprep.subr.bf16.mxu0 0
      %2487 = vmatpush1.bf16.msra.mxu0 0
      %2488 = vmatprep.subr.bf16.mxu0 0
      %2489 = vmatpush1.bf16.msra.mxu0 0
      %2490 = vmatprep.subr.bf16.mxu0 0
      %2491 = vmatpush1.bf16.msra.mxu0 0
      %2492 = vmatprep.subr.bf16.mxu0 0
      %2493 = vmatpush1.bf16.msra.mxu0 0
      %2494 = vmatprep.subr.bf16.mxu0 0
      %2495 = vmatpush1.bf16.msra.mxu0 0
      %2496 = vmatprep.subr.bf16.mxu0 0
      %2497 = vmatpush1.bf16.msra.mxu0 0
      %2498 = vmatprep.subr.bf16.mxu0 0
      %2499 = vmatpush1.bf16.msra.mxu0 0
      %2500 = vmatprep.subr.bf16.mxu0 0
      %2501 = vmatpush1.bf16.msra.mxu0 0
      %2502 = vmatprep.subr.bf16.mxu0 0
      %2503 = vmatpush1.bf16.msra.mxu0 0
      %2504 = vmatprep.subr.bf16.mxu0 0
      %2505 = vmatpush1.bf16.msra.mxu0 0
      %2506 = vmatprep.mubr.bf16.mxu0 0
      %2507 = vmatmul.mubr.bf16.gmra.mrb[0].mxu0 %v2462
      %v2508 = vpop.f32.mrb[0].mxu0
      %v2509 = vadd.f32 0.0, %v2508
      %v2510 = vpop.f32.mrb[0].mxu0
      %v2511 = vadd.f32 0.0, %v2510
      %v2512 = vpop.f32.mrb[0].mxu0
      %v2513 = vpop.f32.mrb[0].mxu0
      %2514 = vdwg.mxu0
      %2515 = vmatprep.subr.bf16.mxu0 0
      %2516 = vmatpush1.bf16.msra.mxu0 %v2472
      %2517 = vmatprep.subr.bf16.mxu0 0
      %2518 = vmatpush1.bf16.msra.mxu0 0
      %2519 = vmatprep.subr.bf16.mxu0 0
      %2520 = vmatpush1.bf16.msra.mxu0 0
      %2521 = vmatprep.subr.bf16.mxu0 0
      %2522 = vmatpush1.bf16.msra.mxu0 0
      %2523 = vmatprep.subr.bf16.mxu0 0
      %2524 = vmatpush1.bf16.msra.mxu0 0
      %2525 = vmatprep.subr.bf16.mxu0 0
      %2526 = vmatpush1.bf16.msra.mxu0 0
      %2527 = vmatprep.subr.bf16.mxu0 0
      %2528 = vmatpush1.bf16.msra.mxu0 0
      %2529 = vmatprep.subr.bf16.mxu0 0
      %2530 = vmatpush1.bf16.msra.mxu0 0
      %2531 = vmatprep.subr.bf16.mxu0 0
      %2532 = vmatpush1.bf16.msra.mxu0 0
      %2533 = vmatprep.subr.bf16.mxu0 0
      %2534 = vmatpush1.bf16.msra.mxu0 0
      %2535 = vmatprep.subr.bf16.mxu0 0
      %2536 = vmatpush1.bf16.msra.mxu0 0
      %2537 = vmatprep.subr.bf16.mxu0 0
      %2538 = vmatpush1.bf16.msra.mxu0 0
      %2539 = vmatprep.subr.bf16.mxu0 0
      %2540 = vmatpush1.bf16.msra.mxu0 0
      %2541 = vmatprep.subr.bf16.mxu0 0
      %2542 = vmatpush1.bf16.msra.mxu0 0
      %2543 = vmatprep.subr.bf16.mxu0 0
      %2544 = vmatpush1.bf16.msra.mxu0 0
      %2545 = vmatprep.subr.bf16.mxu0 0
      %2546 = vmatpush1.bf16.msra.mxu0 0
      %2547 = vmatprep.mubr.bf16.mxu0 0
      %2548 = vmatmul.mubr.bf16.gmra.mrb[0].mxu0 %v2462
      %v2549 = vpop.f32.mrb[0].mxu0
      %v2550 = vadd.f32 0.0, %v2549
      %v2551 = vpop.f32.mrb[0].mxu0
      %v2552 = vpop.f32.mrb[0].mxu0
      %v2553 = vpop.f32.mrb[0].mxu0
      %2554 = vdwg.mxu0
      %2555 = vrot.lane.b32.xlu0 %v2439, 19
      %v2556 = vpop.permute.xlu0 %2555
      %2557 = vrot.lane.b32.xlu0 %v2440, 19
      %v2558 = vpop.permute.xlu0 %2557
      %2559 = vrot.lane.b32.xlu0 %v2441, 19
      %v2560 = vpop.permute.xlu0 %2559
      %2561 = vrot.lane.b32.xlu0 %v2442, 19
      %v2562 = vpop.permute.xlu0 %2561
      %v2563 = vsel %vm517, %v2556, %v2558
      %v2564 = vsel %vm517, %v2558, %v2560
      %v2565 = vsel %vm517, %v2560, %v2562
      %v2567 = vsel %vm2460, %v2438, 0
      %v2570 = vsel %vm2464, %v2563, 0
      %v2573 = vsel %vm2464, %v2564, 0
      %v2576 = vsel %vm2464, %v2565, 0
      %2578 = vmatprep.subr.bf16.mxu0 %v2573
      %2579 = vmatpush1.bf16.msra.mxu0 %v2570
      %2580 = vmatprep.subr.bf16.mxu0 0
      %2581 = vmatpush1.bf16.msra.mxu0 0
      %2582 = vmatprep.subr.bf16.mxu0 0
      %2583 = vmatpush1.bf16.msra.mxu0 0
      %2584 = vmatprep.subr.bf16.mxu0 0
      %2585 = vmatpush1.bf16.msra.mxu0 0
      %2586 = vmatprep.subr.bf16.mxu0 0
      %2587 = vmatpush1.bf16.msra.mxu0 0
      %2588 = vmatprep.subr.bf16.mxu0 0
      %2589 = vmatpush1.bf16.msra.mxu0 0
      %2590 = vmatprep.subr.bf16.mxu0 0
      %2591 = vmatpush1.bf16.msra.mxu0 0
      %2592 = vmatprep.subr.bf16.mxu0 0
      %2593 = vmatpush1.bf16.msra.mxu0 0
      %2594 = vmatprep.subr.bf16.mxu0 0
      %2595 = vmatpush1.bf16.msra.mxu0 0
      %2596 = vmatprep.subr.bf16.mxu0 0
      %2597 = vmatpush1.bf16.msra.mxu0 0
      %2598 = vmatprep.subr.bf16.mxu0 0
      %2599 = vmatpush1.bf16.msra.mxu0 0
      %2600 = vmatprep.subr.bf16.mxu0 0
      %2601 = vmatpush1.bf16.msra.mxu0 0
      %2602 = vmatprep.subr.bf16.mxu0 0
      %2603 = vmatpush1.bf16.msra.mxu0 0
      %2604 = vmatprep.subr.bf16.mxu0 0
      %2605 = vmatpush1.bf16.msra.mxu0 0
      %2606 = vmatprep.subr.bf16.mxu0 0
      %2607 = vmatpush1.bf16.msra.mxu0 0
      %2608 = vmatprep.subr.bf16.mxu0 0
      %2609 = vmatpush1.bf16.msra.mxu0 0
      %2610 = vmatprep.mubr.bf16.mxu0 0
      %2611 = vmatmul.mubr.bf16.gmra.mrb[0].mxu0 %v2567
      %v2612 = vpop.f32.mrb[0].mxu0
      %v2613 = vadd.f32 %v2509, %v2612
      %v2614 = vpop.f32.mrb[0].mxu0
      %v2615 = vadd.f32 %v2511, %v2614
      %v2616 = vpop.f32.mrb[0].mxu0
      %v2617 = vpop.f32.mrb[0].mxu0
      %2618 = vdwg.mxu0
      %2619 = vmatprep.subr.bf16.mxu0 0
      %2620 = vmatpush1.bf16.msra.mxu0 %v2576
      %2621 = vmatprep.subr.bf16.mxu0 0
      %2622 = vmatpush1.bf16.msra.mxu0 0
      %2623 = vmatprep.subr.bf16.mxu0 0
      %2624 = vmatpush1.bf16.msra.mxu0 0
      %2625 = vmatprep.subr.bf16.mxu0 0
      %2626 = vmatpush1.bf16.msra.mxu0 0
      %2627 = vmatprep.subr.bf16.mxu0 0
      %2628 = vmatpush1.bf16.msra.mxu0 0
      %2629 = vmatprep.subr.bf16.mxu0 0
      %2630 = vmatpush1.bf16.msra.mxu0 0
      %2631 = vmatprep.subr.bf16.mxu0 0
      %2632 = vmatpush1.bf16.msra.mxu0 0
      %2633 = vmatprep.subr.bf16.mxu0 0
      %2634 = vmatpush1.bf16.msra.mxu0 0
      %2635 = vmatprep.subr.bf16.mxu0 0
      %2636 = vmatpush1.bf16.msra.mxu0 0
      %2637 = vmatprep.subr.bf16.mxu0 0
      %2638 = vmatpush1.bf16.msra.mxu0 0
      %2639 = vmatprep.subr.bf16.mxu0 0
      %2640 = vmatpush1.bf16.msra.mxu0 0
      %2641 = vmatprep.subr.bf16.mxu0 0
      %2642 = vmatpush1.bf16.msra.mxu0 0
      %2643 = vmatprep.subr.bf16.mxu0 0
      %2644 = vmatpush1.bf16.msra.mxu0 0
      %2645 = vmatprep.subr.bf16.mxu0 0
      %2646 = vmatpush1.bf16.msra.mxu0 0
      %2647 = vmatprep.subr.bf16.mxu0 0
      %2648 = vmatpush1.bf16.msra.mxu0 0
      %2649 = vmatprep.subr.bf16.mxu0 0
      %2650 = vmatpush1.bf16.msra.mxu0 0
      %2651 = vmatprep.mubr.bf16.mxu0 0
      %2652 = vmatmul.mubr.bf16.gmra.mrb[0].mxu0 %v2567
      %v2653 = vpop.f32.mrb[0].mxu0
      %v2654 = vadd.f32 %v2550, %v2653
      %v2655 = vpop.f32.mrb[0].mxu0
      %v2656 = vpop.f32.mrb[0].mxu0
      %v2657 = vpop.f32.mrb[0].mxu0
      %2658 = vdwg.mxu0
      %s2659 = scalar_lea.vmem %s4, 4
      %v2660 = vld [vmem:[%s2659] sm:$0x3]
      %2661 = vrot.lane.b32.xlu0 %v2439, 17
      %v2662 = vpop.permute.xlu0 %2661
      %2663 = vrot.lane.b32.xlu0 %v2440, 17
      %v2664 = vpop.permute.xlu0 %2663
      %2665 = vrot.lane.b32.xlu0 %v2441, 17
      %v2666 = vpop.permute.xlu0 %2665
      %2667 = vrot.lane.b32.xlu0 %v2442, 17
      %v2668 = vpop.permute.xlu0 %2667
      %v2669 = vsel %vm624, %v2662, %v2664
      %v2670 = vsel %vm624, %v2664, %v2666
      %v2671 = vsel %vm624, %v2666, %v2668
      %v2673 = vsel %vm2460, %v2660, 0
      %v2676 = vsel %vm2464, %v2669, 0
      %v2679 = vsel %vm2464, %v2670, 0
      %v2682 = vsel %vm2464, %v2671, 0
      %2684 = vmatprep.subr.bf16.mxu0 %v2679
      %2685 = vmatpush1.bf16.msra.mxu0 %v2676
      %2686 = vmatprep.subr.bf16.mxu0 0
      %2687 = vmatpush1.bf16.msra.mxu0 0
      %2688 = vmatprep.subr.bf16.mxu0 0
      %2689 = vmatpush1.bf16.msra.mxu0 0
      %2690 = vmatprep.subr.bf16.mxu0 0
      %2691 = vmatpush1.bf16.msra.mxu0 0
      %2692 = vmatprep.subr.bf16.mxu0 0
      %2693 = vmatpush1.bf16.msra.mxu0 0
      %2694 = vmatprep.subr.bf16.mxu0 0
      %2695 = vmatpush1.bf16.msra.mxu0 0
      %2696 = vmatprep.subr.bf16.mxu0 0
      %2697 = vmatpush1.bf16.msra.mxu0 0
      %2698 = vmatprep.subr.bf16.mxu0 0
      %2699 = vmatpush1.bf16.msra.mxu0 0
      %2700 = vmatprep.subr.bf16.mxu0 0
      %2701 = vmatpush1.bf16.msra.mxu0 0
      %2702 = vmatprep.subr.bf16.mxu0 0
      %2703 = vmatpush1.bf16.msra.mxu0 0
      %2704 = vmatprep.subr.bf16.mxu0 0
      %2705 = vmatpush1.bf16.msra.mxu0 0
      %2706 = vmatprep.subr.bf16.mxu0 0
      %2707 = vmatpush1.bf16.msra.mxu0 0
      %2708 = vmatprep.subr.bf16.mxu0 0
      %2709 = vmatpush1.bf16.msra.mxu0 0
      %2710 = vmatprep.subr.bf16.mxu0 0
      %2711 = vmatpush1.bf16.msra.mxu0 0
      %2712 = vmatprep.subr.bf16.mxu0 0
      %2713 = vmatpush1.bf16.msra.mxu0 0
      %2714 = vmatprep.subr.bf16.mxu0 0
      %2715 = vmatpush1.bf16.msra.mxu0 0
      %2716 = vmatprep.mubr.bf16.mxu0 0
      %2717 = vmatmul.mubr.bf16.gmra.mrb[0].mxu0 %v2673
      %v2718 = vpop.f32.mrb[0].mxu0
      %v2719 = vadd.f32 0.0, %v2718
      %v2720 = vpop.f32.mrb[0].mxu0
      %v2721 = vadd.f32 0.0, %v2720
      %v2722 = vpop.f32.mrb[0].mxu0
      %v2723 = vpop.f32.mrb[0].mxu0
      %2724 = vdwg.mxu0
      %2725 = vmatprep.subr.bf16.mxu0 0
      %2726 = vmatpush1.bf16.msra.mxu0 %v2682
      %2727 = vmatprep.subr.bf16.mxu0 0
      %2728 = vmatpush1.bf16.msra.mxu0 0
      %2729 = vmatprep.subr.bf16.mxu0 0
      %2730 = vmatpush1.bf16.msra.mxu0 0
      %2731 = vmatprep.subr.bf16.mxu0 0
      %2732 = vmatpush1.bf16.msra.mxu0 0
      %2733 = vmatprep.subr.bf16.mxu0 0
      %2734 = vmatpush1.bf16.msra.mxu0 0
      %2735 = vmatprep.subr.bf16.mxu0 0
      %2736 = vmatpush1.bf16.msra.mxu0 0
      %2737 = vmatprep.subr.bf16.mxu0 0
      %2738 = vmatpush1.bf16.msra.mxu0 0
      %2739 = vmatprep.subr.bf16.mxu0 0
      %2740 = vmatpush1.bf16.msra.mxu0 0
      %2741 = vmatprep.subr.bf16.mxu0 0
      %2742 = vmatpush1.bf16.msra.mxu0 0
      %2743 = vmatprep.subr.bf16.mxu0 0
      %2744 = vmatpush1.bf16.msra.mxu0 0
      %2745 = vmatprep.subr.bf16.mxu0 0
      %2746 = vmatpush1.bf16.msra.mxu0 0
      %2747 = vmatprep.subr.bf16.mxu0 0
      %2748 = vmatpush1.bf16.msra.mxu0 0
      %2749 = vmatprep.subr.bf16.mxu0 0
      %2750 = vmatpush1.bf16.msra.mxu0 0
      %2751 = vmatprep.subr.bf16.mxu0 0
      %2752 = vmatpush1.bf16.msra.mxu0 0
      %2753 = vmatprep.subr.bf16.mxu0 0
      %2754 = vmatpush1.bf16.msra.mxu0 0
      %2755 = vmatprep.subr.bf16.mxu0 0
      %2756 = vmatpush1.bf16.msra.mxu0 0
      %2757 = vmatprep.mubr.bf16.mxu0 0
      %2758 = vmatmul.mubr.bf16.gmra.mrb[0].mxu0 %v2673
      %v2759 = vpop.f32.mrb[0].mxu0
      %v2760 = vadd.f32 0.0, %v2759
      %v2761 = vpop.f32.mrb[0].mxu0
      %v2762 = vpop.f32.mrb[0].mxu0
      %v2763 = vpop.f32.mrb[0].mxu0
      %2764 = vdwg.mxu0
      %v2765 = vadd.f32 %v2613, %v2719
      %v2766 = vadd.f32 %v2615, %v2721
      %v2767 = vadd.f32 %v2654, %v2760
      %s2768 = scalar_lea.vmem %s4, 6
      %v2769 = vld [vmem:[%s2768] sm:$0x3]
      %2770 = vrot.lane.b32.xlu0 %v2439, 1
      %v2771 = vpop.permute.xlu0 %2770
      %2772 = vrot.lane.b32.xlu0 %v2440, 1
      %v2773 = vpop.permute.xlu0 %2772
      %2774 = vrot.lane.b32.xlu0 %v2441, 1
      %v2775 = vpop.permute.xlu0 %2774
      %2776 = vrot.lane.b32.xlu0 %v2442, 1
      %v2777 = vpop.permute.xlu0 %2776
      %v2778 = vsel %vm734, %v2771, %v2773
      %v2779 = vsel %vm734, %v2773, %v2775
      %v2780 = vsel %vm734, %v2775, %v2777
      %v2782 = vsel %vm2460, %v2769, 0
      %v2785 = vsel %vm2464, %v2778, 0
      %v2788 = vsel %vm2464, %v2779, 0
      %v2791 = vsel %vm2464, %v2780, 0
      %2793 = vmatprep.subr.bf16.mxu0 %v2788
      %2794 = vmatpush1.bf16.msra.mxu0 %v2785
      %2795 = vmatprep.subr.bf16.mxu0 0
      %2796 = vmatpush1.bf16.msra.mxu0 0
      %2797 = vmatprep.subr.bf16.mxu0 0
      %2798 = vmatpush1.bf16.msra.mxu0 0
      %2799 = vmatprep.subr.bf16.mxu0 0
      %2800 = vmatpush1.bf16.msra.mxu0 0
      %2801 = vmatprep.subr.bf16.mxu0 0
      %2802 = vmatpush1.bf16.msra.mxu0 0
      %2803 = vmatprep.subr.bf16.mxu0 0
      %2804 = vmatpush1.bf16.msra.mxu0 0
      %2805 = vmatprep.subr.bf16.mxu0 0
      %2806 = vmatpush1.bf16.msra.mxu0 0
      %2807 = vmatprep.subr.bf16.mxu0 0
      %2808 = vmatpush1.bf16.msra.mxu0 0
      %2809 = vmatprep.subr.bf16.mxu0 0
      %2810 = vmatpush1.bf16.msra.mxu0 0
      %2811 = vmatprep.subr.bf16.mxu0 0
      %2812 = vmatpush1.bf16.msra.mxu0 0
      %2813 = vmatprep.subr.bf16.mxu0 0
      %2814 = vmatpush1.bf16.msra.mxu0 0
      %2815 = vmatprep.subr.bf16.mxu0 0
      %2816 = vmatpush1.bf16.msra.mxu0 0
      %2817 = vmatprep.subr.bf16.mxu0 0
      %2818 = vmatpush1.bf16.msra.mxu0 0
      %2819 = vmatprep.subr.bf16.mxu0 0
      %2820 = vmatpush1.bf16.msra.mxu0 0
      %2821 = vmatprep.subr.bf16.mxu0 0
      %2822 = vmatpush1.bf16.msra.mxu0 0
      %2823 = vmatprep.subr.bf16.mxu0 0
      %2824 = vmatpush1.bf16.msra.mxu0 0
      %2825 = vmatprep.mubr.bf16.mxu0 0
      %2826 = vmatmul.mubr.bf16.gmra.mrb[0].mxu0 %v2782
      %v2827 = vpop.f32.mrb[0].mxu0
      %v2828 = vadd.f32 0.0, %v2827
      %v2829 = vpop.f32.mrb[0].mxu0
      %v2830 = vadd.f32 0.0, %v2829
      %v2831 = vpop.f32.mrb[0].mxu0
      %v2832 = vpop.f32.mrb[0].mxu0
      %2833 = vdwg.mxu0
      %2834 = vmatprep.subr.bf16.mxu0 0
      %2835 = vmatpush1.bf16.msra.mxu0 %v2791
      %2836 = vmatprep.subr.bf16.mxu0 0
      %2837 = vmatpush1.bf16.msra.mxu0 0
      %2838 = vmatprep.subr.bf16.mxu0 0
      %2839 = vmatpush1.bf16.msra.mxu0 0
      %2840 = vmatprep.subr.bf16.mxu0 0
      %2841 = vmatpush1.bf16.msra.mxu0 0
      %2842 = vmatprep.subr.bf16.mxu0 0
      %2843 = vmatpush1.bf16.msra.mxu0 0
      %2844 = vmatprep.subr.bf16.mxu0 0
      %2845 = vmatpush1.bf16.msra.mxu0 0
      %2846 = vmatprep.subr.bf16.mxu0 0
      %2847 = vmatpush1.bf16.msra.mxu0 0
      %2848 = vmatprep.subr.bf16.mxu0 0
      %2849 = vmatpush1.bf16.msra.mxu0 0
      %2850 = vmatprep.subr.bf16.mxu0 0
      %2851 = vmatpush1.bf16.msra.mxu0 0
      %2852 = vmatprep.subr.bf16.mxu0 0
      %2853 = vmatpush1.bf16.msra.mxu0 0
      %2854 = vmatprep.subr.bf16.mxu0 0
      %2855 = vmatpush1.bf16.msra.mxu0 0
      %2856 = vmatprep.subr.bf16.mxu0 0
      %2857 = vmatpush1.bf16.msra.mxu0 0
      %2858 = vmatprep.subr.bf16.mxu0 0
      %2859 = vmatpush1.bf16.msra.mxu0 0
      %2860 = vmatprep.subr.bf16.mxu0 0
      %2861 = vmatpush1.bf16.msra.mxu0 0
      %2862 = vmatprep.subr.bf16.mxu0 0
      %2863 = vmatpush1.bf16.msra.mxu0 0
      %2864 = vmatprep.subr.bf16.mxu0 0
      %2865 = vmatpush1.bf16.msra.mxu0 0
      %2866 = vmatprep.mubr.bf16.mxu0 0
      %2867 = vmatmul.mubr.bf16.gmra.mrb[0].mxu0 %v2782
      %v2868 = vpop.f32.mrb[0].mxu0
      %v2869 = vadd.f32 0.0, %v2868
      %v2870 = vpop.f32.mrb[0].mxu0
      %v2871 = vpop.f32.mrb[0].mxu0
      %v2872 = vpop.f32.mrb[0].mxu0
      %2873 = vdwg.mxu0
      %v2874 = vadd.f32 %v2765, %v2828
      %v2875 = vadd.f32 %v2766, %v2830
      %v2876 = vadd.f32 %v2767, %v2869
      %s2877 = scalar_lea.vmem %s4, 8
      %v2878 = vld [vmem:[%s2877] sm:$0x3]
      %v2880 = vsel %vm2460, %v2878, 0
      %v2883 = vsel %vm2464, %v2440, 0
      %v2886 = vsel %vm2464, %v2441, 0
      %v2889 = vsel %vm2464, %v2442, 0
      %2891 = vmatprep.subr.bf16.mxu0 %v2886
      %2892 = vmatpush1.bf16.msra.mxu0 %v2883
      %2893 = vmatprep.subr.bf16.mxu0 0
      %2894 = vmatpush1.bf16.msra.mxu0 0
      %2895 = vmatprep.subr.bf16.mxu0 0
      %2896 = vmatpush1.bf16.msra.mxu0 0
      %2897 = vmatprep.subr.bf16.mxu0 0
      %2898 = vmatpush1.bf16.msra.mxu0 0
      %2899 = vmatprep.subr.bf16.mxu0 0
      %2900 = vmatpush1.bf16.msra.mxu0 0
      %2901 = vmatprep.subr.bf16.mxu0 0
      %2902 = vmatpush1.bf16.msra.mxu0 0
      %2903 = vmatprep.subr.bf16.mxu0 0
      %2904 = vmatpush1.bf16.msra.mxu0 0
      %2905 = vmatprep.subr.bf16.mxu0 0
      %2906 = vmatpush1.bf16.msra.mxu0 0
      %2907 = vmatprep.subr.bf16.mxu0 0
      %2908 = vmatpush1.bf16.msra.mxu0 0
      %2909 = vmatprep.subr.bf16.mxu0 0
      %2910 = vmatpush1.bf16.msra.mxu0 0
      %2911 = vmatprep.subr.bf16.mxu0 0
      %2912 = vmatpush1.bf16.msra.mxu0 0
      %2913 = vmatprep.subr.bf16.mxu0 0
      %2914 = vmatpush1.bf16.msra.mxu0 0
      %2915 = vmatprep.subr.bf16.mxu0 0
      %2916 = vmatpush1.bf16.msra.mxu0 0
      %2917 = vmatprep.subr.bf16.mxu0 0
      %2918 = vmatpush1.bf16.msra.mxu0 0
      %2919 = vmatprep.subr.bf16.mxu0 0
      %2920 = vmatpush1.bf16.msra.mxu0 0
      %2921 = vmatprep.subr.bf16.mxu0 0
      %2922 = vmatpush1.bf16.msra.mxu0 0
      %2923 = vmatprep.mubr.bf16.mxu0 0
      %2924 = vmatmul.mubr.bf16.gmra.mrb[0].mxu0 %v2880
      %v2925 = vpop.f32.mrb[0].mxu0
      %v2926 = vadd.f32 0.0, %v2925
      %v2927 = vpop.f32.mrb[0].mxu0
      %v2928 = vadd.f32 0.0, %v2927
      %v2929 = vpop.f32.mrb[0].mxu0
      %v2930 = vpop.f32.mrb[0].mxu0
      %2931 = vdwg.mxu0
      %2932 = vmatprep.subr.bf16.mxu0 0
      %2933 = vmatpush1.bf16.msra.mxu0 %v2889
      %2934 = vmatprep.subr.bf16.mxu0 0
      %2935 = vmatpush1.bf16.msra.mxu0 0
      %2936 = vmatprep.subr.bf16.mxu0 0
      %2937 = vmatpush1.bf16.msra.mxu0 0
      %2938 = vmatprep.subr.bf16.mxu0 0
      %2939 = vmatpush1.bf16.msra.mxu0 0
      %2940 = vmatprep.subr.bf16.mxu0 0
      %2941 = vmatpush1.bf16.msra.mxu0 0
      %2942 = vmatprep.subr.bf16.mxu0 0
      %2943 = vmatpush1.bf16.msra.mxu0 0
      %2944 = vmatprep.subr.bf16.mxu0 0
      %2945 = vmatpush1.bf16.msra.mxu0 0
      %2946 = vmatprep.subr.bf16.mxu0 0
      %2947 = vmatpush1.bf16.msra.mxu0 0
      %2948 = vmatprep.subr.bf16.mxu0 0
      %2949 = vmatpush1.bf16.msra.mxu0 0
      %2950 = vmatprep.subr.bf16.mxu0 0
      %2951 = vmatpush1.bf16.msra.mxu0 0
      %2952 = vmatprep.subr.bf16.mxu0 0
      %2953 = vmatpush1.bf16.msra.mxu0 0
      %2954 = vmatprep.subr.bf16.mxu0 0
      %2955 = vmatpush1.bf16.msra.mxu0 0
      %2956 = vmatprep.subr.bf16.mxu0 0
      %2957 = vmatpush1.bf16.msra.mxu0 0
      %2958 = vmatprep.subr.bf16.mxu0 0
      %2959 = vmatpush1.bf16.msra.mxu0 0
      %2960 = vmatprep.subr.bf16.mxu0 0
      %2961 = vmatpush1.bf16.msra.mxu0 0
      %2962 = vmatprep.subr.bf16.mxu0 0
      %2963 = vmatpush1.bf16.msra.mxu0 0
      %2964 = vmatprep.mubr.bf16.mxu0 0
      %2965 = vmatmul.mubr.bf16.gmra.mrb[0].mxu0 %v2880
      %v2966 = vpop.f32.mrb[0].mxu0
      %v2967 = vadd.f32 0.0, %v2966
      %v2968 = vpop.f32.mrb[0].mxu0
      %v2969 = vpop.f32.mrb[0].mxu0
      %v2970 = vpop.f32.mrb[0].mxu0
      %2971 = vdwg.mxu0
      %v2972 = vadd.f32 %v2874, %v2926
      %v2973 = vadd.f32 %v2875, %v2928
      %v2974 = vadd.f32 %v2876, %v2967
      %s2975 = scalar_lea.vmem %s4, 10
      %v2976 = vld [vmem:[%s2975] sm:$0x3]
      %v2977 = vld [vmem:[#allocation2 + $0x8] sm:$0x3f]
      %v2978 = vld [vmem:[#allocation2 + $0x10] sm:$0x3f]
      %v2979 = vld [vmem:[#allocation2 + $0x18] sm:$0x3f]
      %v2980 = vld [vmem:[#allocation2 + $0x20] sm:$0x3f]
      %2985 = vrot.lane.b32.xlu0 %v2977, 127
      %v2986 = vpop.permute.xlu0 %2985
      %2987 = vrot.lane.b32.xlu0 %v2978, 127
      %v2988 = vpop.permute.xlu0 %2987
      %2989 = vrot.lane.b32.xlu0 %v2979, 127
      %v2990 = vpop.permute.xlu0 %2989
      %2991 = vrot.lane.b32.xlu0 %v2980, 127
      %v2992 = vpop.permute.xlu0 %2991
      %v2993 = vsel %vm950, %v2986, %v2988
      %v2994 = vsel %vm950, %v2988, %v2990
      %v2995 = vsel %vm950, %v2990, %v2992
      %v2997 = vsel %vm2460, %v2976, 0
      %v3000 = vsel %vm2464, %v2993, 0
      %v3003 = vsel %vm2464, %v2994, 0
      %v3006 = vsel %vm2464, %v2995, 0
      %3008 = vmatprep.subr.bf16.mxu0 %v3003
      %3009 = vmatpush1.bf16.msra.mxu0 %v3000
      %3010 = vmatprep.subr.bf16.mxu0 0
      %3011 = vmatpush1.bf16.msra.mxu0 0
      %3012 = vmatprep.subr.bf16.mxu0 0
      %3013 = vmatpush1.bf16.msra.mxu0 0
      %3014 = vmatprep.subr.bf16.mxu0 0
      %3015 = vmatpush1.bf16.msra.mxu0 0
      %3016 = vmatprep.subr.bf16.mxu0 0
      %3017 = vmatpush1.bf16.msra.mxu0 0
      %3018 = vmatprep.subr.bf16.mxu0 0
      %3019 = vmatpush1.bf16.msra.mxu0 0
      %3020 = vmatprep.subr.bf16.mxu0 0
      %3021 = vmatpush1.bf16.msra.mxu0 0
      %3022 = vmatprep.subr.bf16.mxu0 0
      %3023 = vmatpush1.bf16.msra.mxu0 0
      %3024 = vmatprep.subr.bf16.mxu0 0
      %3025 = vmatpush1.bf16.msra.mxu0 0
      %3026 = vmatprep.subr.bf16.mxu0 0
      %3027 = vmatpush1.bf16.msra.mxu0 0
      %3028 = vmatprep.subr.bf16.mxu0 0
      %3029 = vmatpush1.bf16.msra.mxu0 0
      %3030 = vmatprep.subr.bf16.mxu0 0
      %3031 = vmatpush1.bf16.msra.mxu0 0
      %3032 = vmatprep.subr.bf16.mxu0 0
      %3033 = vmatpush1.bf16.msra.mxu0 0
      %3034 = vmatprep.subr.bf16.mxu0 0
      %3035 = vmatpush1.bf16.msra.mxu0 0
      %3036 = vmatprep.subr.bf16.mxu0 0
      %3037 = vmatpush1.bf16.msra.mxu0 0
      %3038 = vmatprep.subr.bf16.mxu0 0
      %3039 = vmatpush1.bf16.msra.mxu0 0
      %3040 = vmatprep.mubr.bf16.mxu0 0
      %3041 = vmatmul.mubr.bf16.gmra.mrb[0].mxu0 %v2997
      %v3042 = vpop.f32.mrb[0].mxu0
      %v3043 = vadd.f32 0.0, %v3042
      %v3044 = vpop.f32.mrb[0].mxu0
      %v3045 = vadd.f32 0.0, %v3044
      %v3046 = vpop.f32.mrb[0].mxu0
      %v3047 = vpop.f32.mrb[0].mxu0
      %3048 = vdwg.mxu0
      %3049 = vmatprep.subr.bf16.mxu0 0
      %3050 = vmatpush1.bf16.msra.mxu0 %v3006
      %3051 = vmatprep.subr.bf16.mxu0 0
      %3052 = vmatpush1.bf16.msra.mxu0 0
      %3053 = vmatprep.subr.bf16.mxu0 0
      %3054 = vmatpush1.bf16.msra.mxu0 0
      %3055 = vmatprep.subr.bf16.mxu0 0
      %3056 = vmatpush1.bf16.msra.mxu0 0
      %3057 = vmatprep.subr.bf16.mxu0 0
      %3058 = vmatpush1.bf16.msra.mxu0 0
      %3059 = vmatprep.subr.bf16.mxu0 0
      %3060 = vmatpush1.bf16.msra.mxu0 0
      %3061 = vmatprep.subr.bf16.mxu0 0
      %3062 = vmatpush1.bf16.msra.mxu0 0
      %3063 = vmatprep.subr.bf16.mxu0 0
      %3064 = vmatpush1.bf16.msra.mxu0 0
      %3065 = vmatprep.subr.bf16.mxu0 0
      %3066 = vmatpush1.bf16.msra.mxu0 0
      %3067 = vmatprep.subr.bf16.mxu0 0
      %3068 = vmatpush1.bf16.msra.mxu0 0
      %3069 = vmatprep.subr.bf16.mxu0 0
      %3070 = vmatpush1.bf16.msra.mxu0 0
      %3071 = vmatprep.subr.bf16.mxu0 0
      %3072 = vmatpush1.bf16.msra.mxu0 0
      %3073 = vmatprep.subr.bf16.mxu0 0
      %3074 = vmatpush1.bf16.msra.mxu0 0
      %3075 = vmatprep.subr.bf16.mxu0 0
      %3076 = vmatpush1.bf16.msra.mxu0 0
      %3077 = vmatprep.subr.bf16.mxu0 0
      %3078 = vmatpush1.bf16.msra.mxu0 0
      %3079 = vmatprep.subr.bf16.mxu0 0
      %3080 = vmatpush1.bf16.msra.mxu0 0
      %3081 = vmatprep.mubr.bf16.mxu0 0
      %3082 = vmatmul.mubr.bf16.gmra.mrb[0].mxu0 %v2997
      %v3083 = vpop.f32.mrb[0].mxu0
      %v3084 = vadd.f32 0.0, %v3083
      %v3085 = vpop.f32.mrb[0].mxu0
      %v3086 = vpop.f32.mrb[0].mxu0
      %v3087 = vpop.f32.mrb[0].mxu0
      %3088 = vdwg.mxu0
      %v3089 = vadd.f32 %v2972, %v3043
      %v3090 = vadd.f32 %v2973, %v3045
      %v3091 = vadd.f32 %v2974, %v3084
      %s3092 = scalar_lea.vmem %s4, 12
      %v3093 = vld [vmem:[%s3092] sm:$0x3]
      %3094 = vrot.lane.b32.xlu0 %v2977, 111
      %v3095 = vpop.permute.xlu0 %3094
      %3096 = vrot.lane.b32.xlu0 %v2978, 111
      %v3097 = vpop.permute.xlu0 %3096
      %3098 = vrot.lane.b32.xlu0 %v2979, 111
      %v3099 = vpop.permute.xlu0 %3098
      %3100 = vrot.lane.b32.xlu0 %v2980, 111
      %v3101 = vpop.permute.xlu0 %3100
      %v3102 = vsel %vm1060, %v3095, %v3097
      %v3103 = vsel %vm1060, %v3097, %v3099
      %v3104 = vsel %vm1060, %v3099, %v3101
      %v3106 = vsel %vm2460, %v3093, 0
      %v3109 = vsel %vm2464, %v3102, 0
      %v3112 = vsel %vm2464, %v3103, 0
      %v3115 = vsel %vm2464, %v3104, 0
      %3117 = vmatprep.subr.bf16.mxu0 %v3112
      %3118 = vmatpush1.bf16.msra.mxu0 %v3109
      %3119 = vmatprep.subr.bf16.mxu0 0
      %3120 = vmatpush1.bf16.msra.mxu0 0
      %3121 = vmatprep.subr.bf16.mxu0 0
      %3122 = vmatpush1.bf16.msra.mxu0 0
      %3123 = vmatprep.subr.bf16.mxu0 0
      %3124 = vmatpush1.bf16.msra.mxu0 0
      %3125 = vmatprep.subr.bf16.mxu0 0
      %3126 = vmatpush1.bf16.msra.mxu0 0
      %3127 = vmatprep.subr.bf16.mxu0 0
      %3128 = vmatpush1.bf16.msra.mxu0 0
      %3129 = vmatprep.subr.bf16.mxu0 0
      %3130 = vmatpush1.bf16.msra.mxu0 0
      %3131 = vmatprep.subr.bf16.mxu0 0
      %3132 = vmatpush1.bf16.msra.mxu0 0
      %3133 = vmatprep.subr.bf16.mxu0 0
      %3134 = vmatpush1.bf16.msra.mxu0 0
      %3135 = vmatprep.subr.bf16.mxu0 0
      %3136 = vmatpush1.bf16.msra.mxu0 0
      %3137 = vmatprep.subr.bf16.mxu0 0
      %3138 = vmatpush1.bf16.msra.mxu0 0
      %3139 = vmatprep.subr.bf16.mxu0 0
      %3140 = vmatpush1.bf16.msra.mxu0 0
      %3141 = vmatprep.subr.bf16.mxu0 0
      %3142 = vmatpush1.bf16.msra.mxu0 0
      %3143 = vmatprep.subr.bf16.mxu0 0
      %3144 = vmatpush1.bf16.msra.mxu0 0
      %3145 = vmatprep.subr.bf16.mxu0 0
      %3146 = vmatpush1.bf16.msra.mxu0 0
      %3147 = vmatprep.subr.bf16.mxu0 0
      %3148 = vmatpush1.bf16.msra.mxu0 0
      %3149 = vmatprep.mubr.bf16.mxu0 0
      %3150 = vmatmul.mubr.bf16.gmra.mrb[0].mxu0 %v3106
      %v3151 = vpop.f32.mrb[0].mxu0
      %v3152 = vadd.f32 0.0, %v3151
      %v3153 = vpop.f32.mrb[0].mxu0
      %v3154 = vadd.f32 0.0, %v3153
      %v3155 = vpop.f32.mrb[0].mxu0
      %v3156 = vpop.f32.mrb[0].mxu0
      %3157 = vdwg.mxu0
      %3158 = vmatprep.subr.bf16.mxu0 0
      %3159 = vmatpush1.bf16.msra.mxu0 %v3115
      %3160 = vmatprep.subr.bf16.mxu0 0
      %3161 = vmatpush1.bf16.msra.mxu0 0
      %3162 = vmatprep.subr.bf16.mxu0 0
      %3163 = vmatpush1.bf16.msra.mxu0 0
      %3164 = vmatprep.subr.bf16.mxu0 0
      %3165 = vmatpush1.bf16.msra.mxu0 0
      %3166 = vmatprep.subr.bf16.mxu0 0
      %3167 = vmatpush1.bf16.msra.mxu0 0
      %3168 = vmatprep.subr.bf16.mxu0 0
      %3169 = vmatpush1.bf16.msra.mxu0 0
      %3170 = vmatprep.subr.bf16.mxu0 0
      %3171 = vmatpush1.bf16.msra.mxu0 0
      %3172 = vmatprep.subr.bf16.mxu0 0
      %3173 = vmatpush1.bf16.msra.mxu0 0
      %3174 = vmatprep.subr.bf16.mxu0 0
      %3175 = vmatpush1.bf16.msra.mxu0 0
      %3176 = vmatprep.subr.bf16.mxu0 0
      %3177 = vmatpush1.bf16.msra.mxu0 0
      %3178 = vmatprep.subr.bf16.mxu0 0
      %3179 = vmatpush1.bf16.msra.mxu0 0
      %3180 = vmatprep.subr.bf16.mxu0 0
      %3181 = vmatpush1.bf16.msra.mxu0 0
      %3182 = vmatprep.subr.bf16.mxu0 0
      %3183 = vmatpush1.bf16.msra.mxu0 0
      %3184 = vmatprep.subr.bf16.mxu0 0
      %3185 = vmatpush1.bf16.msra.mxu0 0
      %3186 = vmatprep.subr.bf16.mxu0 0
      %3187 = vmatpush1.bf16.msra.mxu0 0
      %3188 = vmatprep.subr.bf16.mxu0 0
      %3189 = vmatpush1.bf16.msra.mxu0 0
      %3190 = vmatprep.mubr.bf16.mxu0 0
      %3191 = vmatmul.mubr.bf16.gmra.mrb[0].mxu0 %v3106
      %v3192 = vpop.f32.mrb[0].mxu0
      %v3193 = vadd.f32 0.0, %v3192
      %v3194 = vpop.f32.mrb[0].mxu0
      %v3195 = vpop.f32.mrb[0].mxu0
      %v3196 = vpop.f32.mrb[0].mxu0
      %3197 = vdwg.mxu0
      %v3198 = vadd.f32 %v3089, %v3152
      %v3199 = vadd.f32 %v3090, %v3154
      %v3200 = vadd.f32 %v3091, %v3193
      %s3201 = scalar_lea.vmem %s4, 14
      %v3202 = vld [vmem:[%s3201] sm:$0x3]
      %3203 = vrot.lane.b32.xlu0 %v2977, 110
      %v3204 = vpop.permute.xlu0 %3203
      %3205 = vrot.lane.b32.xlu0 %v2978, 110
      %v3206 = vpop.permute.xlu0 %3205
      %3207 = vrot.lane.b32.xlu0 %v2979, 110
      %v3208 = vpop.permute.xlu0 %3207
      %3209 = vrot.lane.b32.xlu0 %v2980, 110
      %v3210 = vpop.permute.xlu0 %3209
      %v3211 = vsel %vm1170, %v3204, %v3206
      %v3212 = vsel %vm1170, %v3206, %v3208
      %v3213 = vsel %vm1170, %v3208, %v3210
      %v3215 = vsel %vm2460, %v3202, 0
      %v3218 = vsel %vm2464, %v3211, 0
      %v3221 = vsel %vm2464, %v3212, 0
      %v3224 = vsel %vm2464, %v3213, 0
      %3226 = vmatprep.subr.bf16.mxu0 %v3221
      %3227 = vmatpush1.bf16.msra.mxu0 %v3218
      %3228 = vmatprep.subr.bf16.mxu0 0
      %3229 = vmatpush1.bf16.msra.mxu0 0
      %3230 = vmatprep.subr.bf16.mxu0 0
      %3231 = vmatpush1.bf16.msra.mxu0 0
      %3232 = vmatprep.subr.bf16.mxu0 0
      %3233 = vmatpush1.bf16.msra.mxu0 0
      %3234 = vmatprep.subr.bf16.mxu0 0
      %3235 = vmatpush1.bf16.msra.mxu0 0
      %3236 = vmatprep.subr.bf16.mxu0 0
      %3237 = vmatpush1.bf16.msra.mxu0 0
      %3238 = vmatprep.subr.bf16.mxu0 0
      %3239 = vmatpush1.bf16.msra.mxu0 0
      %3240 = vmatprep.subr.bf16.mxu0 0
      %3241 = vmatpush1.bf16.msra.mxu0 0
      %3242 = vmatprep.subr.bf16.mxu0 0
      %3243 = vmatpush1.bf16.msra.mxu0 0
      %3244 = vmatprep.subr.bf16.mxu0 0
      %3245 = vmatpush1.bf16.msra.mxu0 0
      %3246 = vmatprep.subr.bf16.mxu0 0
      %3247 = vmatpush1.bf16.msra.mxu0 0
      %3248 = vmatprep.subr.bf16.mxu0 0
      %3249 = vmatpush1.bf16.msra.mxu0 0
      %3250 = vmatprep.subr.bf16.mxu0 0
      %3251 = vmatpush1.bf16.msra.mxu0 0
      %3252 = vmatprep.subr.bf16.mxu0 0
      %3253 = vmatpush1.bf16.msra.mxu0 0
      %3254 = vmatprep.subr.bf16.mxu0 0
      %3255 = vmatpush1.bf16.msra.mxu0 0
      %3256 = vmatprep.subr.bf16.mxu0 0
      %3257 = vmatpush1.bf16.msra.mxu0 0
      %3258 = vmatprep.mubr.bf16.mxu0 0
      %3259 = vmatmul.mubr.bf16.gmra.mrb[0].mxu0 %v3215
      %v3260 = vpop.f32.mrb[0].mxu0
      %v3261 = vadd.f32 0.0, %v3260
      %v3262 = vpop.f32.mrb[0].mxu0
      %v3263 = vadd.f32 0.0, %v3262
      %v3264 = vpop.f32.mrb[0].mxu0
      %v3265 = vpop.f32.mrb[0].mxu0
      %3266 = vdwg.mxu0
      %3267 = vmatprep.subr.bf16.mxu0 0
      %3268 = vmatpush1.bf16.msra.mxu0 %v3224
      %3269 = vmatprep.subr.bf16.mxu0 0
      %3270 = vmatpush1.bf16.msra.mxu0 0
      %3271 = vmatprep.subr.bf16.mxu0 0
      %3272 = vmatpush1.bf16.msra.mxu0 0
      %3273 = vmatprep.subr.bf16.mxu0 0
      %3274 = vmatpush1.bf16.msra.mxu0 0
      %3275 = vmatprep.subr.bf16.mxu0 0
      %3276 = vmatpush1.bf16.msra.mxu0 0
      %3277 = vmatprep.subr.bf16.mxu0 0
      %3278 = vmatpush1.bf16.msra.mxu0 0
      %3279 = vmatprep.subr.bf16.mxu0 0
      %3280 = vmatpush1.bf16.msra.mxu0 0
      %3281 = vmatprep.subr.bf16.mxu0 0
      %3282 = vmatpush1.bf16.msra.mxu0 0
      %3283 = vmatprep.subr.bf16.mxu0 0
      %3284 = vmatpush1.bf16.msra.mxu0 0
      %3285 = vmatprep.subr.bf16.mxu0 0
      %3286 = vmatpush1.bf16.msra.mxu0 0
      %3287 = vmatprep.subr.bf16.mxu0 0
      %3288 = vmatpush1.bf16.msra.mxu0 0
      %3289 = vmatprep.subr.bf16.mxu0 0
      %3290 = vmatpush1.bf16.msra.mxu0 0
      %3291 = vmatprep.subr.bf16.mxu0 0
      %3292 = vmatpush1.bf16.msra.mxu0 0
      %3293 = vmatprep.subr.bf16.mxu0 0
      %3294 = vmatpush1.bf16.msra.mxu0 0
      %3295 = vmatprep.subr.bf16.mxu0 0
      %3296 = vmatpush1.bf16.msra.mxu0 0
      %3297 = vmatprep.subr.bf16.mxu0 0
      %3298 = vmatpush1.bf16.msra.mxu0 0
      %3299 = vmatprep.mubr.bf16.mxu0 0
      %3300 = vmatmul.mubr.bf16.gmra.mrb[0].mxu0 %v3215
      %v3301 = vpop.f32.mrb[0].mxu0
      %v3302 = vadd.f32 0.0, %v3301
      %v3303 = vpop.f32.mrb[0].mxu0
      %v3304 = vpop.f32.mrb[0].mxu0
      %v3305 = vpop.f32.mrb[0].mxu0
      %3306 = vdwg.mxu0
      %v3307 = vadd.f32 %v3198, %v3261
      %v3308 = vadd.f32 %v3199, %v3263
      %v3309 = vadd.f32 %v3200, %v3302
      %s3310 = scalar_lea.vmem %s4, 16
      %v3311 = vld [vmem:[%s3310] sm:$0x3]
      %3312 = vrot.lane.b32.xlu0 %v2977, 109
      %v3313 = vpop.permute.xlu0 %3312
      %3314 = vrot.lane.b32.xlu0 %v2978, 109
      %v3315 = vpop.permute.xlu0 %3314
      %3316 = vrot.lane.b32.xlu0 %v2979, 109
      %v3317 = vpop.permute.xlu0 %3316
      %3318 = vrot.lane.b32.xlu0 %v2980, 109
      %v3319 = vpop.permute.xlu0 %3318
      %v3320 = vsel %vm1280, %v3313, %v3315
      %v3321 = vsel %vm1280, %v3315, %v3317
      %v3322 = vsel %vm1280, %v3317, %v3319
      %v3324 = vsel %vm2460, %v3311, 0
      %v3327 = vsel %vm2464, %v3320, 0
      %v3330 = vsel %vm2464, %v3321, 0
      %v3333 = vsel %vm2464, %v3322, 0
      %3335 = vmatprep.subr.bf16.mxu0 %v3330
      %3336 = vmatpush1.bf16.msra.mxu0 %v3327
      %3337 = vmatprep.subr.bf16.mxu0 0
      %3338 = vmatpush1.bf16.msra.mxu0 0
      %3339 = vmatprep.subr.bf16.mxu0 0
      %3340 = vmatpush1.bf16.msra.mxu0 0
      %3341 = vmatprep.subr.bf16.mxu0 0
      %3342 = vmatpush1.bf16.msra.mxu0 0
      %3343 = vmatprep.subr.bf16.mxu0 0
      %3344 = vmatpush1.bf16.msra.mxu0 0
      %3345 = vmatprep.subr.bf16.mxu0 0
      %3346 = vmatpush1.bf16.msra.mxu0 0
      %3347 = vmatprep.subr.bf16.mxu0 0
      %3348 = vmatpush1.bf16.msra.mxu0 0
      %3349 = vmatprep.subr.bf16.mxu0 0
      %3350 = vmatpush1.bf16.msra.mxu0 0
      %3351 = vmatprep.subr.bf16.mxu0 0
      %3352 = vmatpush1.bf16.msra.mxu0 0
      %3353 = vmatprep.subr.bf16.mxu0 0
      %3354 = vmatpush1.bf16.msra.mxu0 0
      %3355 = vmatprep.subr.bf16.mxu0 0
      %3356 = vmatpush1.bf16.msra.mxu0 0
      %3357 = vmatprep.subr.bf16.mxu0 0
      %3358 = vmatpush1.bf16.msra.mxu0 0
      %3359 = vmatprep.subr.bf16.mxu0 0
      %3360 = vmatpush1.bf16.msra.mxu0 0
      %3361 = vmatprep.subr.bf16.mxu0 0
      %3362 = vmatpush1.bf16.msra.mxu0 0
      %3363 = vmatprep.subr.bf16.mxu0 0
      %3364 = vmatpush1.bf16.msra.mxu0 0
      %3365 = vmatprep.subr.bf16.mxu0 0
      %3366 = vmatpush1.bf16.msra.mxu0 0
      %3367 = vmatprep.mubr.bf16.mxu0 0
      %3368 = vmatmul.mubr.bf16.gmra.mrb[0].mxu0 %v3324
      %v3369 = vpop.f32.mrb[0].mxu0
      %v3370 = vadd.f32 0.0, %v3369
      %v3371 = vpop.f32.mrb[0].mxu0
      %v3372 = vadd.f32 0.0, %v3371
      %v3373 = vpop.f32.mrb[0].mxu0
      %v3374 = vpop.f32.mrb[0].mxu0
      %3375 = vdwg.mxu0
      %3376 = vmatprep.subr.bf16.mxu0 0
      %3377 = vmatpush1.bf16.msra.mxu0 %v3333
      %3378 = vmatprep.subr.bf16.mxu0 0
      %3379 = vmatpush1.bf16.msra.mxu0 0
      %3380 = vmatprep.subr.bf16.mxu0 0
      %3381 = vmatpush1.bf16.msra.mxu0 0
      %3382 = vmatprep.subr.bf16.mxu0 0
      %3383 = vmatpush1.bf16.msra.mxu0 0
      %3384 = vmatprep.subr.bf16.mxu0 0
      %3385 = vmatpush1.bf16.msra.mxu0 0
      %3386 = vmatprep.subr.bf16.mxu0 0
      %3387 = vmatpush1.bf16.msra.mxu0 0
      %3388 = vmatprep.subr.bf16.mxu0 0
      %3389 = vmatpush1.bf16.msra.mxu0 0
      %3390 = vmatprep.subr.bf16.mxu0 0
      %3391 = vmatpush1.bf16.msra.mxu0 0
      %3392 = vmatprep.subr.bf16.mxu0 0
      %3393 = vmatpush1.bf16.msra.mxu0 0
      %3394 = vmatprep.subr.bf16.mxu0 0
      %3395 = vmatpush1.bf16.msra.mxu0 0
      %3396 = vmatprep.subr.bf16.mxu0 0
      %3397 = vmatpush1.bf16.msra.mxu0 0
      %3398 = vmatprep.subr.bf16.mxu0 0
      %3399 = vmatpush1.bf16.msra.mxu0 0
      %3400 = vmatprep.subr.bf16.mxu0 0
      %3401 = vmatpush1.bf16.msra.mxu0 0
      %3402 = vmatprep.subr.bf16.mxu0 0
      %3403 = vmatpush1.bf16.msra.mxu0 0
      %3404 = vmatprep.subr.bf16.mxu0 0
      %3405 = vmatpush1.bf16.msra.mxu0 0
      %3406 = vmatprep.subr.bf16.mxu0 0
      %3407 = vmatpush1.bf16.msra.mxu0 0
      %3408 = vmatprep.mubr.bf16.mxu0 0
      %3409 = vmatmul.mubr.bf16.gmra.mrb[0].mxu0 %v3324
      %v3410 = vpop.f32.mrb[0].mxu0
      %v3411 = vadd.f32 0.0, %v3410
      %v3412 = vpop.f32.mrb[0].mxu0
      %v3413 = vpop.f32.mrb[0].mxu0
      %v3414 = vpop.f32.mrb[0].mxu0
      %3415 = vdwg.mxu0
      %v3416 = vadd.f32 %v3307, %v3370
      %v3417 = vadd.f32 %v3308, %v3372
      %v3418 = vadd.f32 %v3309, %v3411
      %s3419 = scalar_lea.vmem %s5, 8
      %v3420 = vld [vmem:[%s3419] sm:$0xf]
      %3422 = vset.pattern.permute.xlu0 0
      %3423 = vperm.xlu0 %3422, %v3420
      %v3424 = vpop.permute.xlu0 %3423
      %v3426 = vadd.f32 %v3416, %v3424
      %v3427 = vadd.f32 %v3417, %v3424
      %v3428 = vadd.f32 %v3418, %v3424
      %v3429 = vmax.f32 %v3426, 0.0
      %v3430 = vmax.f32 %v3427, 0.0
      %v3431 = vmax.f32 %v3428, 0.0
      %v3432 = vsel %vm1405, %v3429, 0.0
      %v3433 = vsel %vm1406, %v3430, 0.0
      %v3434 = vsel %vm1407, %v3431, 0.0
      %v3435 = vpack.c.bf16 %v3432, %v3432
      %v3436 = vpack.c.bf16 %v3433, %v3433
      %v3437 = vpack.c.bf16 %v3434, %v3434
      %v3441 = vrot.slane %v3435, 2
      %v3442 = vrot.slane %v3436, 2
      %v3443 = vrot.slane %v3437, 2
      %3447 = vst [vmem:[#allocation2 + $0x8] sm:$0xc0] %v3441
      %3448 = vst [vmem:[#allocation2 + $0x10] sm:$0xc0] %v3442
      %3449 = vst [vmem:[#allocation2 + $0x18] sm:$0xc0] %v3443
      %v3450 = vld [vmem:[#allocation2 + $0x8] sm:$0xff]
      %v3451 = vld [vmem:[#allocation2 + $0x10] sm:$0xff]
      %v3452 = vld [vmem:[#allocation2 + $0x18] sm:$0xff]
      %v3453 = vld [vmem:[%s6] sm:$0xf]
      %v3454 = vld [vmem:[%s7] sm:$0xff]
      %3456 = vset.pattern.permute.xlu0 0
      %3457 = vperm.xlu0 %3456, %v3454
      %v3458 = vpop.permute.xlu0 %3457
      %vm3460 = vcmask 130048
      %v3462 = vsel %vm3460, %v3453, 0
      %3464 = vmatprep.subr.bf16.mxu0 %v3451
      %3465 = vmatpush1.bf16.msra.mxu0 %v3450
      %3466 = vmatprep.subr.bf16.mxu0 0
      %3467 = vmatpush1.bf16.msra.mxu0 0
      %3468 = vmatprep.subr.bf16.mxu0 0
      %3469 = vmatpush1.bf16.msra.mxu0 0
      %3470 = vmatprep.subr.bf16.mxu0 0
      %3471 = vmatpush1.bf16.msra.mxu0 0
      %3472 = vmatprep.subr.bf16.mxu0 0
      %3473 = vmatpush1.bf16.msra.mxu0 0
      %3474 = vmatprep.subr.bf16.mxu0 0
      %3475 = vmatpush1.bf16.msra.mxu0 0
      %3476 = vmatprep.subr.bf16.mxu0 0
      %3477 = vmatpush1.bf16.msra.mxu0 0
      %3478 = vmatprep.subr.bf16.mxu0 0
      %3479 = vmatpush1.bf16.msra.mxu0 0
      %3480 = vmatprep.subr.bf16.mxu0 0
      %3481 = vmatpush1.bf16.msra.mxu0 0
      %3482 = vmatprep.subr.bf16.mxu0 0
      %3483 = vmatpush1.bf16.msra.mxu0 0
      %3484 = vmatprep.subr.bf16.mxu0 0
      %3485 = vmatpush1.bf16.msra.mxu0 0
      %3486 = vmatprep.subr.bf16.mxu0 0
      %3487 = vmatpush1.bf16.msra.mxu0 0
      %3488 = vmatprep.subr.bf16.mxu0 0
      %3489 = vmatpush1.bf16.msra.mxu0 0
      %3490 = vmatprep.subr.bf16.mxu0 0
      %3491 = vmatpush1.bf16.msra.mxu0 0
      %3492 = vmatprep.subr.bf16.mxu0 0
      %3493 = vmatpush1.bf16.msra.mxu0 0
      %3494 = vmatprep.subr.bf16.mxu0 0
      %3495 = vmatpush1.bf16.msra.mxu0 0
      %3496 = vmatprep.mubr.bf16.mxu0 0
      %3497 = vmatmul.mubr.bf16.gmra.mrb[0].mxu0 %v3462
      %v3498 = vpop.f32.mrb[0].mxu0
      %v3499 = vadd.f32 %v3458, %v3498
      %v3500 = vpop.f32.mrb[0].mxu0
      %v3501 = vadd.f32 %v3458, %v3500
      %v3502 = vpop.f32.mrb[0].mxu0
      %v3503 = vpop.f32.mrb[0].mxu0
      %3504 = vdwg.mxu0
      %3505 = vmatprep.subr.bf16.mxu0 0
      %3506 = vmatpush1.bf16.msra.mxu0 %v3452
      %3507 = vmatprep.subr.bf16.mxu0 0
      %3508 = vmatpush1.bf16.msra.mxu0 0
      %3509 = vmatprep.subr.bf16.mxu0 0
      %3510 = vmatpush1.bf16.msra.mxu0 0
      %3511 = vmatprep.subr.bf16.mxu0 0
      %3512 = vmatpush1.bf16.msra.mxu0 0
      %3513 = vmatprep.subr.bf16.mxu0 0
      %3514 = vmatpush1.bf16.msra.mxu0 0
      %3515 = vmatprep.subr.bf16.mxu0 0
      %3516 = vmatpush1.bf16.msra.mxu0 0
      %3517 = vmatprep.subr.bf16.mxu0 0
      %3518 = vmatpush1.bf16.msra.mxu0 0
      %3519 = vmatprep.subr.bf16.mxu0 0
      %3520 = vmatpush1.bf16.msra.mxu0 0
      %3521 = vmatprep.subr.bf16.mxu0 0
      %3522 = vmatpush1.bf16.msra.mxu0 0
      %3523 = vmatprep.subr.bf16.mxu0 0
      %3524 = vmatpush1.bf16.msra.mxu0 0
      %3525 = vmatprep.subr.bf16.mxu0 0
      %3526 = vmatpush1.bf16.msra.mxu0 0
      %3527 = vmatprep.subr.bf16.mxu0 0
      %3528 = vmatpush1.bf16.msra.mxu0 0
      %3529 = vmatprep.subr.bf16.mxu0 0
      %3530 = vmatpush1.bf16.msra.mxu0 0
      %3531 = vmatprep.subr.bf16.mxu0 0
      %3532 = vmatpush1.bf16.msra.mxu0 0
      %3533 = vmatprep.subr.bf16.mxu0 0
      %3534 = vmatpush1.bf16.msra.mxu0 0
      %3535 = vmatprep.subr.bf16.mxu0 0
      %3536 = vmatpush1.bf16.msra.mxu0 0
      %3537 = vmatprep.mubr.bf16.mxu0 0
      %3538 = vmatmul.mubr.bf16.gmra.mrb[0].mxu0 %v3462
      %v3539 = vpop.f32.mrb[0].mxu0
      %v3540 = vadd.f32 %v3458, %v3539
      %v3541 = vpop.f32.mrb[0].mxu0
      %v3542 = vpop.f32.mrb[0].mxu0
      %v3543 = vpop.f32.mrb[0].mxu0
      %3544 = vdwg.mxu0
      %v3545 = vmax.f32 %v3499, 0.0
      %v3546 = vmax.f32 %v3501, 0.0
      %v3547 = vmax.f32 %v3540, 0.0
      %v3548 = vld [vmem:[%s8] sm:$0xf]
      %v3549 = vld [vmem:[#allocation2 + $0x8] sm:$0x3]
      %v3550 = vld [vmem:[#allocation2 + $0x10] sm:$0x3]
      %v3551 = vld [vmem:[#allocation2 + $0x18] sm:$0x3]
      %v3552 = vld [vmem:[%s9] sm:$0xff]
      %3554 = vset.pattern.permute.xlu0 0
      %3555 = vperm.xlu0 %3554, %v3552
      %v3556 = vpop.permute.xlu0 %3555
      %v3559 = vsel %vm414, %v3548, 0
      %v3562 = vsel %vm418, %v3549, 0
      %v3565 = vsel %vm418, %v3550, 0
      %v3568 = vsel %vm418, %v3551, 0
      %3570 = vmatprep.subr.bf16.mxu0 %v3565
      %3571 = vmatpush1.bf16.msra.mxu0 %v3562
      %3572 = vmatprep.subr.bf16.mxu0 0
      %3573 = vmatpush1.bf16.msra.mxu0 0
      %3574 = vmatprep.subr.bf16.mxu0 0
      %3575 = vmatpush1.bf16.msra.mxu0 0
      %3576 = vmatprep.subr.bf16.mxu0 0
      %3577 = vmatpush1.bf16.msra.mxu0 0
      %3578 = vmatprep.subr.bf16.mxu0 0
      %3579 = vmatpush1.bf16.msra.mxu0 0
      %3580 = vmatprep.subr.bf16.mxu0 0
      %3581 = vmatpush1.bf16.msra.mxu0 0
      %3582 = vmatprep.subr.bf16.mxu0 0
      %3583 = vmatpush1.bf16.msra.mxu0 0
      %3584 = vmatprep.subr.bf16.mxu0 0
      %3585 = vmatpush1.bf16.msra.mxu0 0
      %3586 = vmatprep.subr.bf16.mxu0 0
      %3587 = vmatpush1.bf16.msra.mxu0 0
      %3588 = vmatprep.subr.bf16.mxu0 0
      %3589 = vmatpush1.bf16.msra.mxu0 0
      %3590 = vmatprep.subr.bf16.mxu0 0
      %3591 = vmatpush1.bf16.msra.mxu0 0
      %3592 = vmatprep.subr.bf16.mxu0 0
      %3593 = vmatpush1.bf16.msra.mxu0 0
      %3594 = vmatprep.subr.bf16.mxu0 0
      %3595 = vmatpush1.bf16.msra.mxu0 0
      %3596 = vmatprep.subr.bf16.mxu0 0
      %3597 = vmatpush1.bf16.msra.mxu0 0
      %3598 = vmatprep.subr.bf16.mxu0 0
      %3599 = vmatpush1.bf16.msra.mxu0 0
      %3600 = vmatprep.subr.bf16.mxu0 0
      %3601 = vmatpush1.bf16.msra.mxu0 0
      %3602 = vmatprep.mubr.bf16.mxu0 0
      %3603 = vmatmul.mubr.bf16.gmra.mrb[0].mxu0 %v3559
      %v3604 = vpop.f32.mrb[0].mxu0
      %v3605 = vadd.f32 %v3556, %v3604
      %v3606 = vpop.f32.mrb[0].mxu0
      %v3607 = vadd.f32 %v3556, %v3606
      %v3608 = vpop.f32.mrb[0].mxu0
      %v3609 = vpop.f32.mrb[0].mxu0
      %3610 = vdwg.mxu0
      %3611 = vmatprep.subr.bf16.mxu0 0
      %3612 = vmatpush1.bf16.msra.mxu0 %v3568
      %3613 = vmatprep.subr.bf16.mxu0 0
      %3614 = vmatpush1.bf16.msra.mxu0 0
      %3615 = vmatprep.subr.bf16.mxu0 0
      %3616 = vmatpush1.bf16.msra.mxu0 0
      %3617 = vmatprep.subr.bf16.mxu0 0
      %3618 = vmatpush1.bf16.msra.mxu0 0
      %3619 = vmatprep.subr.bf16.mxu0 0
      %3620 = vmatpush1.bf16.msra.mxu0 0
      %3621 = vmatprep.subr.bf16.mxu0 0
      %3622 = vmatpush1.bf16.msra.mxu0 0
      %3623 = vmatprep.subr.bf16.mxu0 0
      %3624 = vmatpush1.bf16.msra.mxu0 0
      %3625 = vmatprep.subr.bf16.mxu0 0
      %3626 = vmatpush1.bf16.msra.mxu0 0
      %3627 = vmatprep.subr.bf16.mxu0 0
      %3628 = vmatpush1.bf16.msra.mxu0 0
      %3629 = vmatprep.subr.bf16.mxu0 0
      %3630 = vmatpush1.bf16.msra.mxu0 0
      %3631 = vmatprep.subr.bf16.mxu0 0
      %3632 = vmatpush1.bf16.msra.mxu0 0
      %3633 = vmatprep.subr.bf16.mxu0 0
      %3634 = vmatpush1.bf16.msra.mxu0 0
      %3635 = vmatprep.subr.bf16.mxu0 0
      %3636 = vmatpush1.bf16.msra.mxu0 0
      %3637 = vmatprep.subr.bf16.mxu0 0
      %3638 = vmatpush1.bf16.msra.mxu0 0
      %3639 = vmatprep.subr.bf16.mxu0 0
      %3640 = vmatpush1.bf16.msra.mxu0 0
      %3641 = vmatprep.subr.bf16.mxu0 0
      %3642 = vmatpush1.bf16.msra.mxu0 0
      %3643 = vmatprep.mubr.bf16.mxu0 0
      %3644 = vmatmul.mubr.bf16.gmra.mrb[0].mxu0 %v3559
      %v3645 = vpop.f32.mrb[0].mxu0
      %v3646 = vadd.f32 %v3556, %v3645
      %v3647 = vpop.f32.mrb[0].mxu0
      %v3648 = vpop.f32.mrb[0].mxu0
      %v3649 = vpop.f32.mrb[0].mxu0
      %3650 = vdwg.mxu0
      %v3651 = vadd.f32 %v3545, %v3605
      %v3652 = vadd.f32 %v3546, %v3607
      %v3653 = vadd.f32 %v3547, %v3646
      %3654 = vst [vmem:[%s359] sm:$0xff] %v3651
      %3655 = vst [vmem:[%s359 + $0x8] sm:$0xff] %v3652
      %3656 = vst [vmem:[%s359 + $0x10] sm:$0xff] %v3653
      %p3657 = scmp.lt.s32.totalorder %s21, 1
      %s3658 = scalar_select %p3657, %s21, 1
      %s3659 = smul.addr %s3658, 3
      %s3660 = smul.addr %s3659, 8
      %s3661 = scalar_lea.vmem %s10, %s3660
      // Predicated region
      $region65: #{_lambda_.1} parent=59 // pred_check
        %p3662 = pneg %p254
      $region66: #{_lambda_.1} parent=59 // pred_check_branch
        %3664 = sbr.rel (%p3662) target = $region68
      $region67: #{_lambda_.1} parent=59 // pred_region
        _
      $region68: #{_lambda_.1} parent=59 // pred_fallthru
        _
    $region60: #{_lambda_.1} parent=5 // pred_fallthru
      _
    %p3665 = scmp.le.s32.totalorder 2, %s16
    // Predicated region
    $region69: #{_lambda_.1} parent=5 // pred_check
      %p3666 = pneg %p3665
    $region70: #{_lambda_.1} parent=5 // pred_check_branch
      %3668 = sbr.rel (%p3666) target = $region72
    $region71: #{_lambda_.1} parent=5 // pred_region
      %s3669 = ssub.s32 %s16, 2
      // Predicated region
      $region73: #{_lambda_.1} parent=71 // pred_check
        %p3670 = pneg %p260
      $region74: #{_lambda_.1} parent=71 // pred_check_branch
        %3672 = sbr.rel (%p3670) target = $region76
      $region75: #{_lambda_.1} parent=71 // pred_region
        %p3673 = scmp.lt.s32.totalorder %s22, 1
        %s3674 = scalar_select %p3673, %s22, 1
        %s3675 = smul.addr %s3674, 3
        %s3676 = smul.addr %s3675, 8
        %s3677 = scalar_lea.vmem %s10, %s3676
      $region76: #{_lambda_.1} parent=71 // pred_fallthru
        _
    $region72: #{_lambda_.1} parent=5 // pred_fallthru
      _
  $region6: #{_lambda_.1} parent=0 // loop_footer
    %s20 = sadd.s32 1, %s16
  $region7: #{_lambda_.1} parent=0 // loop_footer_branch
    %15 = sbr.rel target = $region3
  $region8: #{_lambda_.1} parent=0 // loop_exit
    _

</llo_original>
